<compile_context>
chip_gen: v7x
topology: tpu7x:2x2x1
jax: 0.10.0
libtpu: 0.0.40
codegen_flags: <defaults>
</compile_context>

<pallas_src>
import functools

import jax
import jax.numpy as jnp
from jax import lax
from jax.experimental import pallas as pl
from jax.experimental.pallas import tpu as pltpu

KH, KW = 21, 13        # kernel_size
SH, SW = 5, 5          # stride
PAD_H, PAD_W = 1, 1    # padding
MH = -(-KH // SH)      # 5  : max taps per output-row phase
MW = -(-KW // SW)      # 3  : max taps per output-col phase
LANES = 128


def _convt_tanh_phase_kernel(x_ref, w_ref, b_ref, o_ref, shifts_ref, *, h, w):
    """Phase-decomposed ConvTranspose2d(1,1,(21,13),s=5,p=1) + tanh.

    x_ref      : (h, w)                 f32 VMEM  raw input
    w_ref      : (KH, KW)               f32 SMEM  raw ConvTranspose2d weight
    b_ref      : (1, 1)                 f32 SMEM  bias
    o_ref      : (SH*SW, Qmax, LANES)   f32 VMEM  per-phase planes (lane-dense)
    shifts_ref : (MH*MW, Qmax, LANES)   f32 VMEM  scratch: shifted copies of x
    """
    qmax = h + MH - 1
    x = x_ref[...]

    # One-time layout work: shifts[m*MW+n][q, p] == x[q-m, p-n] (0 outside).
    # After this every tap in the MAC loop is a fully aligned (qmax, 128)
    # vector load — no XLU rotations inside the hot loop.
    shifts_ref[...] = jnp.zeros(shifts_ref.shape, jnp.float32)
    for m in range(MH):
        for n in range(MW):
            shifts_ref[m * MW + n, m:m + h, n:n + w] = x

    bias = b_ref[0, 0]

    # Phase loops: r = output row phase, s = output col phase.  The tap set
    # for phase (r, s) is kh = r + m*SH (< KH), kw = s + n*SW (< KW).
    for r in range(SH):
        # Accumulators for the SW column phases of this row phase, seeded
        # with the bias.  Each shifted window is loaded once and reused by
        # all SW column phases.
        accs = [jnp.full((qmax, LANES), bias, jnp.float32) for _ in range(SW)]
        n_m = (KH - r + SH - 1) // SH          # number of valid kh for this r
        for m in range(n_m):
            kh = r + m * SH
            for n in range(MW):
                window = shifts_ref[m * MW + n]      # aligned (qmax,128) load
                for s in range(SW):
                    kw = s + n * SW
                    if kw < KW:
                        accs[s] = accs[s] + window * w_ref[kh, kw]
        for s in range(SW):
            # Lane-dense (full 128-lane) unmasked store of this phase plane.
            o_ref[r * SW + s] = jnp.tanh(accs[s])


@jax.jit
def conv_transpose_tanh(x, weight, bias):
    """x: (1, 1, H, W); weight: (1, 1, KH, KW) (PyTorch in, out/g, kh, kw);
    bias: (1,).  Returns tanh(conv_transpose2d(x)) of shape (1, 1, Ho, Wo)."""
    n, c, h, w_in = x.shape
    assert n == 1 and c == 1
    qmax = h + MH - 1
    pmax = w_in + MW - 1
    assert pmax <= LANES, "input width + 2 must fit in one 128-lane group"
    ho = (h - 1) * SH - 2 * PAD_H + KH
    wo = (w_in - 1) * SW - 2 * PAD_W + KW

    x2d = x[0, 0].astype(jnp.float32)
    w2d = weight[0, 0].astype(jnp.float32)   # raw weight; no flip needed here
    b2d = bias.reshape(1, 1).astype(jnp.float32)

    phases = pl.pallas_call(
        functools.partial(_convt_tanh_phase_kernel, h=h, w=w_in),
        out_shape=jax.ShapeDtypeStruct((SH * SW, qmax, LANES), jnp.float32),
        in_specs=[
            pl.BlockSpec(memory_space=pltpu.MemorySpace.VMEM),
            pl.BlockSpec(memory_space=pltpu.MemorySpace.SMEM),
            pl.BlockSpec(memory_space=pltpu.MemorySpace.SMEM),
        ],
        out_specs=pl.BlockSpec(memory_space=pltpu.MemorySpace.VMEM),
        scratch_shapes=[pltpu.VMEM((MH * MW, qmax, LANES), jnp.float32)],
    )(x2d, w2d, b2d)

    # Pure layout plumbing: interleave the 25 phase planes into the strided
    # output grid and crop away the ConvTranspose2d `padding`.
    full = (phases[:, :, :pmax]
            .reshape(SH, SW, qmax, pmax)
            .transpose(2, 0, 3, 1)
            .reshape(qmax * SH, pmax * SW))
    out2d = full[PAD_H:PAD_H + ho, PAD_W:PAD_W + wo]
    return out2d[None, None]


def _reference(x, weight, bias):
    # Pure-JAX reference: transposed conv via lhs-dilated correlation.
    w_flip = weight[:, :, ::-1, ::-1].astype(jnp.float32)  # OIHW (1,1,KH,KW)
    out = lax.conv_general_dilated(
        x.astype(jnp.float32), w_flip,
        window_strides=(1, 1),
        padding=((KH - 1 - PAD_H, KH - 1 - PAD_H),
                 (KW - 1 - PAD_W, KW - 1 - PAD_W)),
        lhs_dilation=(SH, SW),
        dimension_numbers=("NCHW", "OIHW", "NCHW"),
    ) + bias.reshape(1, 1, 1, 1)
    return jnp.tanh(out)


if __name__ == "__main__":
    key = jax.random.PRNGKey(0)
    kx, kw, kb = jax.random.split(key, 3)

    # Small input consistent with the module's (1, 1, H, W) single-channel use.
    x1 = jax.random.normal(kx, (1, 1, 16, 16), dtype=jnp.float32)

    # Deterministic synthetic parameters (PyTorch-like uniform init scale).
    fan_in = 1 * KH * KW
    bound = 1.0 / (fan_in ** 0.5)
    weight = jax.random.uniform(kw, (1, 1, KH, KW), jnp.float32, -bound, bound)
    bias = jax.random.uniform(kb, (1,), jnp.float32, -bound, bound)

    out = jax.block_until_ready(conv_transpose_tanh(x1, weight, bias))
    ref = jax.block_until_ready(_reference(x1, weight, bias))

    assert out.shape == (1, 1, (16 - 1) * SH - 2 * PAD_H + KH,
                         (16 - 1) * SW - 2 * PAD_W + KW), out.shape
    assert jnp.allclose(out, ref, atol=1e-5, rtol=1e-5), float(
        jnp.max(jnp.abs(out - ref)))
    print("KERNEL_OK")
</pallas_src>

<mosaic_0001>
module attributes {stable_mosaic.version = 11 : i64} {
  func.func @_convt_tanh_phase_kernel(%arg0: memref<16x16xf32, #tpu.memory_space<vmem>>, %arg1: memref<21x13xf32, #tpu.memory_space<smem>>, %arg2: memref<1x1xf32, #tpu.memory_space<smem>>, %arg3: memref<25x20x128xf32, #tpu.memory_space<vmem>>, %arg4: memref<15x20x128xf32, #tpu.memory_space<vmem>>) attributes {dimension_semantics = [], scalar_prefetch = 0 : i64, scratch_operands = 1 : i64, tpu.core_type = #tpu.core_type<tc>} {
    %c0 = arith.constant 0 : index
    %c0_0 = arith.constant 0 : index
    %0 = vector.load %arg0[%c0, %c0_0] : memref<16x16xf32, #tpu.memory_space<vmem>>, vector<16x16xf32>
    %cst = arith.constant 0.000000e+00 : f32
    %1 = vector.broadcast %cst : f32 to vector<15x20x128xf32>
    %c0_1 = arith.constant 0 : index
    %c0_2 = arith.constant 0 : index
    %c0_3 = arith.constant 0 : index
    %2 = vector.load %arg4[%c0_1, %c0_2, %c0_3] : memref<15x20x128xf32, #tpu.memory_space<vmem>>, vector<15x20x128xf32>
    tpu.vector_store %arg4[%c0_1, %c0_2, %c0_3], %1 {strides = array<i32>} : memref<15x20x128xf32, #tpu.memory_space<vmem>>, vector<15x20x128xf32>,
    %c0_4 = arith.constant 0 : index
    %c0_5 = arith.constant 0 : index
    %c0_6 = arith.constant 0 : index
    %3 = vector.load %arg4[%c0_4, %c0_5, %c0_6] : memref<15x20x128xf32, #tpu.memory_space<vmem>>, vector<1x16x16xf32>
    %4 = vector.shape_cast %3 : vector<1x16x16xf32> to vector<16x16xf32>
    %5 = vector.shape_cast %0 : vector<16x16xf32> to vector<1x16x16xf32>
    tpu.vector_store %arg4[%c0_4, %c0_5, %c0_6], %5 {strides = array<i32>} : memref<15x20x128xf32, #tpu.memory_space<vmem>>, vector<1x16x16xf32>,
    %c1 = arith.constant 1 : index
    %c0_7 = arith.constant 0 : index
    %c1_8 = arith.constant 1 : index
    %6 = vector.load %arg4[%c1, %c0_7, %c1_8] : memref<15x20x128xf32, #tpu.memory_space<vmem>>, vector<1x16x16xf32>
    %7 = vector.shape_cast %6 : vector<1x16x16xf32> to vector<16x16xf32>
    %8 = vector.shape_cast %0 : vector<16x16xf32> to vector<1x16x16xf32>
    tpu.vector_store %arg4[%c1, %c0_7, %c1_8], %8 {strides = array<i32>} : memref<15x20x128xf32, #tpu.memory_space<vmem>>, vector<1x16x16xf32>,
    %c2 = arith.constant 2 : index
    %c0_9 = arith.constant 0 : index
    %c2_10 = arith.constant 2 : index
    %9 = vector.load %arg4[%c2, %c0_9, %c2_10] : memref<15x20x128xf32, #tpu.memory_space<vmem>>, vector<1x16x16xf32>
    %10 = vector.shape_cast %9 : vector<1x16x16xf32> to vector<16x16xf32>
    %11 = vector.shape_cast %0 : vector<16x16xf32> to vector<1x16x16xf32>
    tpu.vector_store %arg4[%c2, %c0_9, %c2_10], %11 {strides = array<i32>} : memref<15x20x128xf32, #tpu.memory_space<vmem>>, vector<1x16x16xf32>,
    %c3 = arith.constant 3 : index
    %c1_11 = arith.constant 1 : index
    %c0_12 = arith.constant 0 : index
    %12 = vector.load %arg4[%c3, %c1_11, %c0_12] : memref<15x20x128xf32, #tpu.memory_space<vmem>>, vector<1x16x16xf32>
    %13 = vector.shape_cast %12 : vector<1x16x16xf32> to vector<16x16xf32>
    %14 = vector.shape_cast %0 : vector<16x16xf32> to vector<1x16x16xf32>
    tpu.vector_store %arg4[%c3, %c1_11, %c0_12], %14 {strides = array<i32>} : memref<15x20x128xf32, #tpu.memory_space<vmem>>, vector<1x16x16xf32>,
    %c4 = arith.constant 4 : index
    %c1_13 = arith.constant 1 : index
    %c1_14 = arith.constant 1 : index
    %15 = vector.load %arg4[%c4, %c1_13, %c1_14] : memref<15x20x128xf32, #tpu.memory_space<vmem>>, vector<1x16x16xf32>
    %16 = vector.shape_cast %15 : vector<1x16x16xf32> to vector<16x16xf32>
    %17 = vector.shape_cast %0 : vector<16x16xf32> to vector<1x16x16xf32>
    tpu.vector_store %arg4[%c4, %c1_13, %c1_14], %17 {strides = array<i32>} : memref<15x20x128xf32, #tpu.memory_space<vmem>>, vector<1x16x16xf32>,
    %c5 = arith.constant 5 : index
    %c1_15 = arith.constant 1 : index
    %c2_16 = arith.constant 2 : index
    %18 = vector.load %arg4[%c5, %c1_15, %c2_16] : memref<15x20x128xf32, #tpu.memory_space<vmem>>, vector<1x16x16xf32>
    %19 = vector.shape_cast %18 : vector<1x16x16xf32> to vector<16x16xf32>
    %20 = vector.shape_cast %0 : vector<16x16xf32> to vector<1x16x16xf32>
    tpu.vector_store %arg4[%c5, %c1_15, %c2_16], %20 {strides = array<i32>} : memref<15x20x128xf32, #tpu.memory_space<vmem>>, vector<1x16x16xf32>,
    %c6 = arith.constant 6 : index
    %c2_17 = arith.constant 2 : index
    %c0_18 = arith.constant 0 : index
    %21 = vector.load %arg4[%c6, %c2_17, %c0_18] : memref<15x20x128xf32, #tpu.memory_space<vmem>>, vector<1x16x16xf32>
    %22 = vector.shape_cast %21 : vector<1x16x16xf32> to vector<16x16xf32>
    %23 = vector.shape_cast %0 : vector<16x16xf32> to vector<1x16x16xf32>
    tpu.vector_store %arg4[%c6, %c2_17, %c0_18], %23 {strides = array<i32>} : memref<15x20x128xf32, #tpu.memory_space<vmem>>, vector<1x16x16xf32>,
    %c7 = arith.constant 7 : index
    %c2_19 = arith.constant 2 : index
    %c1_20 = arith.constant 1 : index
    %24 = vector.load %arg4[%c7, %c2_19, %c1_20] : memref<15x20x128xf32, #tpu.memory_space<vmem>>, vector<1x16x16xf32>
    %25 = vector.shape_cast %24 : vector<1x16x16xf32> to vector<16x16xf32>
    %26 = vector.shape_cast %0 : vector<16x16xf32> to vector<1x16x16xf32>
    tpu.vector_store %arg4[%c7, %c2_19, %c1_20], %26 {strides = array<i32>} : memref<15x20x128xf32, #tpu.memory_space<vmem>>, vector<1x16x16xf32>,
    %c8 = arith.constant 8 : index
    %c2_21 = arith.constant 2 : index
    %c2_22 = arith.constant 2 : index
    %27 = vector.load %arg4[%c8, %c2_21, %c2_22] : memref<15x20x128xf32, #tpu.memory_space<vmem>>, vector<1x16x16xf32>
    %28 = vector.shape_cast %27 : vector<1x16x16xf32> to vector<16x16xf32>
    %29 = vector.shape_cast %0 : vector<16x16xf32> to vector<1x16x16xf32>
    tpu.vector_store %arg4[%c8, %c2_21, %c2_22], %29 {strides = array<i32>} : memref<15x20x128xf32, #tpu.memory_space<vmem>>, vector<1x16x16xf32>,
    %c9 = arith.constant 9 : index
    %c3_23 = arith.constant 3 : index
    %c0_24 = arith.constant 0 : index
    %30 = vector.load %arg4[%c9, %c3_23, %c0_24] : memref<15x20x128xf32, #tpu.memory_space<vmem>>, vector<1x16x16xf32>
    %31 = vector.shape_cast %30 : vector<1x16x16xf32> to vector<16x16xf32>
    %32 = vector.shape_cast %0 : vector<16x16xf32> to vector<1x16x16xf32>
    tpu.vector_store %arg4[%c9, %c3_23, %c0_24], %32 {strides = array<i32>} : memref<15x20x128xf32, #tpu.memory_space<vmem>>, vector<1x16x16xf32>,
    %c10 = arith.constant 10 : index
    %c3_25 = arith.constant 3 : index
    %c1_26 = arith.constant 1 : index
    %33 = vector.load %arg4[%c10, %c3_25, %c1_26] : memref<15x20x128xf32, #tpu.memory_space<vmem>>, vector<1x16x16xf32>
    %34 = vector.shape_cast %33 : vector<1x16x16xf32> to vector<16x16xf32>
    %35 = vector.shape_cast %0 : vector<16x16xf32> to vector<1x16x16xf32>
    tpu.vector_store %arg4[%c10, %c3_25, %c1_26], %35 {strides = array<i32>} : memref<15x20x128xf32, #tpu.memory_space<vmem>>, vector<1x16x16xf32>,
    %c11 = arith.constant 11 : index
    %c3_27 = arith.constant 3 : index
    %c2_28 = arith.constant 2 : index
    %36 = vector.load %arg4[%c11, %c3_27, %c2_28] : memref<15x20x128xf32, #tpu.memory_space<vmem>>, vector<1x16x16xf32>
    %37 = vector.shape_cast %36 : vector<1x16x16xf32> to vector<16x16xf32>
    %38 = vector.shape_cast %0 : vector<16x16xf32> to vector<1x16x16xf32>
    tpu.vector_store %arg4[%c11, %c3_27, %c2_28], %38 {strides = array<i32>} : memref<15x20x128xf32, #tpu.memory_space<vmem>>, vector<1x16x16xf32>,
    %c12 = arith.constant 12 : index
    %c4_29 = arith.constant 4 : index
    %c0_30 = arith.constant 0 : index
    %39 = vector.load %arg4[%c12, %c4_29, %c0_30] : memref<15x20x128xf32, #tpu.memory_space<vmem>>, vector<1x16x16xf32>
    %40 = vector.shape_cast %39 : vector<1x16x16xf32> to vector<16x16xf32>
    %41 = vector.shape_cast %0 : vector<16x16xf32> to vector<1x16x16xf32>
    tpu.vector_store %arg4[%c12, %c4_29, %c0_30], %41 {strides = array<i32>} : memref<15x20x128xf32, #tpu.memory_space<vmem>>, vector<1x16x16xf32>,
    %c13 = arith.constant 13 : index
    %c4_31 = arith.constant 4 : index
    %c1_32 = arith.constant 1 : index
    %42 = vector.load %arg4[%c13, %c4_31, %c1_32] : memref<15x20x128xf32, #tpu.memory_space<vmem>>, vector<1x16x16xf32>
    %43 = vector.shape_cast %42 : vector<1x16x16xf32> to vector<16x16xf32>
    %44 = vector.shape_cast %0 : vector<16x16xf32> to vector<1x16x16xf32>
    tpu.vector_store %arg4[%c13, %c4_31, %c1_32], %44 {strides = array<i32>} : memref<15x20x128xf32, #tpu.memory_space<vmem>>, vector<1x16x16xf32>,
    %c14 = arith.constant 14 : index
    %c4_33 = arith.constant 4 : index
    %c2_34 = arith.constant 2 : index
    %45 = vector.load %arg4[%c14, %c4_33, %c2_34] : memref<15x20x128xf32, #tpu.memory_space<vmem>>, vector<1x16x16xf32>
    %46 = vector.shape_cast %45 : vector<1x16x16xf32> to vector<16x16xf32>
    %47 = vector.shape_cast %0 : vector<16x16xf32> to vector<1x16x16xf32>
    tpu.vector_store %arg4[%c14, %c4_33, %c2_34], %47 {strides = array<i32>} : memref<15x20x128xf32, #tpu.memory_space<vmem>>, vector<1x16x16xf32>,
    %c0_35 = arith.constant 0 : index
    %c0_36 = arith.constant 0 : index
    %48 = memref.load %arg2[%c0_35, %c0_36] : memref<1x1xf32, #tpu.memory_space<smem>>
    %49 = vector.broadcast %48 : f32 to vector<20x128xf32>
    %50 = vector.broadcast %48 : f32 to vector<20x128xf32>
    %51 = vector.broadcast %48 : f32 to vector<20x128xf32>
    %52 = vector.broadcast %48 : f32 to vector<20x128xf32>
    %53 = vector.broadcast %48 : f32 to vector<20x128xf32>
    %c0_37 = arith.constant 0 : index
    %c0_38 = arith.constant 0 : index
    %c0_39 = arith.constant 0 : index
    %54 = vector.load %arg4[%c0_37, %c0_38, %c0_39] : memref<15x20x128xf32, #tpu.memory_space<vmem>>, vector<1x20x128xf32>
    %55 = vector.shape_cast %54 : vector<1x20x128xf32> to vector<20x128xf32>
    %c0_40 = arith.constant 0 : index
    %c0_41 = arith.constant 0 : index
    %56 = memref.load %arg1[%c0_40, %c0_41] : memref<21x13xf32, #tpu.memory_space<smem>>
    %57 = vector.broadcast %56 : f32 to vector<20x128xf32>
    %58 = arith.mulf %55, %57 : vector<20x128xf32>
    %59 = arith.addf %49, %58 : vector<20x128xf32>
    %c0_42 = arith.constant 0 : index
    %c1_43 = arith.constant 1 : index
    %60 = memref.load %arg1[%c0_42, %c1_43] : memref<21x13xf32, #tpu.memory_space<smem>>
    %61 = vector.broadcast %60 : f32 to vector<20x128xf32>
    %62 = arith.mulf %55, %61 : vector<20x128xf32>
    %63 = arith.addf %50, %62 : vector<20x128xf32>
    %c0_44 = arith.constant 0 : index
    %c2_45 = arith.constant 2 : index
    %64 = memref.load %arg1[%c0_44, %c2_45] : memref<21x13xf32, #tpu.memory_space<smem>>
    %65 = vector.broadcast %64 : f32 to vector<20x128xf32>
    %66 = arith.mulf %55, %65 : vector<20x128xf32>
    %67 = arith.addf %51, %66 : vector<20x128xf32>
    %c0_46 = arith.constant 0 : index
    %c3_47 = arith.constant 3 : index
    %68 = memref.load %arg1[%c0_46, %c3_47] : memref<21x13xf32, #tpu.memory_space<smem>>
    %69 = vector.broadcast %68 : f32 to vector<20x128xf32>
    %70 = arith.mulf %55, %69 : vector<20x128xf32>
    %71 = arith.addf %52, %70 : vector<20x128xf32>
    %c0_48 = arith.constant 0 : index
    %c4_49 = arith.constant 4 : index
    %72 = memref.load %arg1[%c0_48, %c4_49] : memref<21x13xf32, #tpu.memory_space<smem>>
    %73 = vector.broadcast %72 : f32 to vector<20x128xf32>
    %74 = arith.mulf %55, %73 : vector<20x128xf32>
    %75 = arith.addf %53, %74 : vector<20x128xf32>
    %c1_50 = arith.constant 1 : index
    %c0_51 = arith.constant 0 : index
    %c0_52 = arith.constant 0 : index
    %76 = vector.load %arg4[%c1_50, %c0_51, %c0_52] : memref<15x20x128xf32, #tpu.memory_space<vmem>>, vector<1x20x128xf32>
    %77 = vector.shape_cast %76 : vector<1x20x128xf32> to vector<20x128xf32>
    %c0_53 = arith.constant 0 : index
    %c5_54 = arith.constant 5 : index
    %78 = memref.load %arg1[%c0_53, %c5_54] : memref<21x13xf32, #tpu.memory_space<smem>>
    %79 = vector.broadcast %78 : f32 to vector<20x128xf32>
    %80 = arith.mulf %77, %79 : vector<20x128xf32>
    %81 = arith.addf %59, %80 : vector<20x128xf32>
    %c0_55 = arith.constant 0 : index
    %c6_56 = arith.constant 6 : index
    %82 = memref.load %arg1[%c0_55, %c6_56] : memref<21x13xf32, #tpu.memory_space<smem>>
    %83 = vector.broadcast %82 : f32 to vector<20x128xf32>
    %84 = arith.mulf %77, %83 : vector<20x128xf32>
    %85 = arith.addf %63, %84 : vector<20x128xf32>
    %c0_57 = arith.constant 0 : index
    %c7_58 = arith.constant 7 : index
    %86 = memref.load %arg1[%c0_57, %c7_58] : memref<21x13xf32, #tpu.memory_space<smem>>
    %87 = vector.broadcast %86 : f32 to vector<20x128xf32>
    %88 = arith.mulf %77, %87 : vector<20x128xf32>
    %89 = arith.addf %67, %88 : vector<20x128xf32>
    %c0_59 = arith.constant 0 : index
    %c8_60 = arith.constant 8 : index
    %90 = memref.load %arg1[%c0_59, %c8_60] : memref<21x13xf32, #tpu.memory_space<smem>>
    %91 = vector.broadcast %90 : f32 to vector<20x128xf32>
    %92 = arith.mulf %77, %91 : vector<20x128xf32>
    %93 = arith.addf %71, %92 : vector<20x128xf32>
    %c0_61 = arith.constant 0 : index
    %c9_62 = arith.constant 9 : index
    %94 = memref.load %arg1[%c0_61, %c9_62] : memref<21x13xf32, #tpu.memory_space<smem>>
    %95 = vector.broadcast %94 : f32 to vector<20x128xf32>
    %96 = arith.mulf %77, %95 : vector<20x128xf32>
    %97 = arith.addf %75, %96 : vector<20x128xf32>
    %c2_63 = arith.constant 2 : index
    %c0_64 = arith.constant 0 : index
    %c0_65 = arith.constant 0 : index
    %98 = vector.load %arg4[%c2_63, %c0_64, %c0_65] : memref<15x20x128xf32, #tpu.memory_space<vmem>>, vector<1x20x128xf32>
    %99 = vector.shape_cast %98 : vector<1x20x128xf32> to vector<20x128xf32>
    %c0_66 = arith.constant 0 : index
    %c10_67 = arith.constant 10 : index
    %100 = memref.load %arg1[%c0_66, %c10_67] : memref<21x13xf32, #tpu.memory_space<smem>>
    %101 = vector.broadcast %100 : f32 to vector<20x128xf32>
    %102 = arith.mulf %99, %101 : vector<20x128xf32>
    %103 = arith.addf %81, %102 : vector<20x128xf32>
    %c0_68 = arith.constant 0 : index
    %c11_69 = arith.constant 11 : index
    %104 = memref.load %arg1[%c0_68, %c11_69] : memref<21x13xf32, #tpu.memory_space<smem>>
    %105 = vector.broadcast %104 : f32 to vector<20x128xf32>
    %106 = arith.mulf %99, %105 : vector<20x128xf32>
    %107 = arith.addf %85, %106 : vector<20x128xf32>
    %c0_70 = arith.constant 0 : index
    %c12_71 = arith.constant 12 : index
    %108 = memref.load %arg1[%c0_70, %c12_71] : memref<21x13xf32, #tpu.memory_space<smem>>
    %109 = vector.broadcast %108 : f32 to vector<20x128xf32>
    %110 = arith.mulf %99, %109 : vector<20x128xf32>
    %111 = arith.addf %89, %110 : vector<20x128xf32>
    %c3_72 = arith.constant 3 : index
    %c0_73 = arith.constant 0 : index
    %c0_74 = arith.constant 0 : index
    %112 = vector.load %arg4[%c3_72, %c0_73, %c0_74] : memref<15x20x128xf32, #tpu.memory_space<vmem>>, vector<1x20x128xf32>
    %113 = vector.shape_cast %112 : vector<1x20x128xf32> to vector<20x128xf32>
    %c5_75 = arith.constant 5 : index
    %c0_76 = arith.constant 0 : index
    %114 = memref.load %arg1[%c5_75, %c0_76] : memref<21x13xf32, #tpu.memory_space<smem>>
    %115 = vector.broadcast %114 : f32 to vector<20x128xf32>
    %116 = arith.mulf %113, %115 : vector<20x128xf32>
    %117 = arith.addf %103, %116 : vector<20x128xf32>
    %c5_77 = arith.constant 5 : index
    %c1_78 = arith.constant 1 : index
    %118 = memref.load %arg1[%c5_77, %c1_78] : memref<21x13xf32, #tpu.memory_space<smem>>
    %119 = vector.broadcast %118 : f32 to vector<20x128xf32>
    %120 = arith.mulf %113, %119 : vector<20x128xf32>
    %121 = arith.addf %107, %120 : vector<20x128xf32>
    %c5_79 = arith.constant 5 : index
    %c2_80 = arith.constant 2 : index
    %122 = memref.load %arg1[%c5_79, %c2_80] : memref<21x13xf32, #tpu.memory_space<smem>>
    %123 = vector.broadcast %122 : f32 to vector<20x128xf32>
    %124 = arith.mulf %113, %123 : vector<20x128xf32>
    %125 = arith.addf %111, %124 : vector<20x128xf32>
    %c5_81 = arith.constant 5 : index
    %c3_82 = arith.constant 3 : index
    %126 = memref.load %arg1[%c5_81, %c3_82] : memref<21x13xf32, #tpu.memory_space<smem>>
    %127 = vector.broadcast %126 : f32 to vector<20x128xf32>
    %128 = arith.mulf %113, %127 : vector<20x128xf32>
    %129 = arith.addf %93, %128 : vector<20x128xf32>
    %c5_83 = arith.constant 5 : index
    %c4_84 = arith.constant 4 : index
    %130 = memref.load %arg1[%c5_83, %c4_84] : memref<21x13xf32, #tpu.memory_space<smem>>
    %131 = vector.broadcast %130 : f32 to vector<20x128xf32>
    %132 = arith.mulf %113, %131 : vector<20x128xf32>
    %133 = arith.addf %97, %132 : vector<20x128xf32>
    %c4_85 = arith.constant 4 : index
    %c0_86 = arith.constant 0 : index
    %c0_87 = arith.constant 0 : index
    %134 = vector.load %arg4[%c4_85, %c0_86, %c0_87] : memref<15x20x128xf32, #tpu.memory_space<vmem>>, vector<1x20x128xf32>
    %135 = vector.shape_cast %134 : vector<1x20x128xf32> to vector<20x128xf32>
    %c5_88 = arith.constant 5 : index
    %c5_89 = arith.constant 5 : index
    %136 = memref.load %arg1[%c5_88, %c5_89] : memref<21x13xf32, #tpu.memory_space<smem>>
    %137 = vector.broadcast %136 : f32 to vector<20x128xf32>
    %138 = arith.mulf %135, %137 : vector<20x128xf32>
    %139 = arith.addf %117, %138 : vector<20x128xf32>
    %c5_90 = arith.constant 5 : index
    %c6_91 = arith.constant 6 : index
    %140 = memref.load %arg1[%c5_90, %c6_91] : memref<21x13xf32, #tpu.memory_space<smem>>
    %141 = vector.broadcast %140 : f32 to vector<20x128xf32>
    %142 = arith.mulf %135, %141 : vector<20x128xf32>
    %143 = arith.addf %121, %142 : vector<20x128xf32>
    %c5_92 = arith.constant 5 : index
    %c7_93 = arith.constant 7 : index
    %144 = memref.load %arg1[%c5_92, %c7_93] : memref<21x13xf32, #tpu.memory_space<smem>>
    %145 = vector.broadcast %144 : f32 to vector<20x128xf32>
    %146 = arith.mulf %135, %145 : vector<20x128xf32>
    %147 = arith.addf %125, %146 : vector<20x128xf32>
    %c5_94 = arith.constant 5 : index
    %c8_95 = arith.constant 8 : index
    %148 = memref.load %arg1[%c5_94, %c8_95] : memref<21x13xf32, #tpu.memory_space<smem>>
    %149 = vector.broadcast %148 : f32 to vector<20x128xf32>
    %150 = arith.mulf %135, %149 : vector<20x128xf32>
    %151 = arith.addf %129, %150 : vector<20x128xf32>
    %c5_96 = arith.constant 5 : index
    %c9_97 = arith.constant 9 : index
    %152 = memref.load %arg1[%c5_96, %c9_97] : memref<21x13xf32, #tpu.memory_space<smem>>
    %153 = vector.broadcast %152 : f32 to vector<20x128xf32>
    %154 = arith.mulf %135, %153 : vector<20x128xf32>
    %155 = arith.addf %133, %154 : vector<20x128xf32>
    %c5_98 = arith.constant 5 : index
    %c0_99 = arith.constant 0 : index
    %c0_100 = arith.constant 0 : index
    %156 = vector.load %arg4[%c5_98, %c0_99, %c0_100] : memref<15x20x128xf32, #tpu.memory_space<vmem>>, vector<1x20x128xf32>
    %157 = vector.shape_cast %156 : vector<1x20x128xf32> to vector<20x128xf32>
    %c5_101 = arith.constant 5 : index
    %c10_102 = arith.constant 10 : index
    %158 = memref.load %arg1[%c5_101, %c10_102] : memref<21x13xf32, #tpu.memory_space<smem>>
    %159 = vector.broadcast %158 : f32 to vector<20x128xf32>
    %160 = arith.mulf %157, %159 : vector<20x128xf32>
    %161 = arith.addf %139, %160 : vector<20x128xf32>
    %c5_103 = arith.constant 5 : index
    %c11_104 = arith.constant 11 : index
    %162 = memref.load %arg1[%c5_103, %c11_104] : memref<21x13xf32, #tpu.memory_space<smem>>
    %163 = vector.broadcast %162 : f32 to vector<20x128xf32>
    %164 = arith.mulf %157, %163 : vector<20x128xf32>
    %165 = arith.addf %143, %164 : vector<20x128xf32>
    %c5_105 = arith.constant 5 : index
    %c12_106 = arith.constant 12 : index
    %166 = memref.load %arg1[%c5_105, %c12_106] : memref<21x13xf32, #tpu.memory_space<smem>>
    %167 = vector.broadcast %166 : f32 to vector<20x128xf32>
    %168 = arith.mulf %157, %167 : vector<20x128xf32>
    %169 = arith.addf %147, %168 : vector<20x128xf32>
    %c6_107 = arith.constant 6 : index
    %c0_108 = arith.constant 0 : index
    %c0_109 = arith.constant 0 : index
    %170 = vector.load %arg4[%c6_107, %c0_108, %c0_109] : memref<15x20x128xf32, #tpu.memory_space<vmem>>, vector<1x20x128xf32>
    %171 = vector.shape_cast %170 : vector<1x20x128xf32> to vector<20x128xf32>
    %c10_110 = arith.constant 10 : index
    %c0_111 = arith.constant 0 : index
    %172 = memref.load %arg1[%c10_110, %c0_111] : memref<21x13xf32, #tpu.memory_space<smem>>
    %173 = vector.broadcast %172 : f32 to vector<20x128xf32>
    %174 = arith.mulf %171, %173 : vector<20x128xf32>
    %175 = arith.addf %161, %174 : vector<20x128xf32>
    %c10_112 = arith.constant 10 : index
    %c1_113 = arith.constant 1 : index
    %176 = memref.load %arg1[%c10_112, %c1_113] : memref<21x13xf32, #tpu.memory_space<smem>>
    %177 = vector.broadcast %176 : f32 to vector<20x128xf32>
    %178 = arith.mulf %171, %177 : vector<20x128xf32>
    %179 = arith.addf %165, %178 : vector<20x128xf32>
    %c10_114 = arith.constant 10 : index
    %c2_115 = arith.constant 2 : index
    %180 = memref.load %arg1[%c10_114, %c2_115] : memref<21x13xf32, #tpu.memory_space<smem>>
    %181 = vector.broadcast %180 : f32 to vector<20x128xf32>
    %182 = arith.mulf %171, %181 : vector<20x128xf32>
    %183 = arith.addf %169, %182 : vector<20x128xf32>
    %c10_116 = arith.constant 10 : index
    %c3_117 = arith.constant 3 : index
    %184 = memref.load %arg1[%c10_116, %c3_117] : memref<21x13xf32, #tpu.memory_space<smem>>
    %185 = vector.broadcast %184 : f32 to vector<20x128xf32>
    %186 = arith.mulf %171, %185 : vector<20x128xf32>
    %187 = arith.addf %151, %186 : vector<20x128xf32>
    %c10_118 = arith.constant 10 : index
    %c4_119 = arith.constant 4 : index
    %188 = memref.load %arg1[%c10_118, %c4_119] : memref<21x13xf32, #tpu.memory_space<smem>>
    %189 = vector.broadcast %188 : f32 to vector<20x128xf32>
    %190 = arith.mulf %171, %189 : vector<20x128xf32>
    %191 = arith.addf %155, %190 : vector<20x128xf32>
    %c7_120 = arith.constant 7 : index
    %c0_121 = arith.constant 0 : index
    %c0_122 = arith.constant 0 : index
    %192 = vector.load %arg4[%c7_120, %c0_121, %c0_122] : memref<15x20x128xf32, #tpu.memory_space<vmem>>, vector<1x20x128xf32>
    %193 = vector.shape_cast %192 : vector<1x20x128xf32> to vector<20x128xf32>
    %c10_123 = arith.constant 10 : index
    %c5_124 = arith.constant 5 : index
    %194 = memref.load %arg1[%c10_123, %c5_124] : memref<21x13xf32, #tpu.memory_space<smem>>
    %195 = vector.broadcast %194 : f32 to vector<20x128xf32>
    %196 = arith.mulf %193, %195 : vector<20x128xf32>
    %197 = arith.addf %175, %196 : vector<20x128xf32>
    %c10_125 = arith.constant 10 : index
    %c6_126 = arith.constant 6 : index
    %198 = memref.load %arg1[%c10_125, %c6_126] : memref<21x13xf32, #tpu.memory_space<smem>>
    %199 = vector.broadcast %198 : f32 to vector<20x128xf32>
    %200 = arith.mulf %193, %199 : vector<20x128xf32>
    %201 = arith.addf %179, %200 : vector<20x128xf32>
    %c10_127 = arith.constant 10 : index
    %c7_128 = arith.constant 7 : index
    %202 = memref.load %arg1[%c10_127, %c7_128] : memref<21x13xf32, #tpu.memory_space<smem>>
    %203 = vector.broadcast %202 : f32 to vector<20x128xf32>
    %204 = arith.mulf %193, %203 : vector<20x128xf32>
    %205 = arith.addf %183, %204 : vector<20x128xf32>
    %c10_129 = arith.constant 10 : index
    %c8_130 = arith.constant 8 : index
    %206 = memref.load %arg1[%c10_129, %c8_130] : memref<21x13xf32, #tpu.memory_space<smem>>
    %207 = vector.broadcast %206 : f32 to vector<20x128xf32>
    %208 = arith.mulf %193, %207 : vector<20x128xf32>
    %209 = arith.addf %187, %208 : vector<20x128xf32>
    %c10_131 = arith.constant 10 : index
    %c9_132 = arith.constant 9 : index
    %210 = memref.load %arg1[%c10_131, %c9_132] : memref<21x13xf32, #tpu.memory_space<smem>>
    %211 = vector.broadcast %210 : f32 to vector<20x128xf32>
    %212 = arith.mulf %193, %211 : vector<20x128xf32>
    %213 = arith.addf %191, %212 : vector<20x128xf32>
    %c8_133 = arith.constant 8 : index
    %c0_134 = arith.constant 0 : index
    %c0_135 = arith.constant 0 : index
    %214 = vector.load %arg4[%c8_133, %c0_134, %c0_135] : memref<15x20x128xf32, #tpu.memory_space<vmem>>, vector<1x20x128xf32>
    %215 = vector.shape_cast %214 : vector<1x20x128xf32> to vector<20x128xf32>
    %c10_136 = arith.constant 10 : index
    %c10_137 = arith.constant 10 : index
    %216 = memref.load %arg1[%c10_136, %c10_137] : memref<21x13xf32, #tpu.memory_space<smem>>
    %217 = vector.broadcast %216 : f32 to vector<20x128xf32>
    %218 = arith.mulf %215, %217 : vector<20x128xf32>
    %219 = arith.addf %197, %218 : vector<20x128xf32>
    %c10_138 = arith.constant 10 : index
    %c11_139 = arith.constant 11 : index
    %220 = memref.load %arg1[%c10_138, %c11_139] : memref<21x13xf32, #tpu.memory_space<smem>>
    %221 = vector.broadcast %220 : f32 to vector<20x128xf32>
    %222 = arith.mulf %215, %221 : vector<20x128xf32>
    %223 = arith.addf %201, %222 : vector<20x128xf32>
    %c10_140 = arith.constant 10 : index
    %c12_141 = arith.constant 12 : index
    %224 = memref.load %arg1[%c10_140, %c12_141] : memref<21x13xf32, #tpu.memory_space<smem>>
    %225 = vector.broadcast %224 : f32 to vector<20x128xf32>
    %226 = arith.mulf %215, %225 : vector<20x128xf32>
    %227 = arith.addf %205, %226 : vector<20x128xf32>
    %c9_142 = arith.constant 9 : index
    %c0_143 = arith.constant 0 : index
    %c0_144 = arith.constant 0 : index
    %228 = vector.load %arg4[%c9_142, %c0_143, %c0_144] : memref<15x20x128xf32, #tpu.memory_space<vmem>>, vector<1x20x128xf32>
    %229 = vector.shape_cast %228 : vector<1x20x128xf32> to vector<20x128xf32>
    %c15 = arith.constant 15 : index
    %c0_145 = arith.constant 0 : index
    %230 = memref.load %arg1[%c15, %c0_145] : memref<21x13xf32, #tpu.memory_space<smem>>
    %231 = vector.broadcast %230 : f32 to vector<20x128xf32>
    %232 = arith.mulf %229, %231 : vector<20x128xf32>
    %233 = arith.addf %219, %232 : vector<20x128xf32>
    %c15_146 = arith.constant 15 : index
    %c1_147 = arith.constant 1 : index
    %234 = memref.load %arg1[%c15_146, %c1_147] : memref<21x13xf32, #tpu.memory_space<smem>>
    %235 = vector.broadcast %234 : f32 to vector<20x128xf32>
    %236 = arith.mulf %229, %235 : vector<20x128xf32>
    %237 = arith.addf %223, %236 : vector<20x128xf32>
    %c15_148 = arith.constant 15 : index
    %c2_149 = arith.constant 2 : index
    %238 = memref.load %arg1[%c15_148, %c2_149] : memref<21x13xf32, #tpu.memory_space<smem>>
    %239 = vector.broadcast %238 : f32 to vector<20x128xf32>
    %240 = arith.mulf %229, %239 : vector<20x128xf32>
    %241 = arith.addf %227, %240 : vector<20x128xf32>
    %c15_150 = arith.constant 15 : index
    %c3_151 = arith.constant 3 : index
    %242 = memref.load %arg1[%c15_150, %c3_151] : memref<21x13xf32, #tpu.memory_space<smem>>
    %243 = vector.broadcast %242 : f32 to vector<20x128xf32>
    %244 = arith.mulf %229, %243 : vector<20x128xf32>
    %245 = arith.addf %209, %244 : vector<20x128xf32>
    %c15_152 = arith.constant 15 : index
    %c4_153 = arith.constant 4 : index
    %246 = memref.load %arg1[%c15_152, %c4_153] : memref<21x13xf32, #tpu.memory_space<smem>>
    %247 = vector.broadcast %246 : f32 to vector<20x128xf32>
    %248 = arith.mulf %229, %247 : vector<20x128xf32>
    %249 = arith.addf %213, %248 : vector<20x128xf32>
    %c10_154 = arith.constant 10 : index
    %c0_155 = arith.constant 0 : index
    %c0_156 = arith.constant 0 : index
    %250 = vector.load %arg4[%c10_154, %c0_155, %c0_156] : memref<15x20x128xf32, #tpu.memory_space<vmem>>, vector<1x20x128xf32>
    %251 = vector.shape_cast %250 : vector<1x20x128xf32> to vector<20x128xf32>
    %c15_157 = arith.constant 15 : index
    %c5_158 = arith.constant 5 : index
    %252 = memref.load %arg1[%c15_157, %c5_158] : memref<21x13xf32, #tpu.memory_space<smem>>
    %253 = vector.broadcast %252 : f32 to vector<20x128xf32>
    %254 = arith.mulf %251, %253 : vector<20x128xf32>
    %255 = arith.addf %233, %254 : vector<20x128xf32>
    %c15_159 = arith.constant 15 : index
    %c6_160 = arith.constant 6 : index
    %256 = memref.load %arg1[%c15_159, %c6_160] : memref<21x13xf32, #tpu.memory_space<smem>>
    %257 = vector.broadcast %256 : f32 to vector<20x128xf32>
    %258 = arith.mulf %251, %257 : vector<20x128xf32>
    %259 = arith.addf %237, %258 : vector<20x128xf32>
    %c15_161 = arith.constant 15 : index
    %c7_162 = arith.constant 7 : index
    %260 = memref.load %arg1[%c15_161, %c7_162] : memref<21x13xf32, #tpu.memory_space<smem>>
    %261 = vector.broadcast %260 : f32 to vector<20x128xf32>
    %262 = arith.mulf %251, %261 : vector<20x128xf32>
    %263 = arith.addf %241, %262 : vector<20x128xf32>
    %c15_163 = arith.constant 15 : index
    %c8_164 = arith.constant 8 : index
    %264 = memref.load %arg1[%c15_163, %c8_164] : memref<21x13xf32, #tpu.memory_space<smem>>
    %265 = vector.broadcast %264 : f32 to vector<20x128xf32>
    %266 = arith.mulf %251, %265 : vector<20x128xf32>
    %267 = arith.addf %245, %266 : vector<20x128xf32>
    %c15_165 = arith.constant 15 : index
    %c9_166 = arith.constant 9 : index
    %268 = memref.load %arg1[%c15_165, %c9_166] : memref<21x13xf32, #tpu.memory_space<smem>>
    %269 = vector.broadcast %268 : f32 to vector<20x128xf32>
    %270 = arith.mulf %251, %269 : vector<20x128xf32>
    %271 = arith.addf %249, %270 : vector<20x128xf32>
    %c11_167 = arith.constant 11 : index
    %c0_168 = arith.constant 0 : index
    %c0_169 = arith.constant 0 : index
    %272 = vector.load %arg4[%c11_167, %c0_168, %c0_169] : memref<15x20x128xf32, #tpu.memory_space<vmem>>, vector<1x20x128xf32>
    %273 = vector.shape_cast %272 : vector<1x20x128xf32> to vector<20x128xf32>
    %c15_170 = arith.constant 15 : index
    %c10_171 = arith.constant 10 : index
    %274 = memref.load %arg1[%c15_170, %c10_171] : memref<21x13xf32, #tpu.memory_space<smem>>
    %275 = vector.broadcast %274 : f32 to vector<20x128xf32>
    %276 = arith.mulf %273, %275 : vector<20x128xf32>
    %277 = arith.addf %255, %276 : vector<20x128xf32>
    %c15_172 = arith.constant 15 : index
    %c11_173 = arith.constant 11 : index
    %278 = memref.load %arg1[%c15_172, %c11_173] : memref<21x13xf32, #tpu.memory_space<smem>>
    %279 = vector.broadcast %278 : f32 to vector<20x128xf32>
    %280 = arith.mulf %273, %279 : vector<20x128xf32>
    %281 = arith.addf %259, %280 : vector<20x128xf32>
    %c15_174 = arith.constant 15 : index
    %c12_175 = arith.constant 12 : index
    %282 = memref.load %arg1[%c15_174, %c12_175] : memref<21x13xf32, #tpu.memory_space<smem>>
    %283 = vector.broadcast %282 : f32 to vector<20x128xf32>
    %284 = arith.mulf %273, %283 : vector<20x128xf32>
    %285 = arith.addf %263, %284 : vector<20x128xf32>
    %c12_176 = arith.constant 12 : index
    %c0_177 = arith.constant 0 : index
    %c0_178 = arith.constant 0 : index
    %286 = vector.load %arg4[%c12_176, %c0_177, %c0_178] : memref<15x20x128xf32, #tpu.memory_space<vmem>>, vector<1x20x128xf32>
    %287 = vector.shape_cast %286 : vector<1x20x128xf32> to vector<20x128xf32>
    %c20 = arith.constant 20 : index
    %c0_179 = arith.constant 0 : index
    %288 = memref.load %arg1[%c20, %c0_179] : memref<21x13xf32, #tpu.memory_space<smem>>
    %289 = vector.broadcast %288 : f32 to vector<20x128xf32>
    %290 = arith.mulf %287, %289 : vector<20x128xf32>
    %291 = arith.addf %277, %290 : vector<20x128xf32>
    %c20_180 = arith.constant 20 : index
    %c1_181 = arith.constant 1 : index
    %292 = memref.load %arg1[%c20_180, %c1_181] : memref<21x13xf32, #tpu.memory_space<smem>>
    %293 = vector.broadcast %292 : f32 to vector<20x128xf32>
    %294 = arith.mulf %287, %293 : vector<20x128xf32>
    %295 = arith.addf %281, %294 : vector<20x128xf32>
    %c20_182 = arith.constant 20 : index
    %c2_183 = arith.constant 2 : index
    %296 = memref.load %arg1[%c20_182, %c2_183] : memref<21x13xf32, #tpu.memory_space<smem>>
    %297 = vector.broadcast %296 : f32 to vector<20x128xf32>
    %298 = arith.mulf %287, %297 : vector<20x128xf32>
    %299 = arith.addf %285, %298 : vector<20x128xf32>
    %c20_184 = arith.constant 20 : index
    %c3_185 = arith.constant 3 : index
    %300 = memref.load %arg1[%c20_184, %c3_185] : memref<21x13xf32, #tpu.memory_space<smem>>
    %301 = vector.broadcast %300 : f32 to vector<20x128xf32>
    %302 = arith.mulf %287, %301 : vector<20x128xf32>
    %303 = arith.addf %267, %302 : vector<20x128xf32>
    %c20_186 = arith.constant 20 : index
    %c4_187 = arith.constant 4 : index
    %304 = memref.load %arg1[%c20_186, %c4_187] : memref<21x13xf32, #tpu.memory_space<smem>>
    %305 = vector.broadcast %304 : f32 to vector<20x128xf32>
    %306 = arith.mulf %287, %305 : vector<20x128xf32>
    %307 = arith.addf %271, %306 : vector<20x128xf32>
    %c13_188 = arith.constant 13 : index
    %c0_189 = arith.constant 0 : index
    %c0_190 = arith.constant 0 : index
    %308 = vector.load %arg4[%c13_188, %c0_189, %c0_190] : memref<15x20x128xf32, #tpu.memory_space<vmem>>, vector<1x20x128xf32>
    %309 = vector.shape_cast %308 : vector<1x20x128xf32> to vector<20x128xf32>
    %c20_191 = arith.constant 20 : index
    %c5_192 = arith.constant 5 : index
    %310 = memref.load %arg1[%c20_191, %c5_192] : memref<21x13xf32, #tpu.memory_space<smem>>
    %311 = vector.broadcast %310 : f32 to vector<20x128xf32>
    %312 = arith.mulf %309, %311 : vector<20x128xf32>
    %313 = arith.addf %291, %312 : vector<20x128xf32>
    %c20_193 = arith.constant 20 : index
    %c6_194 = arith.constant 6 : index
    %314 = memref.load %arg1[%c20_193, %c6_194] : memref<21x13xf32, #tpu.memory_space<smem>>
    %315 = vector.broadcast %314 : f32 to vector<20x128xf32>
    %316 = arith.mulf %309, %315 : vector<20x128xf32>
    %317 = arith.addf %295, %316 : vector<20x128xf32>
    %c20_195 = arith.constant 20 : index
    %c7_196 = arith.constant 7 : index
    %318 = memref.load %arg1[%c20_195, %c7_196] : memref<21x13xf32, #tpu.memory_space<smem>>
    %319 = vector.broadcast %318 : f32 to vector<20x128xf32>
    %320 = arith.mulf %309, %319 : vector<20x128xf32>
    %321 = arith.addf %299, %320 : vector<20x128xf32>
    %c20_197 = arith.constant 20 : index
    %c8_198 = arith.constant 8 : index
    %322 = memref.load %arg1[%c20_197, %c8_198] : memref<21x13xf32, #tpu.memory_space<smem>>
    %323 = vector.broadcast %322 : f32 to vector<20x128xf32>
    %324 = arith.mulf %309, %323 : vector<20x128xf32>
    %325 = arith.addf %303, %324 : vector<20x128xf32>
    %c20_199 = arith.constant 20 : index
    %c9_200 = arith.constant 9 : index
    %326 = memref.load %arg1[%c20_199, %c9_200] : memref<21x13xf32, #tpu.memory_space<smem>>
    %327 = vector.broadcast %326 : f32 to vector<20x128xf32>
    %328 = arith.mulf %309, %327 : vector<20x128xf32>
    %329 = arith.addf %307, %328 : vector<20x128xf32>
    %c14_201 = arith.constant 14 : index
    %c0_202 = arith.constant 0 : index
    %c0_203 = arith.constant 0 : index
    %330 = vector.load %arg4[%c14_201, %c0_202, %c0_203] : memref<15x20x128xf32, #tpu.memory_space<vmem>>, vector<1x20x128xf32>
    %331 = vector.shape_cast %330 : vector<1x20x128xf32> to vector<20x128xf32>
    %c20_204 = arith.constant 20 : index
    %c10_205 = arith.constant 10 : index
    %332 = memref.load %arg1[%c20_204, %c10_205] : memref<21x13xf32, #tpu.memory_space<smem>>
    %333 = vector.broadcast %332 : f32 to vector<20x128xf32>
    %334 = arith.mulf %331, %333 : vector<20x128xf32>
    %335 = arith.addf %313, %334 : vector<20x128xf32>
    %c20_206 = arith.constant 20 : index
    %c11_207 = arith.constant 11 : index
    %336 = memref.load %arg1[%c20_206, %c11_207] : memref<21x13xf32, #tpu.memory_space<smem>>
    %337 = vector.broadcast %336 : f32 to vector<20x128xf32>
    %338 = arith.mulf %331, %337 : vector<20x128xf32>
    %339 = arith.addf %317, %338 : vector<20x128xf32>
    %c20_208 = arith.constant 20 : index
    %c12_209 = arith.constant 12 : index
    %340 = memref.load %arg1[%c20_208, %c12_209] : memref<21x13xf32, #tpu.memory_space<smem>>
    %341 = vector.broadcast %340 : f32 to vector<20x128xf32>
    %342 = arith.mulf %331, %341 : vector<20x128xf32>
    %343 = arith.addf %321, %342 : vector<20x128xf32>
    %344 = math.tanh %335 : vector<20x128xf32>
    %c0_210 = arith.constant 0 : index
    %c0_211 = arith.constant 0 : index
    %c0_212 = arith.constant 0 : index
    %345 = vector.load %arg3[%c0_210, %c0_211, %c0_212] : memref<25x20x128xf32, #tpu.memory_space<vmem>>, vector<1x20x128xf32>
    %346 = vector.shape_cast %345 : vector<1x20x128xf32> to vector<20x128xf32>
    %347 = vector.shape_cast %344 : vector<20x128xf32> to vector<1x20x128xf32>
    tpu.vector_store %arg3[%c0_210, %c0_211, %c0_212], %347 {strides = array<i32>} : memref<25x20x128xf32, #tpu.memory_space<vmem>>, vector<1x20x128xf32>,
    %348 = math.tanh %339 : vector<20x128xf32>
    %c1_213 = arith.constant 1 : index
    %c0_214 = arith.constant 0 : index
    %c0_215 = arith.constant 0 : index
    %349 = vector.load %arg3[%c1_213, %c0_214, %c0_215] : memref<25x20x128xf32, #tpu.memory_space<vmem>>, vector<1x20x128xf32>
    %350 = vector.shape_cast %349 : vector<1x20x128xf32> to vector<20x128xf32>
    %351 = vector.shape_cast %348 : vector<20x128xf32> to vector<1x20x128xf32>
    tpu.vector_store %arg3[%c1_213, %c0_214, %c0_215], %351 {strides = array<i32>} : memref<25x20x128xf32, #tpu.memory_space<vmem>>, vector<1x20x128xf32>,
    %352 = math.tanh %343 : vector<20x128xf32>
    %c2_216 = arith.constant 2 : index
    %c0_217 = arith.constant 0 : index
    %c0_218 = arith.constant 0 : index
    %353 = vector.load %arg3[%c2_216, %c0_217, %c0_218] : memref<25x20x128xf32, #tpu.memory_space<vmem>>, vector<1x20x128xf32>
    %354 = vector.shape_cast %353 : vector<1x20x128xf32> to vector<20x128xf32>
    %355 = vector.shape_cast %352 : vector<20x128xf32> to vector<1x20x128xf32>
    tpu.vector_store %arg3[%c2_216, %c0_217, %c0_218], %355 {strides = array<i32>} : memref<25x20x128xf32, #tpu.memory_space<vmem>>, vector<1x20x128xf32>,
    %356 = math.tanh %325 : vector<20x128xf32>
    %c3_219 = arith.constant 3 : index
    %c0_220 = arith.constant 0 : index
    %c0_221 = arith.constant 0 : index
    %357 = vector.load %arg3[%c3_219, %c0_220, %c0_221] : memref<25x20x128xf32, #tpu.memory_space<vmem>>, vector<1x20x128xf32>
    %358 = vector.shape_cast %357 : vector<1x20x128xf32> to vector<20x128xf32>
    %359 = vector.shape_cast %356 : vector<20x128xf32> to vector<1x20x128xf32>
    tpu.vector_store %arg3[%c3_219, %c0_220, %c0_221], %359 {strides = array<i32>} : memref<25x20x128xf32, #tpu.memory_space<vmem>>, vector<1x20x128xf32>,
    %360 = math.tanh %329 : vector<20x128xf32>
    %c4_222 = arith.constant 4 : index
    %c0_223 = arith.constant 0 : index
    %c0_224 = arith.constant 0 : index
    %361 = vector.load %arg3[%c4_222, %c0_223, %c0_224] : memref<25x20x128xf32, #tpu.memory_space<vmem>>, vector<1x20x128xf32>
    %362 = vector.shape_cast %361 : vector<1x20x128xf32> to vector<20x128xf32>
    %363 = vector.shape_cast %360 : vector<20x128xf32> to vector<1x20x128xf32>
    tpu.vector_store %arg3[%c4_222, %c0_223, %c0_224], %363 {strides = array<i32>} : memref<25x20x128xf32, #tpu.memory_space<vmem>>, vector<1x20x128xf32>,
    %364 = vector.broadcast %48 : f32 to vector<20x128xf32>
    %365 = vector.broadcast %48 : f32 to vector<20x128xf32>
    %366 = vector.broadcast %48 : f32 to vector<20x128xf32>
    %367 = vector.broadcast %48 : f32 to vector<20x128xf32>
    %368 = vector.broadcast %48 : f32 to vector<20x128xf32>
    %c0_225 = arith.constant 0 : index
    %c0_226 = arith.constant 0 : index
    %c0_227 = arith.constant 0 : index
    %369 = vector.load %arg4[%c0_225, %c0_226, %c0_227] : memref<15x20x128xf32, #tpu.memory_space<vmem>>, vector<1x20x128xf32>
    %370 = vector.shape_cast %369 : vector<1x20x128xf32> to vector<20x128xf32>
    %c1_228 = arith.constant 1 : index
    %c0_229 = arith.constant 0 : index
    %371 = memref.load %arg1[%c1_228, %c0_229] : memref<21x13xf32, #tpu.memory_space<smem>>
    %372 = vector.broadcast %371 : f32 to vector<20x128xf32>
    %373 = arith.mulf %370, %372 : vector<20x128xf32>
    %374 = arith.addf %364, %373 : vector<20x128xf32>
    %c1_230 = arith.constant 1 : index
    %c1_231 = arith.constant 1 : index
    %375 = memref.load %arg1[%c1_230, %c1_231] : memref<21x13xf32, #tpu.memory_space<smem>>
    %376 = vector.broadcast %375 : f32 to vector<20x128xf32>
    %377 = arith.mulf %370, %376 : vector<20x128xf32>
    %378 = arith.addf %365, %377 : vector<20x128xf32>
    %c1_232 = arith.constant 1 : index
    %c2_233 = arith.constant 2 : index
    %379 = memref.load %arg1[%c1_232, %c2_233] : memref<21x13xf32, #tpu.memory_space<smem>>
    %380 = vector.broadcast %379 : f32 to vector<20x128xf32>
    %381 = arith.mulf %370, %380 : vector<20x128xf32>
    %382 = arith.addf %366, %381 : vector<20x128xf32>
    %c1_234 = arith.constant 1 : index
    %c3_235 = arith.constant 3 : index
    %383 = memref.load %arg1[%c1_234, %c3_235] : memref<21x13xf32, #tpu.memory_space<smem>>
    %384 = vector.broadcast %383 : f32 to vector<20x128xf32>
    %385 = arith.mulf %370, %384 : vector<20x128xf32>
    %386 = arith.addf %367, %385 : vector<20x128xf32>
    %c1_236 = arith.constant 1 : index
    %c4_237 = arith.constant 4 : index
    %387 = memref.load %arg1[%c1_236, %c4_237] : memref<21x13xf32, #tpu.memory_space<smem>>
    %388 = vector.broadcast %387 : f32 to vector<20x128xf32>
    %389 = arith.mulf %370, %388 : vector<20x128xf32>
    %390 = arith.addf %368, %389 : vector<20x128xf32>
    %c1_238 = arith.constant 1 : index
    %c0_239 = arith.constant 0 : index
    %c0_240 = arith.constant 0 : index
    %391 = vector.load %arg4[%c1_238, %c0_239, %c0_240] : memref<15x20x128xf32, #tpu.memory_space<vmem>>, vector<1x20x128xf32>
    %392 = vector.shape_cast %391 : vector<1x20x128xf32> to vector<20x128xf32>
    %c1_241 = arith.constant 1 : index
    %c5_242 = arith.constant 5 : index
    %393 = memref.load %arg1[%c1_241, %c5_242] : memref<21x13xf32, #tpu.memory_space<smem>>
    %394 = vector.broadcast %393 : f32 to vector<20x128xf32>
    %395 = arith.mulf %392, %394 : vector<20x128xf32>
    %396 = arith.addf %374, %395 : vector<20x128xf32>
    %c1_243 = arith.constant 1 : index
    %c6_244 = arith.constant 6 : index
    %397 = memref.load %arg1[%c1_243, %c6_244] : memref<21x13xf32, #tpu.memory_space<smem>>
    %398 = vector.broadcast %397 : f32 to vector<20x128xf32>
    %399 = arith.mulf %392, %398 : vector<20x128xf32>
    %400 = arith.addf %378, %399 : vector<20x128xf32>
    %c1_245 = arith.constant 1 : index
    %c7_246 = arith.constant 7 : index
    %401 = memref.load %arg1[%c1_245, %c7_246] : memref<21x13xf32, #tpu.memory_space<smem>>
    %402 = vector.broadcast %401 : f32 to vector<20x128xf32>
    %403 = arith.mulf %392, %402 : vector<20x128xf32>
    %404 = arith.addf %382, %403 : vector<20x128xf32>
    %c1_247 = arith.constant 1 : index
    %c8_248 = arith.constant 8 : index
    %405 = memref.load %arg1[%c1_247, %c8_248] : memref<21x13xf32, #tpu.memory_space<smem>>
    %406 = vector.broadcast %405 : f32 to vector<20x128xf32>
    %407 = arith.mulf %392, %406 : vector<20x128xf32>
    %408 = arith.addf %386, %407 : vector<20x128xf32>
    %c1_249 = arith.constant 1 : index
    %c9_250 = arith.constant 9 : index
    %409 = memref.load %arg1[%c1_249, %c9_250] : memref<21x13xf32, #tpu.memory_space<smem>>
    %410 = vector.broadcast %409 : f32 to vector<20x128xf32>
    %411 = arith.mulf %392, %410 : vector<20x128xf32>
    %412 = arith.addf %390, %411 : vector<20x128xf32>
    %c2_251 = arith.constant 2 : index
    %c0_252 = arith.constant 0 : index
    %c0_253 = arith.constant 0 : index
    %413 = vector.load %arg4[%c2_251, %c0_252, %c0_253] : memref<15x20x128xf32, #tpu.memory_space<vmem>>, vector<1x20x128xf32>
    %414 = vector.shape_cast %413 : vector<1x20x128xf32> to vector<20x128xf32>
    %c1_254 = arith.constant 1 : index
    %c10_255 = arith.constant 10 : index
    %415 = memref.load %arg1[%c1_254, %c10_255] : memref<21x13xf32, #tpu.memory_space<smem>>
    %416 = vector.broadcast %415 : f32 to vector<20x128xf32>
    %417 = arith.mulf %414, %416 : vector<20x128xf32>
    %418 = arith.addf %396, %417 : vector<20x128xf32>
    %c1_256 = arith.constant 1 : index
    %c11_257 = arith.constant 11 : index
    %419 = memref.load %arg1[%c1_256, %c11_257] : memref<21x13xf32, #tpu.memory_space<smem>>
    %420 = vector.broadcast %419 : f32 to vector<20x128xf32>
    %421 = arith.mulf %414, %420 : vector<20x128xf32>
    %422 = arith.addf %400, %421 : vector<20x128xf32>
    %c1_258 = arith.constant 1 : index
    %c12_259 = arith.constant 12 : index
    %423 = memref.load %arg1[%c1_258, %c12_259] : memref<21x13xf32, #tpu.memory_space<smem>>
    %424 = vector.broadcast %423 : f32 to vector<20x128xf32>
    %425 = arith.mulf %414, %424 : vector<20x128xf32>
    %426 = arith.addf %404, %425 : vector<20x128xf32>
    %c3_260 = arith.constant 3 : index
    %c0_261 = arith.constant 0 : index
    %c0_262 = arith.constant 0 : index
    %427 = vector.load %arg4[%c3_260, %c0_261, %c0_262] : memref<15x20x128xf32, #tpu.memory_space<vmem>>, vector<1x20x128xf32>
    %428 = vector.shape_cast %427 : vector<1x20x128xf32> to vector<20x128xf32>
    %c6_263 = arith.constant 6 : index
    %c0_264 = arith.constant 0 : index
    %429 = memref.load %arg1[%c6_263, %c0_264] : memref<21x13xf32, #tpu.memory_space<smem>>
    %430 = vector.broadcast %429 : f32 to vector<20x128xf32>
    %431 = arith.mulf %428, %430 : vector<20x128xf32>
    %432 = arith.addf %418, %431 : vector<20x128xf32>
    %c6_265 = arith.constant 6 : index
    %c1_266 = arith.constant 1 : index
    %433 = memref.load %arg1[%c6_265, %c1_266] : memref<21x13xf32, #tpu.memory_space<smem>>
    %434 = vector.broadcast %433 : f32 to vector<20x128xf32>
    %435 = arith.mulf %428, %434 : vector<20x128xf32>
    %436 = arith.addf %422, %435 : vector<20x128xf32>
    %c6_267 = arith.constant 6 : index
    %c2_268 = arith.constant 2 : index
    %437 = memref.load %arg1[%c6_267, %c2_268] : memref<21x13xf32, #tpu.memory_space<smem>>
    %438 = vector.broadcast %437 : f32 to vector<20x128xf32>
    %439 = arith.mulf %428, %438 : vector<20x128xf32>
    %440 = arith.addf %426, %439 : vector<20x128xf32>
    %c6_269 = arith.constant 6 : index
    %c3_270 = arith.constant 3 : index
    %441 = memref.load %arg1[%c6_269, %c3_270] : memref<21x13xf32, #tpu.memory_space<smem>>
    %442 = vector.broadcast %441 : f32 to vector<20x128xf32>
    %443 = arith.mulf %428, %442 : vector<20x128xf32>
    %444 = arith.addf %408, %443 : vector<20x128xf32>
    %c6_271 = arith.constant 6 : index
    %c4_272 = arith.constant 4 : index
    %445 = memref.load %arg1[%c6_271, %c4_272] : memref<21x13xf32, #tpu.memory_space<smem>>
    %446 = vector.broadcast %445 : f32 to vector<20x128xf32>
    %447 = arith.mulf %428, %446 : vector<20x128xf32>
    %448 = arith.addf %412, %447 : vector<20x128xf32>
    %c4_273 = arith.constant 4 : index
    %c0_274 = arith.constant 0 : index
    %c0_275 = arith.constant 0 : index
    %449 = vector.load %arg4[%c4_273, %c0_274, %c0_275] : memref<15x20x128xf32, #tpu.memory_space<vmem>>, vector<1x20x128xf32>
    %450 = vector.shape_cast %449 : vector<1x20x128xf32> to vector<20x128xf32>
    %c6_276 = arith.constant 6 : index
    %c5_277 = arith.constant 5 : index
    %451 = memref.load %arg1[%c6_276, %c5_277] : memref<21x13xf32, #tpu.memory_space<smem>>
    %452 = vector.broadcast %451 : f32 to vector<20x128xf32>
    %453 = arith.mulf %450, %452 : vector<20x128xf32>
    %454 = arith.addf %432, %453 : vector<20x128xf32>
    %c6_278 = arith.constant 6 : index
    %c6_279 = arith.constant 6 : index
    %455 = memref.load %arg1[%c6_278, %c6_279] : memref<21x13xf32, #tpu.memory_space<smem>>
    %456 = vector.broadcast %455 : f32 to vector<20x128xf32>
    %457 = arith.mulf %450, %456 : vector<20x128xf32>
    %458 = arith.addf %436, %457 : vector<20x128xf32>
    %c6_280 = arith.constant 6 : index
    %c7_281 = arith.constant 7 : index
    %459 = memref.load %arg1[%c6_280, %c7_281] : memref<21x13xf32, #tpu.memory_space<smem>>
    %460 = vector.broadcast %459 : f32 to vector<20x128xf32>
    %461 = arith.mulf %450, %460 : vector<20x128xf32>
    %462 = arith.addf %440, %461 : vector<20x128xf32>
    %c6_282 = arith.constant 6 : index
    %c8_283 = arith.constant 8 : index
    %463 = memref.load %arg1[%c6_282, %c8_283] : memref<21x13xf32, #tpu.memory_space<smem>>
    %464 = vector.broadcast %463 : f32 to vector<20x128xf32>
    %465 = arith.mulf %450, %464 : vector<20x128xf32>
    %466 = arith.addf %444, %465 : vector<20x128xf32>
    %c6_284 = arith.constant 6 : index
    %c9_285 = arith.constant 9 : index
    %467 = memref.load %arg1[%c6_284, %c9_285] : memref<21x13xf32, #tpu.memory_space<smem>>
    %468 = vector.broadcast %467 : f32 to vector<20x128xf32>
    %469 = arith.mulf %450, %468 : vector<20x128xf32>
    %470 = arith.addf %448, %469 : vector<20x128xf32>
    %c5_286 = arith.constant 5 : index
    %c0_287 = arith.constant 0 : index
    %c0_288 = arith.constant 0 : index
    %471 = vector.load %arg4[%c5_286, %c0_287, %c0_288] : memref<15x20x128xf32, #tpu.memory_space<vmem>>, vector<1x20x128xf32>
    %472 = vector.shape_cast %471 : vector<1x20x128xf32> to vector<20x128xf32>
    %c6_289 = arith.constant 6 : index
    %c10_290 = arith.constant 10 : index
    %473 = memref.load %arg1[%c6_289, %c10_290] : memref<21x13xf32, #tpu.memory_space<smem>>
    %474 = vector.broadcast %473 : f32 to vector<20x128xf32>
    %475 = arith.mulf %472, %474 : vector<20x128xf32>
    %476 = arith.addf %454, %475 : vector<20x128xf32>
    %c6_291 = arith.constant 6 : index
    %c11_292 = arith.constant 11 : index
    %477 = memref.load %arg1[%c6_291, %c11_292] : memref<21x13xf32, #tpu.memory_space<smem>>
    %478 = vector.broadcast %477 : f32 to vector<20x128xf32>
    %479 = arith.mulf %472, %478 : vector<20x128xf32>
    %480 = arith.addf %458, %479 : vector<20x128xf32>
    %c6_293 = arith.constant 6 : index
    %c12_294 = arith.constant 12 : index
    %481 = memref.load %arg1[%c6_293, %c12_294] : memref<21x13xf32, #tpu.memory_space<smem>>
    %482 = vector.broadcast %481 : f32 to vector<20x128xf32>
    %483 = arith.mulf %472, %482 : vector<20x128xf32>
    %484 = arith.addf %462, %483 : vector<20x128xf32>
    %c6_295 = arith.constant 6 : index
    %c0_296 = arith.constant 0 : index
    %c0_297 = arith.constant 0 : index
    %485 = vector.load %arg4[%c6_295, %c0_296, %c0_297] : memref<15x20x128xf32, #tpu.memory_space<vmem>>, vector<1x20x128xf32>
    %486 = vector.shape_cast %485 : vector<1x20x128xf32> to vector<20x128xf32>
    %c11_298 = arith.constant 11 : index
    %c0_299 = arith.constant 0 : index
    %487 = memref.load %arg1[%c11_298, %c0_299] : memref<21x13xf32, #tpu.memory_space<smem>>
    %488 = vector.broadcast %487 : f32 to vector<20x128xf32>
    %489 = arith.mulf %486, %488 : vector<20x128xf32>
    %490 = arith.addf %476, %489 : vector<20x128xf32>
    %c11_300 = arith.constant 11 : index
    %c1_301 = arith.constant 1 : index
    %491 = memref.load %arg1[%c11_300, %c1_301] : memref<21x13xf32, #tpu.memory_space<smem>>
    %492 = vector.broadcast %491 : f32 to vector<20x128xf32>
    %493 = arith.mulf %486, %492 : vector<20x128xf32>
    %494 = arith.addf %480, %493 : vector<20x128xf32>
    %c11_302 = arith.constant 11 : index
    %c2_303 = arith.constant 2 : index
    %495 = memref.load %arg1[%c11_302, %c2_303] : memref<21x13xf32, #tpu.memory_space<smem>>
    %496 = vector.broadcast %495 : f32 to vector<20x128xf32>
    %497 = arith.mulf %486, %496 : vector<20x128xf32>
    %498 = arith.addf %484, %497 : vector<20x128xf32>
    %c11_304 = arith.constant 11 : index
    %c3_305 = arith.constant 3 : index
    %499 = memref.load %arg1[%c11_304, %c3_305] : memref<21x13xf32, #tpu.memory_space<smem>>
    %500 = vector.broadcast %499 : f32 to vector<20x128xf32>
    %501 = arith.mulf %486, %500 : vector<20x128xf32>
    %502 = arith.addf %466, %501 : vector<20x128xf32>
    %c11_306 = arith.constant 11 : index
    %c4_307 = arith.constant 4 : index
    %503 = memref.load %arg1[%c11_306, %c4_307] : memref<21x13xf32, #tpu.memory_space<smem>>
    %504 = vector.broadcast %503 : f32 to vector<20x128xf32>
    %505 = arith.mulf %486, %504 : vector<20x128xf32>
    %506 = arith.addf %470, %505 : vector<20x128xf32>
    %c7_308 = arith.constant 7 : index
    %c0_309 = arith.constant 0 : index
    %c0_310 = arith.constant 0 : index
    %507 = vector.load %arg4[%c7_308, %c0_309, %c0_310] : memref<15x20x128xf32, #tpu.memory_space<vmem>>, vector<1x20x128xf32>
    %508 = vector.shape_cast %507 : vector<1x20x128xf32> to vector<20x128xf32>
    %c11_311 = arith.constant 11 : index
    %c5_312 = arith.constant 5 : index
    %509 = memref.load %arg1[%c11_311, %c5_312] : memref<21x13xf32, #tpu.memory_space<smem>>
    %510 = vector.broadcast %509 : f32 to vector<20x128xf32>
    %511 = arith.mulf %508, %510 : vector<20x128xf32>
    %512 = arith.addf %490, %511 : vector<20x128xf32>
    %c11_313 = arith.constant 11 : index
    %c6_314 = arith.constant 6 : index
    %513 = memref.load %arg1[%c11_313, %c6_314] : memref<21x13xf32, #tpu.memory_space<smem>>
    %514 = vector.broadcast %513 : f32 to vector<20x128xf32>
    %515 = arith.mulf %508, %514 : vector<20x128xf32>
    %516 = arith.addf %494, %515 : vector<20x128xf32>
    %c11_315 = arith.constant 11 : index
    %c7_316 = arith.constant 7 : index
    %517 = memref.load %arg1[%c11_315, %c7_316] : memref<21x13xf32, #tpu.memory_space<smem>>
    %518 = vector.broadcast %517 : f32 to vector<20x128xf32>
    %519 = arith.mulf %508, %518 : vector<20x128xf32>
    %520 = arith.addf %498, %519 : vector<20x128xf32>
    %c11_317 = arith.constant 11 : index
    %c8_318 = arith.constant 8 : index
    %521 = memref.load %arg1[%c11_317, %c8_318] : memref<21x13xf32, #tpu.memory_space<smem>>
    %522 = vector.broadcast %521 : f32 to vector<20x128xf32>
    %523 = arith.mulf %508, %522 : vector<20x128xf32>
    %524 = arith.addf %502, %523 : vector<20x128xf32>
    %c11_319 = arith.constant 11 : index
    %c9_320 = arith.constant 9 : index
    %525 = memref.load %arg1[%c11_319, %c9_320] : memref<21x13xf32, #tpu.memory_space<smem>>
    %526 = vector.broadcast %525 : f32 to vector<20x128xf32>
    %527 = arith.mulf %508, %526 : vector<20x128xf32>
    %528 = arith.addf %506, %527 : vector<20x128xf32>
    %c8_321 = arith.constant 8 : index
    %c0_322 = arith.constant 0 : index
    %c0_323 = arith.constant 0 : index
    %529 = vector.load %arg4[%c8_321, %c0_322, %c0_323] : memref<15x20x128xf32, #tpu.memory_space<vmem>>, vector<1x20x128xf32>
    %530 = vector.shape_cast %529 : vector<1x20x128xf32> to vector<20x128xf32>
    %c11_324 = arith.constant 11 : index
    %c10_325 = arith.constant 10 : index
    %531 = memref.load %arg1[%c11_324, %c10_325] : memref<21x13xf32, #tpu.memory_space<smem>>
    %532 = vector.broadcast %531 : f32 to vector<20x128xf32>
    %533 = arith.mulf %530, %532 : vector<20x128xf32>
    %534 = arith.addf %512, %533 : vector<20x128xf32>
    %c11_326 = arith.constant 11 : index
    %c11_327 = arith.constant 11 : index
    %535 = memref.load %arg1[%c11_326, %c11_327] : memref<21x13xf32, #tpu.memory_space<smem>>
    %536 = vector.broadcast %535 : f32 to vector<20x128xf32>
    %537 = arith.mulf %530, %536 : vector<20x128xf32>
    %538 = arith.addf %516, %537 : vector<20x128xf32>
    %c11_328 = arith.constant 11 : index
    %c12_329 = arith.constant 12 : index
    %539 = memref.load %arg1[%c11_328, %c12_329] : memref<21x13xf32, #tpu.memory_space<smem>>
    %540 = vector.broadcast %539 : f32 to vector<20x128xf32>
    %541 = arith.mulf %530, %540 : vector<20x128xf32>
    %542 = arith.addf %520, %541 : vector<20x128xf32>
    %c9_330 = arith.constant 9 : index
    %c0_331 = arith.constant 0 : index
    %c0_332 = arith.constant 0 : index
    %543 = vector.load %arg4[%c9_330, %c0_331, %c0_332] : memref<15x20x128xf32, #tpu.memory_space<vmem>>, vector<1x20x128xf32>
    %544 = vector.shape_cast %543 : vector<1x20x128xf32> to vector<20x128xf32>
    %c16 = arith.constant 16 : index
    %c0_333 = arith.constant 0 : index
    %545 = memref.load %arg1[%c16, %c0_333] : memref<21x13xf32, #tpu.memory_space<smem>>
    %546 = vector.broadcast %545 : f32 to vector<20x128xf32>
    %547 = arith.mulf %544, %546 : vector<20x128xf32>
    %548 = arith.addf %534, %547 : vector<20x128xf32>
    %c16_334 = arith.constant 16 : index
    %c1_335 = arith.constant 1 : index
    %549 = memref.load %arg1[%c16_334, %c1_335] : memref<21x13xf32, #tpu.memory_space<smem>>
    %550 = vector.broadcast %549 : f32 to vector<20x128xf32>
    %551 = arith.mulf %544, %550 : vector<20x128xf32>
    %552 = arith.addf %538, %551 : vector<20x128xf32>
    %c16_336 = arith.constant 16 : index
    %c2_337 = arith.constant 2 : index
    %553 = memref.load %arg1[%c16_336, %c2_337] : memref<21x13xf32, #tpu.memory_space<smem>>
    %554 = vector.broadcast %553 : f32 to vector<20x128xf32>
    %555 = arith.mulf %544, %554 : vector<20x128xf32>
    %556 = arith.addf %542, %555 : vector<20x128xf32>
    %c16_338 = arith.constant 16 : index
    %c3_339 = arith.constant 3 : index
    %557 = memref.load %arg1[%c16_338, %c3_339] : memref<21x13xf32, #tpu.memory_space<smem>>
    %558 = vector.broadcast %557 : f32 to vector<20x128xf32>
    %559 = arith.mulf %544, %558 : vector<20x128xf32>
    %560 = arith.addf %524, %559 : vector<20x128xf32>
    %c16_340 = arith.constant 16 : index
    %c4_341 = arith.constant 4 : index
    %561 = memref.load %arg1[%c16_340, %c4_341] : memref<21x13xf32, #tpu.memory_space<smem>>
    %562 = vector.broadcast %561 : f32 to vector<20x128xf32>
    %563 = arith.mulf %544, %562 : vector<20x128xf32>
    %564 = arith.addf %528, %563 : vector<20x128xf32>
    %c10_342 = arith.constant 10 : index
    %c0_343 = arith.constant 0 : index
    %c0_344 = arith.constant 0 : index
    %565 = vector.load %arg4[%c10_342, %c0_343, %c0_344] : memref<15x20x128xf32, #tpu.memory_space<vmem>>, vector<1x20x128xf32>
    %566 = vector.shape_cast %565 : vector<1x20x128xf32> to vector<20x128xf32>
    %c16_345 = arith.constant 16 : index
    %c5_346 = arith.constant 5 : index
    %567 = memref.load %arg1[%c16_345, %c5_346] : memref<21x13xf32, #tpu.memory_space<smem>>
    %568 = vector.broadcast %567 : f32 to vector<20x128xf32>
    %569 = arith.mulf %566, %568 : vector<20x128xf32>
    %570 = arith.addf %548, %569 : vector<20x128xf32>
    %c16_347 = arith.constant 16 : index
    %c6_348 = arith.constant 6 : index
    %571 = memref.load %arg1[%c16_347, %c6_348] : memref<21x13xf32, #tpu.memory_space<smem>>
    %572 = vector.broadcast %571 : f32 to vector<20x128xf32>
    %573 = arith.mulf %566, %572 : vector<20x128xf32>
    %574 = arith.addf %552, %573 : vector<20x128xf32>
    %c16_349 = arith.constant 16 : index
    %c7_350 = arith.constant 7 : index
    %575 = memref.load %arg1[%c16_349, %c7_350] : memref<21x13xf32, #tpu.memory_space<smem>>
    %576 = vector.broadcast %575 : f32 to vector<20x128xf32>
    %577 = arith.mulf %566, %576 : vector<20x128xf32>
    %578 = arith.addf %556, %577 : vector<20x128xf32>
    %c16_351 = arith.constant 16 : index
    %c8_352 = arith.constant 8 : index
    %579 = memref.load %arg1[%c16_351, %c8_352] : memref<21x13xf32, #tpu.memory_space<smem>>
    %580 = vector.broadcast %579 : f32 to vector<20x128xf32>
    %581 = arith.mulf %566, %580 : vector<20x128xf32>
    %582 = arith.addf %560, %581 : vector<20x128xf32>
    %c16_353 = arith.constant 16 : index
    %c9_354 = arith.constant 9 : index
    %583 = memref.load %arg1[%c16_353, %c9_354] : memref<21x13xf32, #tpu.memory_space<smem>>
    %584 = vector.broadcast %583 : f32 to vector<20x128xf32>
    %585 = arith.mulf %566, %584 : vector<20x128xf32>
    %586 = arith.addf %564, %585 : vector<20x128xf32>
    %c11_355 = arith.constant 11 : index
    %c0_356 = arith.constant 0 : index
    %c0_357 = arith.constant 0 : index
    %587 = vector.load %arg4[%c11_355, %c0_356, %c0_357] : memref<15x20x128xf32, #tpu.memory_space<vmem>>, vector<1x20x128xf32>
    %588 = vector.shape_cast %587 : vector<1x20x128xf32> to vector<20x128xf32>
    %c16_358 = arith.constant 16 : index
    %c10_359 = arith.constant 10 : index
    %589 = memref.load %arg1[%c16_358, %c10_359] : memref<21x13xf32, #tpu.memory_space<smem>>
    %590 = vector.broadcast %589 : f32 to vector<20x128xf32>
    %591 = arith.mulf %588, %590 : vector<20x128xf32>
    %592 = arith.addf %570, %591 : vector<20x128xf32>
    %c16_360 = arith.constant 16 : index
    %c11_361 = arith.constant 11 : index
    %593 = memref.load %arg1[%c16_360, %c11_361] : memref<21x13xf32, #tpu.memory_space<smem>>
    %594 = vector.broadcast %593 : f32 to vector<20x128xf32>
    %595 = arith.mulf %588, %594 : vector<20x128xf32>
    %596 = arith.addf %574, %595 : vector<20x128xf32>
    %c16_362 = arith.constant 16 : index
    %c12_363 = arith.constant 12 : index
    %597 = memref.load %arg1[%c16_362, %c12_363] : memref<21x13xf32, #tpu.memory_space<smem>>
    %598 = vector.broadcast %597 : f32 to vector<20x128xf32>
    %599 = arith.mulf %588, %598 : vector<20x128xf32>
    %600 = arith.addf %578, %599 : vector<20x128xf32>
    %601 = math.tanh %592 : vector<20x128xf32>
    %c5_364 = arith.constant 5 : index
    %c0_365 = arith.constant 0 : index
    %c0_366 = arith.constant 0 : index
    %602 = vector.load %arg3[%c5_364, %c0_365, %c0_366] : memref<25x20x128xf32, #tpu.memory_space<vmem>>, vector<1x20x128xf32>
    %603 = vector.shape_cast %602 : vector<1x20x128xf32> to vector<20x128xf32>
    %604 = vector.shape_cast %601 : vector<20x128xf32> to vector<1x20x128xf32>
    tpu.vector_store %arg3[%c5_364, %c0_365, %c0_366], %604 {strides = array<i32>} : memref<25x20x128xf32, #tpu.memory_space<vmem>>, vector<1x20x128xf32>,
    %605 = math.tanh %596 : vector<20x128xf32>
    %c6_367 = arith.constant 6 : index
    %c0_368 = arith.constant 0 : index
    %c0_369 = arith.constant 0 : index
    %606 = vector.load %arg3[%c6_367, %c0_368, %c0_369] : memref<25x20x128xf32, #tpu.memory_space<vmem>>, vector<1x20x128xf32>
    %607 = vector.shape_cast %606 : vector<1x20x128xf32> to vector<20x128xf32>
    %608 = vector.shape_cast %605 : vector<20x128xf32> to vector<1x20x128xf32>
    tpu.vector_store %arg3[%c6_367, %c0_368, %c0_369], %608 {strides = array<i32>} : memref<25x20x128xf32, #tpu.memory_space<vmem>>, vector<1x20x128xf32>,
    %609 = math.tanh %600 : vector<20x128xf32>
    %c7_370 = arith.constant 7 : index
    %c0_371 = arith.constant 0 : index
    %c0_372 = arith.constant 0 : index
    %610 = vector.load %arg3[%c7_370, %c0_371, %c0_372] : memref<25x20x128xf32, #tpu.memory_space<vmem>>, vector<1x20x128xf32>
    %611 = vector.shape_cast %610 : vector<1x20x128xf32> to vector<20x128xf32>
    %612 = vector.shape_cast %609 : vector<20x128xf32> to vector<1x20x128xf32>
    tpu.vector_store %arg3[%c7_370, %c0_371, %c0_372], %612 {strides = array<i32>} : memref<25x20x128xf32, #tpu.memory_space<vmem>>, vector<1x20x128xf32>,
    %613 = math.tanh %582 : vector<20x128xf32>
    %c8_373 = arith.constant 8 : index
    %c0_374 = arith.constant 0 : index
    %c0_375 = arith.constant 0 : index
    %614 = vector.load %arg3[%c8_373, %c0_374, %c0_375] : memref<25x20x128xf32, #tpu.memory_space<vmem>>, vector<1x20x128xf32>
    %615 = vector.shape_cast %614 : vector<1x20x128xf32> to vector<20x128xf32>
    %616 = vector.shape_cast %613 : vector<20x128xf32> to vector<1x20x128xf32>
    tpu.vector_store %arg3[%c8_373, %c0_374, %c0_375], %616 {strides = array<i32>} : memref<25x20x128xf32, #tpu.memory_space<vmem>>, vector<1x20x128xf32>,
    %617 = math.tanh %586 : vector<20x128xf32>
    %c9_376 = arith.constant 9 : index
    %c0_377 = arith.constant 0 : index
    %c0_378 = arith.constant 0 : index
    %618 = vector.load %arg3[%c9_376, %c0_377, %c0_378] : memref<25x20x128xf32, #tpu.memory_space<vmem>>, vector<1x20x128xf32>
    %619 = vector.shape_cast %618 : vector<1x20x128xf32> to vector<20x128xf32>
    %620 = vector.shape_cast %617 : vector<20x128xf32> to vector<1x20x128xf32>
    tpu.vector_store %arg3[%c9_376, %c0_377, %c0_378], %620 {strides = array<i32>} : memref<25x20x128xf32, #tpu.memory_space<vmem>>, vector<1x20x128xf32>,
    %621 = vector.broadcast %48 : f32 to vector<20x128xf32>
    %622 = vector.broadcast %48 : f32 to vector<20x128xf32>
    %623 = vector.broadcast %48 : f32 to vector<20x128xf32>
    %624 = vector.broadcast %48 : f32 to vector<20x128xf32>
    %625 = vector.broadcast %48 : f32 to vector<20x128xf32>
    %c0_379 = arith.constant 0 : index
    %c0_380 = arith.constant 0 : index
    %c0_381 = arith.constant 0 : index
    %626 = vector.load %arg4[%c0_379, %c0_380, %c0_381] : memref<15x20x128xf32, #tpu.memory_space<vmem>>, vector<1x20x128xf32>
    %627 = vector.shape_cast %626 : vector<1x20x128xf32> to vector<20x128xf32>
    %c2_382 = arith.constant 2 : index
    %c0_383 = arith.constant 0 : index
    %628 = memref.load %arg1[%c2_382, %c0_383] : memref<21x13xf32, #tpu.memory_space<smem>>
    %629 = vector.broadcast %628 : f32 to vector<20x128xf32>
    %630 = arith.mulf %627, %629 : vector<20x128xf32>
    %631 = arith.addf %621, %630 : vector<20x128xf32>
    %c2_384 = arith.constant 2 : index
    %c1_385 = arith.constant 1 : index
    %632 = memref.load %arg1[%c2_384, %c1_385] : memref<21x13xf32, #tpu.memory_space<smem>>
    %633 = vector.broadcast %632 : f32 to vector<20x128xf32>
    %634 = arith.mulf %627, %633 : vector<20x128xf32>
    %635 = arith.addf %622, %634 : vector<20x128xf32>
    %c2_386 = arith.constant 2 : index
    %c2_387 = arith.constant 2 : index
    %636 = memref.load %arg1[%c2_386, %c2_387] : memref<21x13xf32, #tpu.memory_space<smem>>
    %637 = vector.broadcast %636 : f32 to vector<20x128xf32>
    %638 = arith.mulf %627, %637 : vector<20x128xf32>
    %639 = arith.addf %623, %638 : vector<20x128xf32>
    %c2_388 = arith.constant 2 : index
    %c3_389 = arith.constant 3 : index
    %640 = memref.load %arg1[%c2_388, %c3_389] : memref<21x13xf32, #tpu.memory_space<smem>>
    %641 = vector.broadcast %640 : f32 to vector<20x128xf32>
    %642 = arith.mulf %627, %641 : vector<20x128xf32>
    %643 = arith.addf %624, %642 : vector<20x128xf32>
    %c2_390 = arith.constant 2 : index
    %c4_391 = arith.constant 4 : index
    %644 = memref.load %arg1[%c2_390, %c4_391] : memref<21x13xf32, #tpu.memory_space<smem>>
    %645 = vector.broadcast %644 : f32 to vector<20x128xf32>
    %646 = arith.mulf %627, %645 : vector<20x128xf32>
    %647 = arith.addf %625, %646 : vector<20x128xf32>
    %c1_392 = arith.constant 1 : index
    %c0_393 = arith.constant 0 : index
    %c0_394 = arith.constant 0 : index
    %648 = vector.load %arg4[%c1_392, %c0_393, %c0_394] : memref<15x20x128xf32, #tpu.memory_space<vmem>>, vector<1x20x128xf32>
    %649 = vector.shape_cast %648 : vector<1x20x128xf32> to vector<20x128xf32>
    %c2_395 = arith.constant 2 : index
    %c5_396 = arith.constant 5 : index
    %650 = memref.load %arg1[%c2_395, %c5_396] : memref<21x13xf32, #tpu.memory_space<smem>>
    %651 = vector.broadcast %650 : f32 to vector<20x128xf32>
    %652 = arith.mulf %649, %651 : vector<20x128xf32>
    %653 = arith.addf %631, %652 : vector<20x128xf32>
    %c2_397 = arith.constant 2 : index
    %c6_398 = arith.constant 6 : index
    %654 = memref.load %arg1[%c2_397, %c6_398] : memref<21x13xf32, #tpu.memory_space<smem>>
    %655 = vector.broadcast %654 : f32 to vector<20x128xf32>
    %656 = arith.mulf %649, %655 : vector<20x128xf32>
    %657 = arith.addf %635, %656 : vector<20x128xf32>
    %c2_399 = arith.constant 2 : index
    %c7_400 = arith.constant 7 : index
    %658 = memref.load %arg1[%c2_399, %c7_400] : memref<21x13xf32, #tpu.memory_space<smem>>
    %659 = vector.broadcast %658 : f32 to vector<20x128xf32>
    %660 = arith.mulf %649, %659 : vector<20x128xf32>
    %661 = arith.addf %639, %660 : vector<20x128xf32>
    %c2_401 = arith.constant 2 : index
    %c8_402 = arith.constant 8 : index
    %662 = memref.load %arg1[%c2_401, %c8_402] : memref<21x13xf32, #tpu.memory_space<smem>>
    %663 = vector.broadcast %662 : f32 to vector<20x128xf32>
    %664 = arith.mulf %649, %663 : vector<20x128xf32>
    %665 = arith.addf %643, %664 : vector<20x128xf32>
    %c2_403 = arith.constant 2 : index
    %c9_404 = arith.constant 9 : index
    %666 = memref.load %arg1[%c2_403, %c9_404] : memref<21x13xf32, #tpu.memory_space<smem>>
    %667 = vector.broadcast %666 : f32 to vector<20x128xf32>
    %668 = arith.mulf %649, %667 : vector<20x128xf32>
    %669 = arith.addf %647, %668 : vector<20x128xf32>
    %c2_405 = arith.constant 2 : index
    %c0_406 = arith.constant 0 : index
    %c0_407 = arith.constant 0 : index
    %670 = vector.load %arg4[%c2_405, %c0_406, %c0_407] : memref<15x20x128xf32, #tpu.memory_space<vmem>>, vector<1x20x128xf32>
    %671 = vector.shape_cast %670 : vector<1x20x128xf32> to vector<20x128xf32>
    %c2_408 = arith.constant 2 : index
    %c10_409 = arith.constant 10 : index
    %672 = memref.load %arg1[%c2_408, %c10_409] : memref<21x13xf32, #tpu.memory_space<smem>>
    %673 = vector.broadcast %672 : f32 to vector<20x128xf32>
    %674 = arith.mulf %671, %673 : vector<20x128xf32>
    %675 = arith.addf %653, %674 : vector<20x128xf32>
    %c2_410 = arith.constant 2 : index
    %c11_411 = arith.constant 11 : index
    %676 = memref.load %arg1[%c2_410, %c11_411] : memref<21x13xf32, #tpu.memory_space<smem>>
    %677 = vector.broadcast %676 : f32 to vector<20x128xf32>
    %678 = arith.mulf %671, %677 : vector<20x128xf32>
    %679 = arith.addf %657, %678 : vector<20x128xf32>
    %c2_412 = arith.constant 2 : index
    %c12_413 = arith.constant 12 : index
    %680 = memref.load %arg1[%c2_412, %c12_413] : memref<21x13xf32, #tpu.memory_space<smem>>
    %681 = vector.broadcast %680 : f32 to vector<20x128xf32>
    %682 = arith.mulf %671, %681 : vector<20x128xf32>
    %683 = arith.addf %661, %682 : vector<20x128xf32>
    %c3_414 = arith.constant 3 : index
    %c0_415 = arith.constant 0 : index
    %c0_416 = arith.constant 0 : index
    %684 = vector.load %arg4[%c3_414, %c0_415, %c0_416] : memref<15x20x128xf32, #tpu.memory_space<vmem>>, vector<1x20x128xf32>
    %685 = vector.shape_cast %684 : vector<1x20x128xf32> to vector<20x128xf32>
    %c7_417 = arith.constant 7 : index
    %c0_418 = arith.constant 0 : index
    %686 = memref.load %arg1[%c7_417, %c0_418] : memref<21x13xf32, #tpu.memory_space<smem>>
    %687 = vector.broadcast %686 : f32 to vector<20x128xf32>
    %688 = arith.mulf %685, %687 : vector<20x128xf32>
    %689 = arith.addf %675, %688 : vector<20x128xf32>
    %c7_419 = arith.constant 7 : index
    %c1_420 = arith.constant 1 : index
    %690 = memref.load %arg1[%c7_419, %c1_420] : memref<21x13xf32, #tpu.memory_space<smem>>
    %691 = vector.broadcast %690 : f32 to vector<20x128xf32>
    %692 = arith.mulf %685, %691 : vector<20x128xf32>
    %693 = arith.addf %679, %692 : vector<20x128xf32>
    %c7_421 = arith.constant 7 : index
    %c2_422 = arith.constant 2 : index
    %694 = memref.load %arg1[%c7_421, %c2_422] : memref<21x13xf32, #tpu.memory_space<smem>>
    %695 = vector.broadcast %694 : f32 to vector<20x128xf32>
    %696 = arith.mulf %685, %695 : vector<20x128xf32>
    %697 = arith.addf %683, %696 : vector<20x128xf32>
    %c7_423 = arith.constant 7 : index
    %c3_424 = arith.constant 3 : index
    %698 = memref.load %arg1[%c7_423, %c3_424] : memref<21x13xf32, #tpu.memory_space<smem>>
    %699 = vector.broadcast %698 : f32 to vector<20x128xf32>
    %700 = arith.mulf %685, %699 : vector<20x128xf32>
    %701 = arith.addf %665, %700 : vector<20x128xf32>
    %c7_425 = arith.constant 7 : index
    %c4_426 = arith.constant 4 : index
    %702 = memref.load %arg1[%c7_425, %c4_426] : memref<21x13xf32, #tpu.memory_space<smem>>
    %703 = vector.broadcast %702 : f32 to vector<20x128xf32>
    %704 = arith.mulf %685, %703 : vector<20x128xf32>
    %705 = arith.addf %669, %704 : vector<20x128xf32>
    %c4_427 = arith.constant 4 : index
    %c0_428 = arith.constant 0 : index
    %c0_429 = arith.constant 0 : index
    %706 = vector.load %arg4[%c4_427, %c0_428, %c0_429] : memref<15x20x128xf32, #tpu.memory_space<vmem>>, vector<1x20x128xf32>
    %707 = vector.shape_cast %706 : vector<1x20x128xf32> to vector<20x128xf32>
    %c7_430 = arith.constant 7 : index
    %c5_431 = arith.constant 5 : index
    %708 = memref.load %arg1[%c7_430, %c5_431] : memref<21x13xf32, #tpu.memory_space<smem>>
    %709 = vector.broadcast %708 : f32 to vector<20x128xf32>
    %710 = arith.mulf %707, %709 : vector<20x128xf32>
    %711 = arith.addf %689, %710 : vector<20x128xf32>
    %c7_432 = arith.constant 7 : index
    %c6_433 = arith.constant 6 : index
    %712 = memref.load %arg1[%c7_432, %c6_433] : memref<21x13xf32, #tpu.memory_space<smem>>
    %713 = vector.broadcast %712 : f32 to vector<20x128xf32>
    %714 = arith.mulf %707, %713 : vector<20x128xf32>
    %715 = arith.addf %693, %714 : vector<20x128xf32>
    %c7_434 = arith.constant 7 : index
    %c7_435 = arith.constant 7 : index
    %716 = memref.load %arg1[%c7_434, %c7_435] : memref<21x13xf32, #tpu.memory_space<smem>>
    %717 = vector.broadcast %716 : f32 to vector<20x128xf32>
    %718 = arith.mulf %707, %717 : vector<20x128xf32>
    %719 = arith.addf %697, %718 : vector<20x128xf32>
    %c7_436 = arith.constant 7 : index
    %c8_437 = arith.constant 8 : index
    %720 = memref.load %arg1[%c7_436, %c8_437] : memref<21x13xf32, #tpu.memory_space<smem>>
    %721 = vector.broadcast %720 : f32 to vector<20x128xf32>
    %722 = arith.mulf %707, %721 : vector<20x128xf32>
    %723 = arith.addf %701, %722 : vector<20x128xf32>
    %c7_438 = arith.constant 7 : index
    %c9_439 = arith.constant 9 : index
    %724 = memref.load %arg1[%c7_438, %c9_439] : memref<21x13xf32, #tpu.memory_space<smem>>
    %725 = vector.broadcast %724 : f32 to vector<20x128xf32>
    %726 = arith.mulf %707, %725 : vector<20x128xf32>
    %727 = arith.addf %705, %726 : vector<20x128xf32>
    %c5_440 = arith.constant 5 : index
    %c0_441 = arith.constant 0 : index
    %c0_442 = arith.constant 0 : index
    %728 = vector.load %arg4[%c5_440, %c0_441, %c0_442] : memref<15x20x128xf32, #tpu.memory_space<vmem>>, vector<1x20x128xf32>
    %729 = vector.shape_cast %728 : vector<1x20x128xf32> to vector<20x128xf32>
    %c7_443 = arith.constant 7 : index
    %c10_444 = arith.constant 10 : index
    %730 = memref.load %arg1[%c7_443, %c10_444] : memref<21x13xf32, #tpu.memory_space<smem>>
    %731 = vector.broadcast %730 : f32 to vector<20x128xf32>
    %732 = arith.mulf %729, %731 : vector<20x128xf32>
    %733 = arith.addf %711, %732 : vector<20x128xf32>
    %c7_445 = arith.constant 7 : index
    %c11_446 = arith.constant 11 : index
    %734 = memref.load %arg1[%c7_445, %c11_446] : memref<21x13xf32, #tpu.memory_space<smem>>
    %735 = vector.broadcast %734 : f32 to vector<20x128xf32>
    %736 = arith.mulf %729, %735 : vector<20x128xf32>
    %737 = arith.addf %715, %736 : vector<20x128xf32>
    %c7_447 = arith.constant 7 : index
    %c12_448 = arith.constant 12 : index
    %738 = memref.load %arg1[%c7_447, %c12_448] : memref<21x13xf32, #tpu.memory_space<smem>>
    %739 = vector.broadcast %738 : f32 to vector<20x128xf32>
    %740 = arith.mulf %729, %739 : vector<20x128xf32>
    %741 = arith.addf %719, %740 : vector<20x128xf32>
    %c6_449 = arith.constant 6 : index
    %c0_450 = arith.constant 0 : index
    %c0_451 = arith.constant 0 : index
    %742 = vector.load %arg4[%c6_449, %c0_450, %c0_451] : memref<15x20x128xf32, #tpu.memory_space<vmem>>, vector<1x20x128xf32>
    %743 = vector.shape_cast %742 : vector<1x20x128xf32> to vector<20x128xf32>
    %c12_452 = arith.constant 12 : index
    %c0_453 = arith.constant 0 : index
    %744 = memref.load %arg1[%c12_452, %c0_453] : memref<21x13xf32, #tpu.memory_space<smem>>
    %745 = vector.broadcast %744 : f32 to vector<20x128xf32>
    %746 = arith.mulf %743, %745 : vector<20x128xf32>
    %747 = arith.addf %733, %746 : vector<20x128xf32>
    %c12_454 = arith.constant 12 : index
    %c1_455 = arith.constant 1 : index
    %748 = memref.load %arg1[%c12_454, %c1_455] : memref<21x13xf32, #tpu.memory_space<smem>>
    %749 = vector.broadcast %748 : f32 to vector<20x128xf32>
    %750 = arith.mulf %743, %749 : vector<20x128xf32>
    %751 = arith.addf %737, %750 : vector<20x128xf32>
    %c12_456 = arith.constant 12 : index
    %c2_457 = arith.constant 2 : index
    %752 = memref.load %arg1[%c12_456, %c2_457] : memref<21x13xf32, #tpu.memory_space<smem>>
    %753 = vector.broadcast %752 : f32 to vector<20x128xf32>
    %754 = arith.mulf %743, %753 : vector<20x128xf32>
    %755 = arith.addf %741, %754 : vector<20x128xf32>
    %c12_458 = arith.constant 12 : index
    %c3_459 = arith.constant 3 : index
    %756 = memref.load %arg1[%c12_458, %c3_459] : memref<21x13xf32, #tpu.memory_space<smem>>
    %757 = vector.broadcast %756 : f32 to vector<20x128xf32>
    %758 = arith.mulf %743, %757 : vector<20x128xf32>
    %759 = arith.addf %723, %758 : vector<20x128xf32>
    %c12_460 = arith.constant 12 : index
    %c4_461 = arith.constant 4 : index
    %760 = memref.load %arg1[%c12_460, %c4_461] : memref<21x13xf32, #tpu.memory_space<smem>>
    %761 = vector.broadcast %760 : f32 to vector<20x128xf32>
    %762 = arith.mulf %743, %761 : vector<20x128xf32>
    %763 = arith.addf %727, %762 : vector<20x128xf32>
    %c7_462 = arith.constant 7 : index
    %c0_463 = arith.constant 0 : index
    %c0_464 = arith.constant 0 : index
    %764 = vector.load %arg4[%c7_462, %c0_463, %c0_464] : memref<15x20x128xf32, #tpu.memory_space<vmem>>, vector<1x20x128xf32>
    %765 = vector.shape_cast %764 : vector<1x20x128xf32> to vector<20x128xf32>
    %c12_465 = arith.constant 12 : index
    %c5_466 = arith.constant 5 : index
    %766 = memref.load %arg1[%c12_465, %c5_466] : memref<21x13xf32, #tpu.memory_space<smem>>
    %767 = vector.broadcast %766 : f32 to vector<20x128xf32>
    %768 = arith.mulf %765, %767 : vector<20x128xf32>
    %769 = arith.addf %747, %768 : vector<20x128xf32>
    %c12_467 = arith.constant 12 : index
    %c6_468 = arith.constant 6 : index
    %770 = memref.load %arg1[%c12_467, %c6_468] : memref<21x13xf32, #tpu.memory_space<smem>>
    %771 = vector.broadcast %770 : f32 to vector<20x128xf32>
    %772 = arith.mulf %765, %771 : vector<20x128xf32>
    %773 = arith.addf %751, %772 : vector<20x128xf32>
    %c12_469 = arith.constant 12 : index
    %c7_470 = arith.constant 7 : index
    %774 = memref.load %arg1[%c12_469, %c7_470] : memref<21x13xf32, #tpu.memory_space<smem>>
    %775 = vector.broadcast %774 : f32 to vector<20x128xf32>
    %776 = arith.mulf %765, %775 : vector<20x128xf32>
    %777 = arith.addf %755, %776 : vector<20x128xf32>
    %c12_471 = arith.constant 12 : index
    %c8_472 = arith.constant 8 : index
    %778 = memref.load %arg1[%c12_471, %c8_472] : memref<21x13xf32, #tpu.memory_space<smem>>
    %779 = vector.broadcast %778 : f32 to vector<20x128xf32>
    %780 = arith.mulf %765, %779 : vector<20x128xf32>
    %781 = arith.addf %759, %780 : vector<20x128xf32>
    %c12_473 = arith.constant 12 : index
    %c9_474 = arith.constant 9 : index
    %782 = memref.load %arg1[%c12_473, %c9_474] : memref<21x13xf32, #tpu.memory_space<smem>>
    %783 = vector.broadcast %782 : f32 to vector<20x128xf32>
    %784 = arith.mulf %765, %783 : vector<20x128xf32>
    %785 = arith.addf %763, %784 : vector<20x128xf32>
    %c8_475 = arith.constant 8 : index
    %c0_476 = arith.constant 0 : index
    %c0_477 = arith.constant 0 : index
    %786 = vector.load %arg4[%c8_475, %c0_476, %c0_477] : memref<15x20x128xf32, #tpu.memory_space<vmem>>, vector<1x20x128xf32>
    %787 = vector.shape_cast %786 : vector<1x20x128xf32> to vector<20x128xf32>
    %c12_478 = arith.constant 12 : index
    %c10_479 = arith.constant 10 : index
    %788 = memref.load %arg1[%c12_478, %c10_479] : memref<21x13xf32, #tpu.memory_space<smem>>
    %789 = vector.broadcast %788 : f32 to vector<20x128xf32>
    %790 = arith.mulf %787, %789 : vector<20x128xf32>
    %791 = arith.addf %769, %790 : vector<20x128xf32>
    %c12_480 = arith.constant 12 : index
    %c11_481 = arith.constant 11 : index
    %792 = memref.load %arg1[%c12_480, %c11_481] : memref<21x13xf32, #tpu.memory_space<smem>>
    %793 = vector.broadcast %792 : f32 to vector<20x128xf32>
    %794 = arith.mulf %787, %793 : vector<20x128xf32>
    %795 = arith.addf %773, %794 : vector<20x128xf32>
    %c12_482 = arith.constant 12 : index
    %c12_483 = arith.constant 12 : index
    %796 = memref.load %arg1[%c12_482, %c12_483] : memref<21x13xf32, #tpu.memory_space<smem>>
    %797 = vector.broadcast %796 : f32 to vector<20x128xf32>
    %798 = arith.mulf %787, %797 : vector<20x128xf32>
    %799 = arith.addf %777, %798 : vector<20x128xf32>
    %c9_484 = arith.constant 9 : index
    %c0_485 = arith.constant 0 : index
    %c0_486 = arith.constant 0 : index
    %800 = vector.load %arg4[%c9_484, %c0_485, %c0_486] : memref<15x20x128xf32, #tpu.memory_space<vmem>>, vector<1x20x128xf32>
    %801 = vector.shape_cast %800 : vector<1x20x128xf32> to vector<20x128xf32>
    %c17 = arith.constant 17 : index
    %c0_487 = arith.constant 0 : index
    %802 = memref.load %arg1[%c17, %c0_487] : memref<21x13xf32, #tpu.memory_space<smem>>
    %803 = vector.broadcast %802 : f32 to vector<20x128xf32>
    %804 = arith.mulf %801, %803 : vector<20x128xf32>
    %805 = arith.addf %791, %804 : vector<20x128xf32>
    %c17_488 = arith.constant 17 : index
    %c1_489 = arith.constant 1 : index
    %806 = memref.load %arg1[%c17_488, %c1_489] : memref<21x13xf32, #tpu.memory_space<smem>>
    %807 = vector.broadcast %806 : f32 to vector<20x128xf32>
    %808 = arith.mulf %801, %807 : vector<20x128xf32>
    %809 = arith.addf %795, %808 : vector<20x128xf32>
    %c17_490 = arith.constant 17 : index
    %c2_491 = arith.constant 2 : index
    %810 = memref.load %arg1[%c17_490, %c2_491] : memref<21x13xf32, #tpu.memory_space<smem>>
    %811 = vector.broadcast %810 : f32 to vector<20x128xf32>
    %812 = arith.mulf %801, %811 : vector<20x128xf32>
    %813 = arith.addf %799, %812 : vector<20x128xf32>
    %c17_492 = arith.constant 17 : index
    %c3_493 = arith.constant 3 : index
    %814 = memref.load %arg1[%c17_492, %c3_493] : memref<21x13xf32, #tpu.memory_space<smem>>
    %815 = vector.broadcast %814 : f32 to vector<20x128xf32>
    %816 = arith.mulf %801, %815 : vector<20x128xf32>
    %817 = arith.addf %781, %816 : vector<20x128xf32>
    %c17_494 = arith.constant 17 : index
    %c4_495 = arith.constant 4 : index
    %818 = memref.load %arg1[%c17_494, %c4_495] : memref<21x13xf32, #tpu.memory_space<smem>>
    %819 = vector.broadcast %818 : f32 to vector<20x128xf32>
    %820 = arith.mulf %801, %819 : vector<20x128xf32>
    %821 = arith.addf %785, %820 : vector<20x128xf32>
    %c10_496 = arith.constant 10 : index
    %c0_497 = arith.constant 0 : index
    %c0_498 = arith.constant 0 : index
    %822 = vector.load %arg4[%c10_496, %c0_497, %c0_498] : memref<15x20x128xf32, #tpu.memory_space<vmem>>, vector<1x20x128xf32>
    %823 = vector.shape_cast %822 : vector<1x20x128xf32> to vector<20x128xf32>
    %c17_499 = arith.constant 17 : index
    %c5_500 = arith.constant 5 : index
    %824 = memref.load %arg1[%c17_499, %c5_500] : memref<21x13xf32, #tpu.memory_space<smem>>
    %825 = vector.broadcast %824 : f32 to vector<20x128xf32>
    %826 = arith.mulf %823, %825 : vector<20x128xf32>
    %827 = arith.addf %805, %826 : vector<20x128xf32>
    %c17_501 = arith.constant 17 : index
    %c6_502 = arith.constant 6 : index
    %828 = memref.load %arg1[%c17_501, %c6_502] : memref<21x13xf32, #tpu.memory_space<smem>>
    %829 = vector.broadcast %828 : f32 to vector<20x128xf32>
    %830 = arith.mulf %823, %829 : vector<20x128xf32>
    %831 = arith.addf %809, %830 : vector<20x128xf32>
    %c17_503 = arith.constant 17 : index
    %c7_504 = arith.constant 7 : index
    %832 = memref.load %arg1[%c17_503, %c7_504] : memref<21x13xf32, #tpu.memory_space<smem>>
    %833 = vector.broadcast %832 : f32 to vector<20x128xf32>
    %834 = arith.mulf %823, %833 : vector<20x128xf32>
    %835 = arith.addf %813, %834 : vector<20x128xf32>
    %c17_505 = arith.constant 17 : index
    %c8_506 = arith.constant 8 : index
    %836 = memref.load %arg1[%c17_505, %c8_506] : memref<21x13xf32, #tpu.memory_space<smem>>
    %837 = vector.broadcast %836 : f32 to vector<20x128xf32>
    %838 = arith.mulf %823, %837 : vector<20x128xf32>
    %839 = arith.addf %817, %838 : vector<20x128xf32>
    %c17_507 = arith.constant 17 : index
    %c9_508 = arith.constant 9 : index
    %840 = memref.load %arg1[%c17_507, %c9_508] : memref<21x13xf32, #tpu.memory_space<smem>>
    %841 = vector.broadcast %840 : f32 to vector<20x128xf32>
    %842 = arith.mulf %823, %841 : vector<20x128xf32>
    %843 = arith.addf %821, %842 : vector<20x128xf32>
    %c11_509 = arith.constant 11 : index
    %c0_510 = arith.constant 0 : index
    %c0_511 = arith.constant 0 : index
    %844 = vector.load %arg4[%c11_509, %c0_510, %c0_511] : memref<15x20x128xf32, #tpu.memory_space<vmem>>, vector<1x20x128xf32>
    %845 = vector.shape_cast %844 : vector<1x20x128xf32> to vector<20x128xf32>
    %c17_512 = arith.constant 17 : index
    %c10_513 = arith.constant 10 : index
    %846 = memref.load %arg1[%c17_512, %c10_513] : memref<21x13xf32, #tpu.memory_space<smem>>
    %847 = vector.broadcast %846 : f32 to vector<20x128xf32>
    %848 = arith.mulf %845, %847 : vector<20x128xf32>
    %849 = arith.addf %827, %848 : vector<20x128xf32>
    %c17_514 = arith.constant 17 : index
    %c11_515 = arith.constant 11 : index
    %850 = memref.load %arg1[%c17_514, %c11_515] : memref<21x13xf32, #tpu.memory_space<smem>>
    %851 = vector.broadcast %850 : f32 to vector<20x128xf32>
    %852 = arith.mulf %845, %851 : vector<20x128xf32>
    %853 = arith.addf %831, %852 : vector<20x128xf32>
    %c17_516 = arith.constant 17 : index
    %c12_517 = arith.constant 12 : index
    %854 = memref.load %arg1[%c17_516, %c12_517] : memref<21x13xf32, #tpu.memory_space<smem>>
    %855 = vector.broadcast %854 : f32 to vector<20x128xf32>
    %856 = arith.mulf %845, %855 : vector<20x128xf32>
    %857 = arith.addf %835, %856 : vector<20x128xf32>
    %858 = math.tanh %849 : vector<20x128xf32>
    %c10_518 = arith.constant 10 : index
    %c0_519 = arith.constant 0 : index
    %c0_520 = arith.constant 0 : index
    %859 = vector.load %arg3[%c10_518, %c0_519, %c0_520] : memref<25x20x128xf32, #tpu.memory_space<vmem>>, vector<1x20x128xf32>
    %860 = vector.shape_cast %859 : vector<1x20x128xf32> to vector<20x128xf32>
    %861 = vector.shape_cast %858 : vector<20x128xf32> to vector<1x20x128xf32>
    tpu.vector_store %arg3[%c10_518, %c0_519, %c0_520], %861 {strides = array<i32>} : memref<25x20x128xf32, #tpu.memory_space<vmem>>, vector<1x20x128xf32>,
    %862 = math.tanh %853 : vector<20x128xf32>
    %c11_521 = arith.constant 11 : index
    %c0_522 = arith.constant 0 : index
    %c0_523 = arith.constant 0 : index
    %863 = vector.load %arg3[%c11_521, %c0_522, %c0_523] : memref<25x20x128xf32, #tpu.memory_space<vmem>>, vector<1x20x128xf32>
    %864 = vector.shape_cast %863 : vector<1x20x128xf32> to vector<20x128xf32>
    %865 = vector.shape_cast %862 : vector<20x128xf32> to vector<1x20x128xf32>
    tpu.vector_store %arg3[%c11_521, %c0_522, %c0_523], %865 {strides = array<i32>} : memref<25x20x128xf32, #tpu.memory_space<vmem>>, vector<1x20x128xf32>,
    %866 = math.tanh %857 : vector<20x128xf32>
    %c12_524 = arith.constant 12 : index
    %c0_525 = arith.constant 0 : index
    %c0_526 = arith.constant 0 : index
    %867 = vector.load %arg3[%c12_524, %c0_525, %c0_526] : memref<25x20x128xf32, #tpu.memory_space<vmem>>, vector<1x20x128xf32>
    %868 = vector.shape_cast %867 : vector<1x20x128xf32> to vector<20x128xf32>
    %869 = vector.shape_cast %866 : vector<20x128xf32> to vector<1x20x128xf32>
    tpu.vector_store %arg3[%c12_524, %c0_525, %c0_526], %869 {strides = array<i32>} : memref<25x20x128xf32, #tpu.memory_space<vmem>>, vector<1x20x128xf32>,
    %870 = math.tanh %839 : vector<20x128xf32>
    %c13_527 = arith.constant 13 : index
    %c0_528 = arith.constant 0 : index
    %c0_529 = arith.constant 0 : index
    %871 = vector.load %arg3[%c13_527, %c0_528, %c0_529] : memref<25x20x128xf32, #tpu.memory_space<vmem>>, vector<1x20x128xf32>
    %872 = vector.shape_cast %871 : vector<1x20x128xf32> to vector<20x128xf32>
    %873 = vector.shape_cast %870 : vector<20x128xf32> to vector<1x20x128xf32>
    tpu.vector_store %arg3[%c13_527, %c0_528, %c0_529], %873 {strides = array<i32>} : memref<25x20x128xf32, #tpu.memory_space<vmem>>, vector<1x20x128xf32>,
    %874 = math.tanh %843 : vector<20x128xf32>
    %c14_530 = arith.constant 14 : index
    %c0_531 = arith.constant 0 : index
    %c0_532 = arith.constant 0 : index
    %875 = vector.load %arg3[%c14_530, %c0_531, %c0_532] : memref<25x20x128xf32, #tpu.memory_space<vmem>>, vector<1x20x128xf32>
    %876 = vector.shape_cast %875 : vector<1x20x128xf32> to vector<20x128xf32>
    %877 = vector.shape_cast %874 : vector<20x128xf32> to vector<1x20x128xf32>
    tpu.vector_store %arg3[%c14_530, %c0_531, %c0_532], %877 {strides = array<i32>} : memref<25x20x128xf32, #tpu.memory_space<vmem>>, vector<1x20x128xf32>,
    %878 = vector.broadcast %48 : f32 to vector<20x128xf32>
    %879 = vector.broadcast %48 : f32 to vector<20x128xf32>
    %880 = vector.broadcast %48 : f32 to vector<20x128xf32>
    %881 = vector.broadcast %48 : f32 to vector<20x128xf32>
    %882 = vector.broadcast %48 : f32 to vector<20x128xf32>
    %c0_533 = arith.constant 0 : index
    %c0_534 = arith.constant 0 : index
    %c0_535 = arith.constant 0 : index
    %883 = vector.load %arg4[%c0_533, %c0_534, %c0_535] : memref<15x20x128xf32, #tpu.memory_space<vmem>>, vector<1x20x128xf32>
    %884 = vector.shape_cast %883 : vector<1x20x128xf32> to vector<20x128xf32>
    %c3_536 = arith.constant 3 : index
    %c0_537 = arith.constant 0 : index
    %885 = memref.load %arg1[%c3_536, %c0_537] : memref<21x13xf32, #tpu.memory_space<smem>>
    %886 = vector.broadcast %885 : f32 to vector<20x128xf32>
    %887 = arith.mulf %884, %886 : vector<20x128xf32>
    %888 = arith.addf %878, %887 : vector<20x128xf32>
    %c3_538 = arith.constant 3 : index
    %c1_539 = arith.constant 1 : index
    %889 = memref.load %arg1[%c3_538, %c1_539] : memref<21x13xf32, #tpu.memory_space<smem>>
    %890 = vector.broadcast %889 : f32 to vector<20x128xf32>
    %891 = arith.mulf %884, %890 : vector<20x128xf32>
    %892 = arith.addf %879, %891 : vector<20x128xf32>
    %c3_540 = arith.constant 3 : index
    %c2_541 = arith.constant 2 : index
    %893 = memref.load %arg1[%c3_540, %c2_541] : memref<21x13xf32, #tpu.memory_space<smem>>
    %894 = vector.broadcast %893 : f32 to vector<20x128xf32>
    %895 = arith.mulf %884, %894 : vector<20x128xf32>
    %896 = arith.addf %880, %895 : vector<20x128xf32>
    %c3_542 = arith.constant 3 : index
    %c3_543 = arith.constant 3 : index
    %897 = memref.load %arg1[%c3_542, %c3_543] : memref<21x13xf32, #tpu.memory_space<smem>>
    %898 = vector.broadcast %897 : f32 to vector<20x128xf32>
    %899 = arith.mulf %884, %898 : vector<20x128xf32>
    %900 = arith.addf %881, %899 : vector<20x128xf32>
    %c3_544 = arith.constant 3 : index
    %c4_545 = arith.constant 4 : index
    %901 = memref.load %arg1[%c3_544, %c4_545] : memref<21x13xf32, #tpu.memory_space<smem>>
    %902 = vector.broadcast %901 : f32 to vector<20x128xf32>
    %903 = arith.mulf %884, %902 : vector<20x128xf32>
    %904 = arith.addf %882, %903 : vector<20x128xf32>
    %c1_546 = arith.constant 1 : index
    %c0_547 = arith.constant 0 : index
    %c0_548 = arith.constant 0 : index
    %905 = vector.load %arg4[%c1_546, %c0_547, %c0_548] : memref<15x20x128xf32, #tpu.memory_space<vmem>>, vector<1x20x128xf32>
    %906 = vector.shape_cast %905 : vector<1x20x128xf32> to vector<20x128xf32>
    %c3_549 = arith.constant 3 : index
    %c5_550 = arith.constant 5 : index
    %907 = memref.load %arg1[%c3_549, %c5_550] : memref<21x13xf32, #tpu.memory_space<smem>>
    %908 = vector.broadcast %907 : f32 to vector<20x128xf32>
    %909 = arith.mulf %906, %908 : vector<20x128xf32>
    %910 = arith.addf %888, %909 : vector<20x128xf32>
    %c3_551 = arith.constant 3 : index
    %c6_552 = arith.constant 6 : index
    %911 = memref.load %arg1[%c3_551, %c6_552] : memref<21x13xf32, #tpu.memory_space<smem>>
    %912 = vector.broadcast %911 : f32 to vector<20x128xf32>
    %913 = arith.mulf %906, %912 : vector<20x128xf32>
    %914 = arith.addf %892, %913 : vector<20x128xf32>
    %c3_553 = arith.constant 3 : index
    %c7_554 = arith.constant 7 : index
    %915 = memref.load %arg1[%c3_553, %c7_554] : memref<21x13xf32, #tpu.memory_space<smem>>
    %916 = vector.broadcast %915 : f32 to vector<20x128xf32>
    %917 = arith.mulf %906, %916 : vector<20x128xf32>
    %918 = arith.addf %896, %917 : vector<20x128xf32>
    %c3_555 = arith.constant 3 : index
    %c8_556 = arith.constant 8 : index
    %919 = memref.load %arg1[%c3_555, %c8_556] : memref<21x13xf32, #tpu.memory_space<smem>>
    %920 = vector.broadcast %919 : f32 to vector<20x128xf32>
    %921 = arith.mulf %906, %920 : vector<20x128xf32>
    %922 = arith.addf %900, %921 : vector<20x128xf32>
    %c3_557 = arith.constant 3 : index
    %c9_558 = arith.constant 9 : index
    %923 = memref.load %arg1[%c3_557, %c9_558] : memref<21x13xf32, #tpu.memory_space<smem>>
    %924 = vector.broadcast %923 : f32 to vector<20x128xf32>
    %925 = arith.mulf %906, %924 : vector<20x128xf32>
    %926 = arith.addf %904, %925 : vector<20x128xf32>
    %c2_559 = arith.constant 2 : index
    %c0_560 = arith.constant 0 : index
    %c0_561 = arith.constant 0 : index
    %927 = vector.load %arg4[%c2_559, %c0_560, %c0_561] : memref<15x20x128xf32, #tpu.memory_space<vmem>>, vector<1x20x128xf32>
    %928 = vector.shape_cast %927 : vector<1x20x128xf32> to vector<20x128xf32>
    %c3_562 = arith.constant 3 : index
    %c10_563 = arith.constant 10 : index
    %929 = memref.load %arg1[%c3_562, %c10_563] : memref<21x13xf32, #tpu.memory_space<smem>>
    %930 = vector.broadcast %929 : f32 to vector<20x128xf32>
    %931 = arith.mulf %928, %930 : vector<20x128xf32>
    %932 = arith.addf %910, %931 : vector<20x128xf32>
    %c3_564 = arith.constant 3 : index
    %c11_565 = arith.constant 11 : index
    %933 = memref.load %arg1[%c3_564, %c11_565] : memref<21x13xf32, #tpu.memory_space<smem>>
    %934 = vector.broadcast %933 : f32 to vector<20x128xf32>
    %935 = arith.mulf %928, %934 : vector<20x128xf32>
    %936 = arith.addf %914, %935 : vector<20x128xf32>
    %c3_566 = arith.constant 3 : index
    %c12_567 = arith.constant 12 : index
    %937 = memref.load %arg1[%c3_566, %c12_567] : memref<21x13xf32, #tpu.memory_space<smem>>
    %938 = vector.broadcast %937 : f32 to vector<20x128xf32>
    %939 = arith.mulf %928, %938 : vector<20x128xf32>
    %940 = arith.addf %918, %939 : vector<20x128xf32>
    %c3_568 = arith.constant 3 : index
    %c0_569 = arith.constant 0 : index
    %c0_570 = arith.constant 0 : index
    %941 = vector.load %arg4[%c3_568, %c0_569, %c0_570] : memref<15x20x128xf32, #tpu.memory_space<vmem>>, vector<1x20x128xf32>
    %942 = vector.shape_cast %941 : vector<1x20x128xf32> to vector<20x128xf32>
    %c8_571 = arith.constant 8 : index
    %c0_572 = arith.constant 0 : index
    %943 = memref.load %arg1[%c8_571, %c0_572] : memref<21x13xf32, #tpu.memory_space<smem>>
    %944 = vector.broadcast %943 : f32 to vector<20x128xf32>
    %945 = arith.mulf %942, %944 : vector<20x128xf32>
    %946 = arith.addf %932, %945 : vector<20x128xf32>
    %c8_573 = arith.constant 8 : index
    %c1_574 = arith.constant 1 : index
    %947 = memref.load %arg1[%c8_573, %c1_574] : memref<21x13xf32, #tpu.memory_space<smem>>
    %948 = vector.broadcast %947 : f32 to vector<20x128xf32>
    %949 = arith.mulf %942, %948 : vector<20x128xf32>
    %950 = arith.addf %936, %949 : vector<20x128xf32>
    %c8_575 = arith.constant 8 : index
    %c2_576 = arith.constant 2 : index
    %951 = memref.load %arg1[%c8_575, %c2_576] : memref<21x13xf32, #tpu.memory_space<smem>>
    %952 = vector.broadcast %951 : f32 to vector<20x128xf32>
    %953 = arith.mulf %942, %952 : vector<20x128xf32>
    %954 = arith.addf %940, %953 : vector<20x128xf32>
    %c8_577 = arith.constant 8 : index
    %c3_578 = arith.constant 3 : index
    %955 = memref.load %arg1[%c8_577, %c3_578] : memref<21x13xf32, #tpu.memory_space<smem>>
    %956 = vector.broadcast %955 : f32 to vector<20x128xf32>
    %957 = arith.mulf %942, %956 : vector<20x128xf32>
    %958 = arith.addf %922, %957 : vector<20x128xf32>
    %c8_579 = arith.constant 8 : index
    %c4_580 = arith.constant 4 : index
    %959 = memref.load %arg1[%c8_579, %c4_580] : memref<21x13xf32, #tpu.memory_space<smem>>
    %960 = vector.broadcast %959 : f32 to vector<20x128xf32>
    %961 = arith.mulf %942, %960 : vector<20x128xf32>
    %962 = arith.addf %926, %961 : vector<20x128xf32>
    %c4_581 = arith.constant 4 : index
    %c0_582 = arith.constant 0 : index
    %c0_583 = arith.constant 0 : index
    %963 = vector.load %arg4[%c4_581, %c0_582, %c0_583] : memref<15x20x128xf32, #tpu.memory_space<vmem>>, vector<1x20x128xf32>
    %964 = vector.shape_cast %963 : vector<1x20x128xf32> to vector<20x128xf32>
    %c8_584 = arith.constant 8 : index
    %c5_585 = arith.constant 5 : index
    %965 = memref.load %arg1[%c8_584, %c5_585] : memref<21x13xf32, #tpu.memory_space<smem>>
    %966 = vector.broadcast %965 : f32 to vector<20x128xf32>
    %967 = arith.mulf %964, %966 : vector<20x128xf32>
    %968 = arith.addf %946, %967 : vector<20x128xf32>
    %c8_586 = arith.constant 8 : index
    %c6_587 = arith.constant 6 : index
    %969 = memref.load %arg1[%c8_586, %c6_587] : memref<21x13xf32, #tpu.memory_space<smem>>
    %970 = vector.broadcast %969 : f32 to vector<20x128xf32>
    %971 = arith.mulf %964, %970 : vector<20x128xf32>
    %972 = arith.addf %950, %971 : vector<20x128xf32>
    %c8_588 = arith.constant 8 : index
    %c7_589 = arith.constant 7 : index
    %973 = memref.load %arg1[%c8_588, %c7_589] : memref<21x13xf32, #tpu.memory_space<smem>>
    %974 = vector.broadcast %973 : f32 to vector<20x128xf32>
    %975 = arith.mulf %964, %974 : vector<20x128xf32>
    %976 = arith.addf %954, %975 : vector<20x128xf32>
    %c8_590 = arith.constant 8 : index
    %c8_591 = arith.constant 8 : index
    %977 = memref.load %arg1[%c8_590, %c8_591] : memref<21x13xf32, #tpu.memory_space<smem>>
    %978 = vector.broadcast %977 : f32 to vector<20x128xf32>
    %979 = arith.mulf %964, %978 : vector<20x128xf32>
    %980 = arith.addf %958, %979 : vector<20x128xf32>
    %c8_592 = arith.constant 8 : index
    %c9_593 = arith.constant 9 : index
    %981 = memref.load %arg1[%c8_592, %c9_593] : memref<21x13xf32, #tpu.memory_space<smem>>
    %982 = vector.broadcast %981 : f32 to vector<20x128xf32>
    %983 = arith.mulf %964, %982 : vector<20x128xf32>
    %984 = arith.addf %962, %983 : vector<20x128xf32>
    %c5_594 = arith.constant 5 : index
    %c0_595 = arith.constant 0 : index
    %c0_596 = arith.constant 0 : index
    %985 = vector.load %arg4[%c5_594, %c0_595, %c0_596] : memref<15x20x128xf32, #tpu.memory_space<vmem>>, vector<1x20x128xf32>
    %986 = vector.shape_cast %985 : vector<1x20x128xf32> to vector<20x128xf32>
    %c8_597 = arith.constant 8 : index
    %c10_598 = arith.constant 10 : index
    %987 = memref.load %arg1[%c8_597, %c10_598] : memref<21x13xf32, #tpu.memory_space<smem>>
    %988 = vector.broadcast %987 : f32 to vector<20x128xf32>
    %989 = arith.mulf %986, %988 : vector<20x128xf32>
    %990 = arith.addf %968, %989 : vector<20x128xf32>
    %c8_599 = arith.constant 8 : index
    %c11_600 = arith.constant 11 : index
    %991 = memref.load %arg1[%c8_599, %c11_600] : memref<21x13xf32, #tpu.memory_space<smem>>
    %992 = vector.broadcast %991 : f32 to vector<20x128xf32>
    %993 = arith.mulf %986, %992 : vector<20x128xf32>
    %994 = arith.addf %972, %993 : vector<20x128xf32>
    %c8_601 = arith.constant 8 : index
    %c12_602 = arith.constant 12 : index
    %995 = memref.load %arg1[%c8_601, %c12_602] : memref<21x13xf32, #tpu.memory_space<smem>>
    %996 = vector.broadcast %995 : f32 to vector<20x128xf32>
    %997 = arith.mulf %986, %996 : vector<20x128xf32>
    %998 = arith.addf %976, %997 : vector<20x128xf32>
    %c6_603 = arith.constant 6 : index
    %c0_604 = arith.constant 0 : index
    %c0_605 = arith.constant 0 : index
    %999 = vector.load %arg4[%c6_603, %c0_604, %c0_605] : memref<15x20x128xf32, #tpu.memory_space<vmem>>, vector<1x20x128xf32>
    %1000 = vector.shape_cast %999 : vector<1x20x128xf32> to vector<20x128xf32>
    %c13_606 = arith.constant 13 : index
    %c0_607 = arith.constant 0 : index
    %1001 = memref.load %arg1[%c13_606, %c0_607] : memref<21x13xf32, #tpu.memory_space<smem>>
    %1002 = vector.broadcast %1001 : f32 to vector<20x128xf32>
    %1003 = arith.mulf %1000, %1002 : vector<20x128xf32>
    %1004 = arith.addf %990, %1003 : vector<20x128xf32>
    %c13_608 = arith.constant 13 : index
    %c1_609 = arith.constant 1 : index
    %1005 = memref.load %arg1[%c13_608, %c1_609] : memref<21x13xf32, #tpu.memory_space<smem>>
    %1006 = vector.broadcast %1005 : f32 to vector<20x128xf32>
    %1007 = arith.mulf %1000, %1006 : vector<20x128xf32>
    %1008 = arith.addf %994, %1007 : vector<20x128xf32>
    %c13_610 = arith.constant 13 : index
    %c2_611 = arith.constant 2 : index
    %1009 = memref.load %arg1[%c13_610, %c2_611] : memref<21x13xf32, #tpu.memory_space<smem>>
    %1010 = vector.broadcast %1009 : f32 to vector<20x128xf32>
    %1011 = arith.mulf %1000, %1010 : vector<20x128xf32>
    %1012 = arith.addf %998, %1011 : vector<20x128xf32>
    %c13_612 = arith.constant 13 : index
    %c3_613 = arith.constant 3 : index
    %1013 = memref.load %arg1[%c13_612, %c3_613] : memref<21x13xf32, #tpu.memory_space<smem>>
    %1014 = vector.broadcast %1013 : f32 to vector<20x128xf32>
    %1015 = arith.mulf %1000, %1014 : vector<20x128xf32>
    %1016 = arith.addf %980, %1015 : vector<20x128xf32>
    %c13_614 = arith.constant 13 : index
    %c4_615 = arith.constant 4 : index
    %1017 = memref.load %arg1[%c13_614, %c4_615] : memref<21x13xf32, #tpu.memory_space<smem>>
    %1018 = vector.broadcast %1017 : f32 to vector<20x128xf32>
    %1019 = arith.mulf %1000, %1018 : vector<20x128xf32>
    %1020 = arith.addf %984, %1019 : vector<20x128xf32>
    %c7_616 = arith.constant 7 : index
    %c0_617 = arith.constant 0 : index
    %c0_618 = arith.constant 0 : index
    %1021 = vector.load %arg4[%c7_616, %c0_617, %c0_618] : memref<15x20x128xf32, #tpu.memory_space<vmem>>, vector<1x20x128xf32>
    %1022 = vector.shape_cast %1021 : vector<1x20x128xf32> to vector<20x128xf32>
    %c13_619 = arith.constant 13 : index
    %c5_620 = arith.constant 5 : index
    %1023 = memref.load %arg1[%c13_619, %c5_620] : memref<21x13xf32, #tpu.memory_space<smem>>
    %1024 = vector.broadcast %1023 : f32 to vector<20x128xf32>
    %1025 = arith.mulf %1022, %1024 : vector<20x128xf32>
    %1026 = arith.addf %1004, %1025 : vector<20x128xf32>
    %c13_621 = arith.constant 13 : index
    %c6_622 = arith.constant 6 : index
    %1027 = memref.load %arg1[%c13_621, %c6_622] : memref<21x13xf32, #tpu.memory_space<smem>>
    %1028 = vector.broadcast %1027 : f32 to vector<20x128xf32>
    %1029 = arith.mulf %1022, %1028 : vector<20x128xf32>
    %1030 = arith.addf %1008, %1029 : vector<20x128xf32>
    %c13_623 = arith.constant 13 : index
    %c7_624 = arith.constant 7 : index
    %1031 = memref.load %arg1[%c13_623, %c7_624] : memref<21x13xf32, #tpu.memory_space<smem>>
    %1032 = vector.broadcast %1031 : f32 to vector<20x128xf32>
    %1033 = arith.mulf %1022, %1032 : vector<20x128xf32>
    %1034 = arith.addf %1012, %1033 : vector<20x128xf32>
    %c13_625 = arith.constant 13 : index
    %c8_626 = arith.constant 8 : index
    %1035 = memref.load %arg1[%c13_625, %c8_626] : memref<21x13xf32, #tpu.memory_space<smem>>
    %1036 = vector.broadcast %1035 : f32 to vector<20x128xf32>
    %1037 = arith.mulf %1022, %1036 : vector<20x128xf32>
    %1038 = arith.addf %1016, %1037 : vector<20x128xf32>
    %c13_627 = arith.constant 13 : index
    %c9_628 = arith.constant 9 : index
    %1039 = memref.load %arg1[%c13_627, %c9_628] : memref<21x13xf32, #tpu.memory_space<smem>>
    %1040 = vector.broadcast %1039 : f32 to vector<20x128xf32>
    %1041 = arith.mulf %1022, %1040 : vector<20x128xf32>
    %1042 = arith.addf %1020, %1041 : vector<20x128xf32>
    %c8_629 = arith.constant 8 : index
    %c0_630 = arith.constant 0 : index
    %c0_631 = arith.constant 0 : index
    %1043 = vector.load %arg4[%c8_629, %c0_630, %c0_631] : memref<15x20x128xf32, #tpu.memory_space<vmem>>, vector<1x20x128xf32>
    %1044 = vector.shape_cast %1043 : vector<1x20x128xf32> to vector<20x128xf32>
    %c13_632 = arith.constant 13 : index
    %c10_633 = arith.constant 10 : index
    %1045 = memref.load %arg1[%c13_632, %c10_633] : memref<21x13xf32, #tpu.memory_space<smem>>
    %1046 = vector.broadcast %1045 : f32 to vector<20x128xf32>
    %1047 = arith.mulf %1044, %1046 : vector<20x128xf32>
    %1048 = arith.addf %1026, %1047 : vector<20x128xf32>
    %c13_634 = arith.constant 13 : index
    %c11_635 = arith.constant 11 : index
    %1049 = memref.load %arg1[%c13_634, %c11_635] : memref<21x13xf32, #tpu.memory_space<smem>>
    %1050 = vector.broadcast %1049 : f32 to vector<20x128xf32>
    %1051 = arith.mulf %1044, %1050 : vector<20x128xf32>
    %1052 = arith.addf %1030, %1051 : vector<20x128xf32>
    %c13_636 = arith.constant 13 : index
    %c12_637 = arith.constant 12 : index
    %1053 = memref.load %arg1[%c13_636, %c12_637] : memref<21x13xf32, #tpu.memory_space<smem>>
    %1054 = vector.broadcast %1053 : f32 to vector<20x128xf32>
    %1055 = arith.mulf %1044, %1054 : vector<20x128xf32>
    %1056 = arith.addf %1034, %1055 : vector<20x128xf32>
    %c9_638 = arith.constant 9 : index
    %c0_639 = arith.constant 0 : index
    %c0_640 = arith.constant 0 : index
    %1057 = vector.load %arg4[%c9_638, %c0_639, %c0_640] : memref<15x20x128xf32, #tpu.memory_space<vmem>>, vector<1x20x128xf32>
    %1058 = vector.shape_cast %1057 : vector<1x20x128xf32> to vector<20x128xf32>
    %c18 = arith.constant 18 : index
    %c0_641 = arith.constant 0 : index
    %1059 = memref.load %arg1[%c18, %c0_641] : memref<21x13xf32, #tpu.memory_space<smem>>
    %1060 = vector.broadcast %1059 : f32 to vector<20x128xf32>
    %1061 = arith.mulf %1058, %1060 : vector<20x128xf32>
    %1062 = arith.addf %1048, %1061 : vector<20x128xf32>
    %c18_642 = arith.constant 18 : index
    %c1_643 = arith.constant 1 : index
    %1063 = memref.load %arg1[%c18_642, %c1_643] : memref<21x13xf32, #tpu.memory_space<smem>>
    %1064 = vector.broadcast %1063 : f32 to vector<20x128xf32>
    %1065 = arith.mulf %1058, %1064 : vector<20x128xf32>
    %1066 = arith.addf %1052, %1065 : vector<20x128xf32>
    %c18_644 = arith.constant 18 : index
    %c2_645 = arith.constant 2 : index
    %1067 = memref.load %arg1[%c18_644, %c2_645] : memref<21x13xf32, #tpu.memory_space<smem>>
    %1068 = vector.broadcast %1067 : f32 to vector<20x128xf32>
    %1069 = arith.mulf %1058, %1068 : vector<20x128xf32>
    %1070 = arith.addf %1056, %1069 : vector<20x128xf32>
    %c18_646 = arith.constant 18 : index
    %c3_647 = arith.constant 3 : index
    %1071 = memref.load %arg1[%c18_646, %c3_647] : memref<21x13xf32, #tpu.memory_space<smem>>
    %1072 = vector.broadcast %1071 : f32 to vector<20x128xf32>
    %1073 = arith.mulf %1058, %1072 : vector<20x128xf32>
    %1074 = arith.addf %1038, %1073 : vector<20x128xf32>
    %c18_648 = arith.constant 18 : index
    %c4_649 = arith.constant 4 : index
    %1075 = memref.load %arg1[%c18_648, %c4_649] : memref<21x13xf32, #tpu.memory_space<smem>>
    %1076 = vector.broadcast %1075 : f32 to vector<20x128xf32>
    %1077 = arith.mulf %1058, %1076 : vector<20x128xf32>
    %1078 = arith.addf %1042, %1077 : vector<20x128xf32>
    %c10_650 = arith.constant 10 : index
    %c0_651 = arith.constant 0 : index
    %c0_652 = arith.constant 0 : index
    %1079 = vector.load %arg4[%c10_650, %c0_651, %c0_652] : memref<15x20x128xf32, #tpu.memory_space<vmem>>, vector<1x20x128xf32>
    %1080 = vector.shape_cast %1079 : vector<1x20x128xf32> to vector<20x128xf32>
    %c18_653 = arith.constant 18 : index
    %c5_654 = arith.constant 5 : index
    %1081 = memref.load %arg1[%c18_653, %c5_654] : memref<21x13xf32, #tpu.memory_space<smem>>
    %1082 = vector.broadcast %1081 : f32 to vector<20x128xf32>
    %1083 = arith.mulf %1080, %1082 : vector<20x128xf32>
    %1084 = arith.addf %1062, %1083 : vector<20x128xf32>
    %c18_655 = arith.constant 18 : index
    %c6_656 = arith.constant 6 : index
    %1085 = memref.load %arg1[%c18_655, %c6_656] : memref<21x13xf32, #tpu.memory_space<smem>>
    %1086 = vector.broadcast %1085 : f32 to vector<20x128xf32>
    %1087 = arith.mulf %1080, %1086 : vector<20x128xf32>
    %1088 = arith.addf %1066, %1087 : vector<20x128xf32>
    %c18_657 = arith.constant 18 : index
    %c7_658 = arith.constant 7 : index
    %1089 = memref.load %arg1[%c18_657, %c7_658] : memref<21x13xf32, #tpu.memory_space<smem>>
    %1090 = vector.broadcast %1089 : f32 to vector<20x128xf32>
    %1091 = arith.mulf %1080, %1090 : vector<20x128xf32>
    %1092 = arith.addf %1070, %1091 : vector<20x128xf32>
    %c18_659 = arith.constant 18 : index
    %c8_660 = arith.constant 8 : index
    %1093 = memref.load %arg1[%c18_659, %c8_660] : memref<21x13xf32, #tpu.memory_space<smem>>
    %1094 = vector.broadcast %1093 : f32 to vector<20x128xf32>
    %1095 = arith.mulf %1080, %1094 : vector<20x128xf32>
    %1096 = arith.addf %1074, %1095 : vector<20x128xf32>
    %c18_661 = arith.constant 18 : index
    %c9_662 = arith.constant 9 : index
    %1097 = memref.load %arg1[%c18_661, %c9_662] : memref<21x13xf32, #tpu.memory_space<smem>>
    %1098 = vector.broadcast %1097 : f32 to vector<20x128xf32>
    %1099 = arith.mulf %1080, %1098 : vector<20x128xf32>
    %1100 = arith.addf %1078, %1099 : vector<20x128xf32>
    %c11_663 = arith.constant 11 : index
    %c0_664 = arith.constant 0 : index
    %c0_665 = arith.constant 0 : index
    %1101 = vector.load %arg4[%c11_663, %c0_664, %c0_665] : memref<15x20x128xf32, #tpu.memory_space<vmem>>, vector<1x20x128xf32>
    %1102 = vector.shape_cast %1101 : vector<1x20x128xf32> to vector<20x128xf32>
    %c18_666 = arith.constant 18 : index
    %c10_667 = arith.constant 10 : index
    %1103 = memref.load %arg1[%c18_666, %c10_667] : memref<21x13xf32, #tpu.memory_space<smem>>
    %1104 = vector.broadcast %1103 : f32 to vector<20x128xf32>
    %1105 = arith.mulf %1102, %1104 : vector<20x128xf32>
    %1106 = arith.addf %1084, %1105 : vector<20x128xf32>
    %c18_668 = arith.constant 18 : index
    %c11_669 = arith.constant 11 : index
    %1107 = memref.load %arg1[%c18_668, %c11_669] : memref<21x13xf32, #tpu.memory_space<smem>>
    %1108 = vector.broadcast %1107 : f32 to vector<20x128xf32>
    %1109 = arith.mulf %1102, %1108 : vector<20x128xf32>
    %1110 = arith.addf %1088, %1109 : vector<20x128xf32>
    %c18_670 = arith.constant 18 : index
    %c12_671 = arith.constant 12 : index
    %1111 = memref.load %arg1[%c18_670, %c12_671] : memref<21x13xf32, #tpu.memory_space<smem>>
    %1112 = vector.broadcast %1111 : f32 to vector<20x128xf32>
    %1113 = arith.mulf %1102, %1112 : vector<20x128xf32>
    %1114 = arith.addf %1092, %1113 : vector<20x128xf32>
    %1115 = math.tanh %1106 : vector<20x128xf32>
    %c15_672 = arith.constant 15 : index
    %c0_673 = arith.constant 0 : index
    %c0_674 = arith.constant 0 : index
    %1116 = vector.load %arg3[%c15_672, %c0_673, %c0_674] : memref<25x20x128xf32, #tpu.memory_space<vmem>>, vector<1x20x128xf32>
    %1117 = vector.shape_cast %1116 : vector<1x20x128xf32> to vector<20x128xf32>
    %1118 = vector.shape_cast %1115 : vector<20x128xf32> to vector<1x20x128xf32>
    tpu.vector_store %arg3[%c15_672, %c0_673, %c0_674], %1118 {strides = array<i32>} : memref<25x20x128xf32, #tpu.memory_space<vmem>>, vector<1x20x128xf32>,
    %1119 = math.tanh %1110 : vector<20x128xf32>
    %c16_675 = arith.constant 16 : index
    %c0_676 = arith.constant 0 : index
    %c0_677 = arith.constant 0 : index
    %1120 = vector.load %arg3[%c16_675, %c0_676, %c0_677] : memref<25x20x128xf32, #tpu.memory_space<vmem>>, vector<1x20x128xf32>
    %1121 = vector.shape_cast %1120 : vector<1x20x128xf32> to vector<20x128xf32>
    %1122 = vector.shape_cast %1119 : vector<20x128xf32> to vector<1x20x128xf32>
    tpu.vector_store %arg3[%c16_675, %c0_676, %c0_677], %1122 {strides = array<i32>} : memref<25x20x128xf32, #tpu.memory_space<vmem>>, vector<1x20x128xf32>,
    %1123 = math.tanh %1114 : vector<20x128xf32>
    %c17_678 = arith.constant 17 : index
    %c0_679 = arith.constant 0 : index
    %c0_680 = arith.constant 0 : index
    %1124 = vector.load %arg3[%c17_678, %c0_679, %c0_680] : memref<25x20x128xf32, #tpu.memory_space<vmem>>, vector<1x20x128xf32>
    %1125 = vector.shape_cast %1124 : vector<1x20x128xf32> to vector<20x128xf32>
    %1126 = vector.shape_cast %1123 : vector<20x128xf32> to vector<1x20x128xf32>
    tpu.vector_store %arg3[%c17_678, %c0_679, %c0_680], %1126 {strides = array<i32>} : memref<25x20x128xf32, #tpu.memory_space<vmem>>, vector<1x20x128xf32>,
    %1127 = math.tanh %1096 : vector<20x128xf32>
    %c18_681 = arith.constant 18 : index
    %c0_682 = arith.constant 0 : index
    %c0_683 = arith.constant 0 : index
    %1128 = vector.load %arg3[%c18_681, %c0_682, %c0_683] : memref<25x20x128xf32, #tpu.memory_space<vmem>>, vector<1x20x128xf32>
    %1129 = vector.shape_cast %1128 : vector<1x20x128xf32> to vector<20x128xf32>
    %1130 = vector.shape_cast %1127 : vector<20x128xf32> to vector<1x20x128xf32>
    tpu.vector_store %arg3[%c18_681, %c0_682, %c0_683], %1130 {strides = array<i32>} : memref<25x20x128xf32, #tpu.memory_space<vmem>>, vector<1x20x128xf32>,
    %1131 = math.tanh %1100 : vector<20x128xf32>
    %c19 = arith.constant 19 : index
    %c0_684 = arith.constant 0 : index
    %c0_685 = arith.constant 0 : index
    %1132 = vector.load %arg3[%c19, %c0_684, %c0_685] : memref<25x20x128xf32, #tpu.memory_space<vmem>>, vector<1x20x128xf32>
    %1133 = vector.shape_cast %1132 : vector<1x20x128xf32> to vector<20x128xf32>
    %1134 = vector.shape_cast %1131 : vector<20x128xf32> to vector<1x20x128xf32>
    tpu.vector_store %arg3[%c19, %c0_684, %c0_685], %1134 {strides = array<i32>} : memref<25x20x128xf32, #tpu.memory_space<vmem>>, vector<1x20x128xf32>,
    %1135 = vector.broadcast %48 : f32 to vector<20x128xf32>
    %1136 = vector.broadcast %48 : f32 to vector<20x128xf32>
    %1137 = vector.broadcast %48 : f32 to vector<20x128xf32>
    %1138 = vector.broadcast %48 : f32 to vector<20x128xf32>
    %1139 = vector.broadcast %48 : f32 to vector<20x128xf32>
    %c0_686 = arith.constant 0 : index
    %c0_687 = arith.constant 0 : index
    %c0_688 = arith.constant 0 : index
    %1140 = vector.load %arg4[%c0_686, %c0_687, %c0_688] : memref<15x20x128xf32, #tpu.memory_space<vmem>>, vector<1x20x128xf32>
    %1141 = vector.shape_cast %1140 : vector<1x20x128xf32> to vector<20x128xf32>
    %c4_689 = arith.constant 4 : index
    %c0_690 = arith.constant 0 : index
    %1142 = memref.load %arg1[%c4_689, %c0_690] : memref<21x13xf32, #tpu.memory_space<smem>>
    %1143 = vector.broadcast %1142 : f32 to vector<20x128xf32>
    %1144 = arith.mulf %1141, %1143 : vector<20x128xf32>
    %1145 = arith.addf %1135, %1144 : vector<20x128xf32>
    %c4_691 = arith.constant 4 : index
    %c1_692 = arith.constant 1 : index
    %1146 = memref.load %arg1[%c4_691, %c1_692] : memref<21x13xf32, #tpu.memory_space<smem>>
    %1147 = vector.broadcast %1146 : f32 to vector<20x128xf32>
    %1148 = arith.mulf %1141, %1147 : vector<20x128xf32>
    %1149 = arith.addf %1136, %1148 : vector<20x128xf32>
    %c4_693 = arith.constant 4 : index
    %c2_694 = arith.constant 2 : index
    %1150 = memref.load %arg1[%c4_693, %c2_694] : memref<21x13xf32, #tpu.memory_space<smem>>
    %1151 = vector.broadcast %1150 : f32 to vector<20x128xf32>
    %1152 = arith.mulf %1141, %1151 : vector<20x128xf32>
    %1153 = arith.addf %1137, %1152 : vector<20x128xf32>
    %c4_695 = arith.constant 4 : index
    %c3_696 = arith.constant 3 : index
    %1154 = memref.load %arg1[%c4_695, %c3_696] : memref<21x13xf32, #tpu.memory_space<smem>>
    %1155 = vector.broadcast %1154 : f32 to vector<20x128xf32>
    %1156 = arith.mulf %1141, %1155 : vector<20x128xf32>
    %1157 = arith.addf %1138, %1156 : vector<20x128xf32>
    %c4_697 = arith.constant 4 : index
    %c4_698 = arith.constant 4 : index
    %1158 = memref.load %arg1[%c4_697, %c4_698] : memref<21x13xf32, #tpu.memory_space<smem>>
    %1159 = vector.broadcast %1158 : f32 to vector<20x128xf32>
    %1160 = arith.mulf %1141, %1159 : vector<20x128xf32>
    %1161 = arith.addf %1139, %1160 : vector<20x128xf32>
    %c1_699 = arith.constant 1 : index
    %c0_700 = arith.constant 0 : index
    %c0_701 = arith.constant 0 : index
    %1162 = vector.load %arg4[%c1_699, %c0_700, %c0_701] : memref<15x20x128xf32, #tpu.memory_space<vmem>>, vector<1x20x128xf32>
    %1163 = vector.shape_cast %1162 : vector<1x20x128xf32> to vector<20x128xf32>
    %c4_702 = arith.constant 4 : index
    %c5_703 = arith.constant 5 : index
    %1164 = memref.load %arg1[%c4_702, %c5_703] : memref<21x13xf32, #tpu.memory_space<smem>>
    %1165 = vector.broadcast %1164 : f32 to vector<20x128xf32>
    %1166 = arith.mulf %1163, %1165 : vector<20x128xf32>
    %1167 = arith.addf %1145, %1166 : vector<20x128xf32>
    %c4_704 = arith.constant 4 : index
    %c6_705 = arith.constant 6 : index
    %1168 = memref.load %arg1[%c4_704, %c6_705] : memref<21x13xf32, #tpu.memory_space<smem>>
    %1169 = vector.broadcast %1168 : f32 to vector<20x128xf32>
    %1170 = arith.mulf %1163, %1169 : vector<20x128xf32>
    %1171 = arith.addf %1149, %1170 : vector<20x128xf32>
    %c4_706 = arith.constant 4 : index
    %c7_707 = arith.constant 7 : index
    %1172 = memref.load %arg1[%c4_706, %c7_707] : memref<21x13xf32, #tpu.memory_space<smem>>
    %1173 = vector.broadcast %1172 : f32 to vector<20x128xf32>
    %1174 = arith.mulf %1163, %1173 : vector<20x128xf32>
    %1175 = arith.addf %1153, %1174 : vector<20x128xf32>
    %c4_708 = arith.constant 4 : index
    %c8_709 = arith.constant 8 : index
    %1176 = memref.load %arg1[%c4_708, %c8_709] : memref<21x13xf32, #tpu.memory_space<smem>>
    %1177 = vector.broadcast %1176 : f32 to vector<20x128xf32>
    %1178 = arith.mulf %1163, %1177 : vector<20x128xf32>
    %1179 = arith.addf %1157, %1178 : vector<20x128xf32>
    %c4_710 = arith.constant 4 : index
    %c9_711 = arith.constant 9 : index
    %1180 = memref.load %arg1[%c4_710, %c9_711] : memref<21x13xf32, #tpu.memory_space<smem>>
    %1181 = vector.broadcast %1180 : f32 to vector<20x128xf32>
    %1182 = arith.mulf %1163, %1181 : vector<20x128xf32>
    %1183 = arith.addf %1161, %1182 : vector<20x128xf32>
    %c2_712 = arith.constant 2 : index
    %c0_713 = arith.constant 0 : index
    %c0_714 = arith.constant 0 : index
    %1184 = vector.load %arg4[%c2_712, %c0_713, %c0_714] : memref<15x20x128xf32, #tpu.memory_space<vmem>>, vector<1x20x128xf32>
    %1185 = vector.shape_cast %1184 : vector<1x20x128xf32> to vector<20x128xf32>
    %c4_715 = arith.constant 4 : index
    %c10_716 = arith.constant 10 : index
    %1186 = memref.load %arg1[%c4_715, %c10_716] : memref<21x13xf32, #tpu.memory_space<smem>>
    %1187 = vector.broadcast %1186 : f32 to vector<20x128xf32>
    %1188 = arith.mulf %1185, %1187 : vector<20x128xf32>
    %1189 = arith.addf %1167, %1188 : vector<20x128xf32>
    %c4_717 = arith.constant 4 : index
    %c11_718 = arith.constant 11 : index
    %1190 = memref.load %arg1[%c4_717, %c11_718] : memref<21x13xf32, #tpu.memory_space<smem>>
    %1191 = vector.broadcast %1190 : f32 to vector<20x128xf32>
    %1192 = arith.mulf %1185, %1191 : vector<20x128xf32>
    %1193 = arith.addf %1171, %1192 : vector<20x128xf32>
    %c4_719 = arith.constant 4 : index
    %c12_720 = arith.constant 12 : index
    %1194 = memref.load %arg1[%c4_719, %c12_720] : memref<21x13xf32, #tpu.memory_space<smem>>
    %1195 = vector.broadcast %1194 : f32 to vector<20x128xf32>
    %1196 = arith.mulf %1185, %1195 : vector<20x128xf32>
    %1197 = arith.addf %1175, %1196 : vector<20x128xf32>
    %c3_721 = arith.constant 3 : index
    %c0_722 = arith.constant 0 : index
    %c0_723 = arith.constant 0 : index
    %1198 = vector.load %arg4[%c3_721, %c0_722, %c0_723] : memref<15x20x128xf32, #tpu.memory_space<vmem>>, vector<1x20x128xf32>
    %1199 = vector.shape_cast %1198 : vector<1x20x128xf32> to vector<20x128xf32>
    %c9_724 = arith.constant 9 : index
    %c0_725 = arith.constant 0 : index
    %1200 = memref.load %arg1[%c9_724, %c0_725] : memref<21x13xf32, #tpu.memory_space<smem>>
    %1201 = vector.broadcast %1200 : f32 to vector<20x128xf32>
    %1202 = arith.mulf %1199, %1201 : vector<20x128xf32>
    %1203 = arith.addf %1189, %1202 : vector<20x128xf32>
    %c9_726 = arith.constant 9 : index
    %c1_727 = arith.constant 1 : index
    %1204 = memref.load %arg1[%c9_726, %c1_727] : memref<21x13xf32, #tpu.memory_space<smem>>
    %1205 = vector.broadcast %1204 : f32 to vector<20x128xf32>
    %1206 = arith.mulf %1199, %1205 : vector<20x128xf32>
    %1207 = arith.addf %1193, %1206 : vector<20x128xf32>
    %c9_728 = arith.constant 9 : index
    %c2_729 = arith.constant 2 : index
    %1208 = memref.load %arg1[%c9_728, %c2_729] : memref<21x13xf32, #tpu.memory_space<smem>>
    %1209 = vector.broadcast %1208 : f32 to vector<20x128xf32>
    %1210 = arith.mulf %1199, %1209 : vector<20x128xf32>
    %1211 = arith.addf %1197, %1210 : vector<20x128xf32>
    %c9_730 = arith.constant 9 : index
    %c3_731 = arith.constant 3 : index
    %1212 = memref.load %arg1[%c9_730, %c3_731] : memref<21x13xf32, #tpu.memory_space<smem>>
    %1213 = vector.broadcast %1212 : f32 to vector<20x128xf32>
    %1214 = arith.mulf %1199, %1213 : vector<20x128xf32>
    %1215 = arith.addf %1179, %1214 : vector<20x128xf32>
    %c9_732 = arith.constant 9 : index
    %c4_733 = arith.constant 4 : index
    %1216 = memref.load %arg1[%c9_732, %c4_733] : memref<21x13xf32, #tpu.memory_space<smem>>
    %1217 = vector.broadcast %1216 : f32 to vector<20x128xf32>
    %1218 = arith.mulf %1199, %1217 : vector<20x128xf32>
    %1219 = arith.addf %1183, %1218 : vector<20x128xf32>
    %c4_734 = arith.constant 4 : index
    %c0_735 = arith.constant 0 : index
    %c0_736 = arith.constant 0 : index
    %1220 = vector.load %arg4[%c4_734, %c0_735, %c0_736] : memref<15x20x128xf32, #tpu.memory_space<vmem>>, vector<1x20x128xf32>
    %1221 = vector.shape_cast %1220 : vector<1x20x128xf32> to vector<20x128xf32>
    %c9_737 = arith.constant 9 : index
    %c5_738 = arith.constant 5 : index
    %1222 = memref.load %arg1[%c9_737, %c5_738] : memref<21x13xf32, #tpu.memory_space<smem>>
    %1223 = vector.broadcast %1222 : f32 to vector<20x128xf32>
    %1224 = arith.mulf %1221, %1223 : vector<20x128xf32>
    %1225 = arith.addf %1203, %1224 : vector<20x128xf32>
    %c9_739 = arith.constant 9 : index
    %c6_740 = arith.constant 6 : index
    %1226 = memref.load %arg1[%c9_739, %c6_740] : memref<21x13xf32, #tpu.memory_space<smem>>
    %1227 = vector.broadcast %1226 : f32 to vector<20x128xf32>
    %1228 = arith.mulf %1221, %1227 : vector<20x128xf32>
    %1229 = arith.addf %1207, %1228 : vector<20x128xf32>
    %c9_741 = arith.constant 9 : index
    %c7_742 = arith.constant 7 : index
    %1230 = memref.load %arg1[%c9_741, %c7_742] : memref<21x13xf32, #tpu.memory_space<smem>>
    %1231 = vector.broadcast %1230 : f32 to vector<20x128xf32>
    %1232 = arith.mulf %1221, %1231 : vector<20x128xf32>
    %1233 = arith.addf %1211, %1232 : vector<20x128xf32>
    %c9_743 = arith.constant 9 : index
    %c8_744 = arith.constant 8 : index
    %1234 = memref.load %arg1[%c9_743, %c8_744] : memref<21x13xf32, #tpu.memory_space<smem>>
    %1235 = vector.broadcast %1234 : f32 to vector<20x128xf32>
    %1236 = arith.mulf %1221, %1235 : vector<20x128xf32>
    %1237 = arith.addf %1215, %1236 : vector<20x128xf32>
    %c9_745 = arith.constant 9 : index
    %c9_746 = arith.constant 9 : index
    %1238 = memref.load %arg1[%c9_745, %c9_746] : memref<21x13xf32, #tpu.memory_space<smem>>
    %1239 = vector.broadcast %1238 : f32 to vector<20x128xf32>
    %1240 = arith.mulf %1221, %1239 : vector<20x128xf32>
    %1241 = arith.addf %1219, %1240 : vector<20x128xf32>
    %c5_747 = arith.constant 5 : index
    %c0_748 = arith.constant 0 : index
    %c0_749 = arith.constant 0 : index
    %1242 = vector.load %arg4[%c5_747, %c0_748, %c0_749] : memref<15x20x128xf32, #tpu.memory_space<vmem>>, vector<1x20x128xf32>
    %1243 = vector.shape_cast %1242 : vector<1x20x128xf32> to vector<20x128xf32>
    %c9_750 = arith.constant 9 : index
    %c10_751 = arith.constant 10 : index
    %1244 = memref.load %arg1[%c9_750, %c10_751] : memref<21x13xf32, #tpu.memory_space<smem>>
    %1245 = vector.broadcast %1244 : f32 to vector<20x128xf32>
    %1246 = arith.mulf %1243, %1245 : vector<20x128xf32>
    %1247 = arith.addf %1225, %1246 : vector<20x128xf32>
    %c9_752 = arith.constant 9 : index
    %c11_753 = arith.constant 11 : index
    %1248 = memref.load %arg1[%c9_752, %c11_753] : memref<21x13xf32, #tpu.memory_space<smem>>
    %1249 = vector.broadcast %1248 : f32 to vector<20x128xf32>
    %1250 = arith.mulf %1243, %1249 : vector<20x128xf32>
    %1251 = arith.addf %1229, %1250 : vector<20x128xf32>
    %c9_754 = arith.constant 9 : index
    %c12_755 = arith.constant 12 : index
    %1252 = memref.load %arg1[%c9_754, %c12_755] : memref<21x13xf32, #tpu.memory_space<smem>>
    %1253 = vector.broadcast %1252 : f32 to vector<20x128xf32>
    %1254 = arith.mulf %1243, %1253 : vector<20x128xf32>
    %1255 = arith.addf %1233, %1254 : vector<20x128xf32>
    %c6_756 = arith.constant 6 : index
    %c0_757 = arith.constant 0 : index
    %c0_758 = arith.constant 0 : index
    %1256 = vector.load %arg4[%c6_756, %c0_757, %c0_758] : memref<15x20x128xf32, #tpu.memory_space<vmem>>, vector<1x20x128xf32>
    %1257 = vector.shape_cast %1256 : vector<1x20x128xf32> to vector<20x128xf32>
    %c14_759 = arith.constant 14 : index
    %c0_760 = arith.constant 0 : index
    %1258 = memref.load %arg1[%c14_759, %c0_760] : memref<21x13xf32, #tpu.memory_space<smem>>
    %1259 = vector.broadcast %1258 : f32 to vector<20x128xf32>
    %1260 = arith.mulf %1257, %1259 : vector<20x128xf32>
    %1261 = arith.addf %1247, %1260 : vector<20x128xf32>
    %c14_761 = arith.constant 14 : index
    %c1_762 = arith.constant 1 : index
    %1262 = memref.load %arg1[%c14_761, %c1_762] : memref<21x13xf32, #tpu.memory_space<smem>>
    %1263 = vector.broadcast %1262 : f32 to vector<20x128xf32>
    %1264 = arith.mulf %1257, %1263 : vector<20x128xf32>
    %1265 = arith.addf %1251, %1264 : vector<20x128xf32>
    %c14_763 = arith.constant 14 : index
    %c2_764 = arith.constant 2 : index
    %1266 = memref.load %arg1[%c14_763, %c2_764] : memref<21x13xf32, #tpu.memory_space<smem>>
    %1267 = vector.broadcast %1266 : f32 to vector<20x128xf32>
    %1268 = arith.mulf %1257, %1267 : vector<20x128xf32>
    %1269 = arith.addf %1255, %1268 : vector<20x128xf32>
    %c14_765 = arith.constant 14 : index
    %c3_766 = arith.constant 3 : index
    %1270 = memref.load %arg1[%c14_765, %c3_766] : memref<21x13xf32, #tpu.memory_space<smem>>
    %1271 = vector.broadcast %1270 : f32 to vector<20x128xf32>
    %1272 = arith.mulf %1257, %1271 : vector<20x128xf32>
    %1273 = arith.addf %1237, %1272 : vector<20x128xf32>
    %c14_767 = arith.constant 14 : index
    %c4_768 = arith.constant 4 : index
    %1274 = memref.load %arg1[%c14_767, %c4_768] : memref<21x13xf32, #tpu.memory_space<smem>>
    %1275 = vector.broadcast %1274 : f32 to vector<20x128xf32>
    %1276 = arith.mulf %1257, %1275 : vector<20x128xf32>
    %1277 = arith.addf %1241, %1276 : vector<20x128xf32>
    %c7_769 = arith.constant 7 : index
    %c0_770 = arith.constant 0 : index
    %c0_771 = arith.constant 0 : index
    %1278 = vector.load %arg4[%c7_769, %c0_770, %c0_771] : memref<15x20x128xf32, #tpu.memory_space<vmem>>, vector<1x20x128xf32>
    %1279 = vector.shape_cast %1278 : vector<1x20x128xf32> to vector<20x128xf32>
    %c14_772 = arith.constant 14 : index
    %c5_773 = arith.constant 5 : index
    %1280 = memref.load %arg1[%c14_772, %c5_773] : memref<21x13xf32, #tpu.memory_space<smem>>
    %1281 = vector.broadcast %1280 : f32 to vector<20x128xf32>
    %1282 = arith.mulf %1279, %1281 : vector<20x128xf32>
    %1283 = arith.addf %1261, %1282 : vector<20x128xf32>
    %c14_774 = arith.constant 14 : index
    %c6_775 = arith.constant 6 : index
    %1284 = memref.load %arg1[%c14_774, %c6_775] : memref<21x13xf32, #tpu.memory_space<smem>>
    %1285 = vector.broadcast %1284 : f32 to vector<20x128xf32>
    %1286 = arith.mulf %1279, %1285 : vector<20x128xf32>
    %1287 = arith.addf %1265, %1286 : vector<20x128xf32>
    %c14_776 = arith.constant 14 : index
    %c7_777 = arith.constant 7 : index
    %1288 = memref.load %arg1[%c14_776, %c7_777] : memref<21x13xf32, #tpu.memory_space<smem>>
    %1289 = vector.broadcast %1288 : f32 to vector<20x128xf32>
    %1290 = arith.mulf %1279, %1289 : vector<20x128xf32>
    %1291 = arith.addf %1269, %1290 : vector<20x128xf32>
    %c14_778 = arith.constant 14 : index
    %c8_779 = arith.constant 8 : index
    %1292 = memref.load %arg1[%c14_778, %c8_779] : memref<21x13xf32, #tpu.memory_space<smem>>
    %1293 = vector.broadcast %1292 : f32 to vector<20x128xf32>
    %1294 = arith.mulf %1279, %1293 : vector<20x128xf32>
    %1295 = arith.addf %1273, %1294 : vector<20x128xf32>
    %c14_780 = arith.constant 14 : index
    %c9_781 = arith.constant 9 : index
    %1296 = memref.load %arg1[%c14_780, %c9_781] : memref<21x13xf32, #tpu.memory_space<smem>>
    %1297 = vector.broadcast %1296 : f32 to vector<20x128xf32>
    %1298 = arith.mulf %1279, %1297 : vector<20x128xf32>
    %1299 = arith.addf %1277, %1298 : vector<20x128xf32>
    %c8_782 = arith.constant 8 : index
    %c0_783 = arith.constant 0 : index
    %c0_784 = arith.constant 0 : index
    %1300 = vector.load %arg4[%c8_782, %c0_783, %c0_784] : memref<15x20x128xf32, #tpu.memory_space<vmem>>, vector<1x20x128xf32>
    %1301 = vector.shape_cast %1300 : vector<1x20x128xf32> to vector<20x128xf32>
    %c14_785 = arith.constant 14 : index
    %c10_786 = arith.constant 10 : index
    %1302 = memref.load %arg1[%c14_785, %c10_786] : memref<21x13xf32, #tpu.memory_space<smem>>
    %1303 = vector.broadcast %1302 : f32 to vector<20x128xf32>
    %1304 = arith.mulf %1301, %1303 : vector<20x128xf32>
    %1305 = arith.addf %1283, %1304 : vector<20x128xf32>
    %c14_787 = arith.constant 14 : index
    %c11_788 = arith.constant 11 : index
    %1306 = memref.load %arg1[%c14_787, %c11_788] : memref<21x13xf32, #tpu.memory_space<smem>>
    %1307 = vector.broadcast %1306 : f32 to vector<20x128xf32>
    %1308 = arith.mulf %1301, %1307 : vector<20x128xf32>
    %1309 = arith.addf %1287, %1308 : vector<20x128xf32>
    %c14_789 = arith.constant 14 : index
    %c12_790 = arith.constant 12 : index
    %1310 = memref.load %arg1[%c14_789, %c12_790] : memref<21x13xf32, #tpu.memory_space<smem>>
    %1311 = vector.broadcast %1310 : f32 to vector<20x128xf32>
    %1312 = arith.mulf %1301, %1311 : vector<20x128xf32>
    %1313 = arith.addf %1291, %1312 : vector<20x128xf32>
    %c9_791 = arith.constant 9 : index
    %c0_792 = arith.constant 0 : index
    %c0_793 = arith.constant 0 : index
    %1314 = vector.load %arg4[%c9_791, %c0_792, %c0_793] : memref<15x20x128xf32, #tpu.memory_space<vmem>>, vector<1x20x128xf32>
    %1315 = vector.shape_cast %1314 : vector<1x20x128xf32> to vector<20x128xf32>
    %c19_794 = arith.constant 19 : index
    %c0_795 = arith.constant 0 : index
    %1316 = memref.load %arg1[%c19_794, %c0_795] : memref<21x13xf32, #tpu.memory_space<smem>>
    %1317 = vector.broadcast %1316 : f32 to vector<20x128xf32>
    %1318 = arith.mulf %1315, %1317 : vector<20x128xf32>
    %1319 = arith.addf %1305, %1318 : vector<20x128xf32>
    %c19_796 = arith.constant 19 : index
    %c1_797 = arith.constant 1 : index
    %1320 = memref.load %arg1[%c19_796, %c1_797] : memref<21x13xf32, #tpu.memory_space<smem>>
    %1321 = vector.broadcast %1320 : f32 to vector<20x128xf32>
    %1322 = arith.mulf %1315, %1321 : vector<20x128xf32>
    %1323 = arith.addf %1309, %1322 : vector<20x128xf32>
    %c19_798 = arith.constant 19 : index
    %c2_799 = arith.constant 2 : index
    %1324 = memref.load %arg1[%c19_798, %c2_799] : memref<21x13xf32, #tpu.memory_space<smem>>
    %1325 = vector.broadcast %1324 : f32 to vector<20x128xf32>
    %1326 = arith.mulf %1315, %1325 : vector<20x128xf32>
    %1327 = arith.addf %1313, %1326 : vector<20x128xf32>
    %c19_800 = arith.constant 19 : index
    %c3_801 = arith.constant 3 : index
    %1328 = memref.load %arg1[%c19_800, %c3_801] : memref<21x13xf32, #tpu.memory_space<smem>>
    %1329 = vector.broadcast %1328 : f32 to vector<20x128xf32>
    %1330 = arith.mulf %1315, %1329 : vector<20x128xf32>
    %1331 = arith.addf %1295, %1330 : vector<20x128xf32>
    %c19_802 = arith.constant 19 : index
    %c4_803 = arith.constant 4 : index
    %1332 = memref.load %arg1[%c19_802, %c4_803] : memref<21x13xf32, #tpu.memory_space<smem>>
    %1333 = vector.broadcast %1332 : f32 to vector<20x128xf32>
    %1334 = arith.mulf %1315, %1333 : vector<20x128xf32>
    %1335 = arith.addf %1299, %1334 : vector<20x128xf32>
    %c10_804 = arith.constant 10 : index
    %c0_805 = arith.constant 0 : index
    %c0_806 = arith.constant 0 : index
    %1336 = vector.load %arg4[%c10_804, %c0_805, %c0_806] : memref<15x20x128xf32, #tpu.memory_space<vmem>>, vector<1x20x128xf32>
    %1337 = vector.shape_cast %1336 : vector<1x20x128xf32> to vector<20x128xf32>
    %c19_807 = arith.constant 19 : index
    %c5_808 = arith.constant 5 : index
    %1338 = memref.load %arg1[%c19_807, %c5_808] : memref<21x13xf32, #tpu.memory_space<smem>>
    %1339 = vector.broadcast %1338 : f32 to vector<20x128xf32>
    %1340 = arith.mulf %1337, %1339 : vector<20x128xf32>
    %1341 = arith.addf %1319, %1340 : vector<20x128xf32>
    %c19_809 = arith.constant 19 : index
    %c6_810 = arith.constant 6 : index
    %1342 = memref.load %arg1[%c19_809, %c6_810] : memref<21x13xf32, #tpu.memory_space<smem>>
    %1343 = vector.broadcast %1342 : f32 to vector<20x128xf32>
    %1344 = arith.mulf %1337, %1343 : vector<20x128xf32>
    %1345 = arith.addf %1323, %1344 : vector<20x128xf32>
    %c19_811 = arith.constant 19 : index
    %c7_812 = arith.constant 7 : index
    %1346 = memref.load %arg1[%c19_811, %c7_812] : memref<21x13xf32, #tpu.memory_space<smem>>
    %1347 = vector.broadcast %1346 : f32 to vector<20x128xf32>
    %1348 = arith.mulf %1337, %1347 : vector<20x128xf32>
    %1349 = arith.addf %1327, %1348 : vector<20x128xf32>
    %c19_813 = arith.constant 19 : index
    %c8_814 = arith.constant 8 : index
    %1350 = memref.load %arg1[%c19_813, %c8_814] : memref<21x13xf32, #tpu.memory_space<smem>>
    %1351 = vector.broadcast %1350 : f32 to vector<20x128xf32>
    %1352 = arith.mulf %1337, %1351 : vector<20x128xf32>
    %1353 = arith.addf %1331, %1352 : vector<20x128xf32>
    %c19_815 = arith.constant 19 : index
    %c9_816 = arith.constant 9 : index
    %1354 = memref.load %arg1[%c19_815, %c9_816] : memref<21x13xf32, #tpu.memory_space<smem>>
    %1355 = vector.broadcast %1354 : f32 to vector<20x128xf32>
    %1356 = arith.mulf %1337, %1355 : vector<20x128xf32>
    %1357 = arith.addf %1335, %1356 : vector<20x128xf32>
    %c11_817 = arith.constant 11 : index
    %c0_818 = arith.constant 0 : index
    %c0_819 = arith.constant 0 : index
    %1358 = vector.load %arg4[%c11_817, %c0_818, %c0_819] : memref<15x20x128xf32, #tpu.memory_space<vmem>>, vector<1x20x128xf32>
    %1359 = vector.shape_cast %1358 : vector<1x20x128xf32> to vector<20x128xf32>
    %c19_820 = arith.constant 19 : index
    %c10_821 = arith.constant 10 : index
    %1360 = memref.load %arg1[%c19_820, %c10_821] : memref<21x13xf32, #tpu.memory_space<smem>>
    %1361 = vector.broadcast %1360 : f32 to vector<20x128xf32>
    %1362 = arith.mulf %1359, %1361 : vector<20x128xf32>
    %1363 = arith.addf %1341, %1362 : vector<20x128xf32>
    %c19_822 = arith.constant 19 : index
    %c11_823 = arith.constant 11 : index
    %1364 = memref.load %arg1[%c19_822, %c11_823] : memref<21x13xf32, #tpu.memory_space<smem>>
    %1365 = vector.broadcast %1364 : f32 to vector<20x128xf32>
    %1366 = arith.mulf %1359, %1365 : vector<20x128xf32>
    %1367 = arith.addf %1345, %1366 : vector<20x128xf32>
    %c19_824 = arith.constant 19 : index
    %c12_825 = arith.constant 12 : index
    %1368 = memref.load %arg1[%c19_824, %c12_825] : memref<21x13xf32, #tpu.memory_space<smem>>
    %1369 = vector.broadcast %1368 : f32 to vector<20x128xf32>
    %1370 = arith.mulf %1359, %1369 : vector<20x128xf32>
    %1371 = arith.addf %1349, %1370 : vector<20x128xf32>
    %1372 = math.tanh %1363 : vector<20x128xf32>
    %c20_826 = arith.constant 20 : index
    %c0_827 = arith.constant 0 : index
    %c0_828 = arith.constant 0 : index
    %1373 = vector.load %arg3[%c20_826, %c0_827, %c0_828] : memref<25x20x128xf32, #tpu.memory_space<vmem>>, vector<1x20x128xf32>
    %1374 = vector.shape_cast %1373 : vector<1x20x128xf32> to vector<20x128xf32>
    %1375 = vector.shape_cast %1372 : vector<20x128xf32> to vector<1x20x128xf32>
    tpu.vector_store %arg3[%c20_826, %c0_827, %c0_828], %1375 {strides = array<i32>} : memref<25x20x128xf32, #tpu.memory_space<vmem>>, vector<1x20x128xf32>,
    %1376 = math.tanh %1367 : vector<20x128xf32>
    %c21 = arith.constant 21 : index
    %c0_829 = arith.constant 0 : index
    %c0_830 = arith.constant 0 : index
    %1377 = vector.load %arg3[%c21, %c0_829, %c0_830] : memref<25x20x128xf32, #tpu.memory_space<vmem>>, vector<1x20x128xf32>
    %1378 = vector.shape_cast %1377 : vector<1x20x128xf32> to vector<20x128xf32>
    %1379 = vector.shape_cast %1376 : vector<20x128xf32> to vector<1x20x128xf32>
    tpu.vector_store %arg3[%c21, %c0_829, %c0_830], %1379 {strides = array<i32>} : memref<25x20x128xf32, #tpu.memory_space<vmem>>, vector<1x20x128xf32>,
    %1380 = math.tanh %1371 : vector<20x128xf32>
    %c22 = arith.constant 22 : index
    %c0_831 = arith.constant 0 : index
    %c0_832 = arith.constant 0 : index
    %1381 = vector.load %arg3[%c22, %c0_831, %c0_832] : memref<25x20x128xf32, #tpu.memory_space<vmem>>, vector<1x20x128xf32>
    %1382 = vector.shape_cast %1381 : vector<1x20x128xf32> to vector<20x128xf32>
    %1383 = vector.shape_cast %1380 : vector<20x128xf32> to vector<1x20x128xf32>
    tpu.vector_store %arg3[%c22, %c0_831, %c0_832], %1383 {strides = array<i32>} : memref<25x20x128xf32, #tpu.memory_space<vmem>>, vector<1x20x128xf32>,
    %1384 = math.tanh %1353 : vector<20x128xf32>
    %c23 = arith.constant 23 : index
    %c0_833 = arith.constant 0 : index
    %c0_834 = arith.constant 0 : index
    %1385 = vector.load %arg3[%c23, %c0_833, %c0_834] : memref<25x20x128xf32, #tpu.memory_space<vmem>>, vector<1x20x128xf32>
    %1386 = vector.shape_cast %1385 : vector<1x20x128xf32> to vector<20x128xf32>
    %1387 = vector.shape_cast %1384 : vector<20x128xf32> to vector<1x20x128xf32>
    tpu.vector_store %arg3[%c23, %c0_833, %c0_834], %1387 {strides = array<i32>} : memref<25x20x128xf32, #tpu.memory_space<vmem>>, vector<1x20x128xf32>,
    %1388 = math.tanh %1357 : vector<20x128xf32>
    %c24 = arith.constant 24 : index
    %c0_835 = arith.constant 0 : index
    %c0_836 = arith.constant 0 : index
    %1389 = vector.load %arg3[%c24, %c0_835, %c0_836] : memref<25x20x128xf32, #tpu.memory_space<vmem>>, vector<1x20x128xf32>
    %1390 = vector.shape_cast %1389 : vector<1x20x128xf32> to vector<20x128xf32>
    %1391 = vector.shape_cast %1388 : vector<20x128xf32> to vector<1x20x128xf32>
    tpu.vector_store %arg3[%c24, %c0_835, %c0_836], %1391 {strides = array<i32>} : memref<25x20x128xf32, #tpu.memory_space<vmem>>, vector<1x20x128xf32>,
    return
  }
}

</mosaic_0001>

<llo_original>
// kernel: conv_transpose_tanh.1
$region0: #{conv_transpose_tanh.1}
  #allocation0 [shape = 'u32[]', space=smem, size = 0x4, offset = 0x4, fixed_abs, tag = 'smem constant byte address 0x4 - core index']
  #allocation1 [shape = 'u32[144,128]{1,0:T(1,128)}', space=vmem, size = 0x12000, scoped, tag = 'internal scratch']
  #allocation2 [shape = 'f32[15,20,128]{2,1,0:T(8,128)}', space=vmem, size = 0x2d000, scoped, tag = 'scratch operand']
  #allocation3 [shape = 'f32[1,1]{1,0:T(1,128)S(6)}', space=smem, size = 0x200, scoped, tag = 'scoped memory for conv_transpose_tanh.1']
  %s0 = inlined_call_operand.hbm [shape: f32[16,16], index: 0, kind: input, shape index: {}]
  %s1 = inlined_call_operand.vmem [shape: f32[21,13], index: 1, kind: input, shape index: {}]
  %s2 = inlined_call_operand.<no memory space> [shape: f32[1,1], index: 2, kind: input, shape index: {}]
  %s3 = inlined_call_operand.vmem [shape: f32[25,20,128], index: 3, kind: output, shape index: {}]
  %s4 = sld [smem:[#allocation0]]
  $region30: #{conv_transpose_tanh.1} parent=0
    _
  %s6 = ssub.s32 1, %s4
  %s7 = scalar_select 0, %s6, %s4
  %8 = sst [smem:[#allocation3]] %s2
  $region1: #{conv_transpose_tanh.1} parent=0
    #allocation4 [shape = 'u8[8192]{0}', space=vmem, size = 0x2000, scoped, tag = 'input window, operand 0, single buffered']
    #allocation5 [shape = 's32[1]{0}', space=sflag, size = 0x4, scoped, tag = 'scoped memory for conv_transpose_tanh.1']
    #allocation6 [shape = 's32[1]{0}', space=sflag, size = 0x4, scoped, tag = 'scoped memory for conv_transpose_tanh.1']
    #allocation7 [shape = 'u8[12288]{0}', space=smem, size = 0x3000, scoped, tag = 'input window, operand 1, single buffered']
    %9 = vsyncpa [#allocation5], 0
    %10 = vsyncpa [#allocation6], 0
    // Predicated region
    $region2: #{conv_transpose_tanh.1} parent=1 // pred_check
      _
    $region3: #{conv_transpose_tanh.1} parent=1 // pred_check_branch
      %12 = sbr.rel (0) target = $region5
    $region4: #{conv_transpose_tanh.1} parent=1 // pred_region
      %s14 = ssub.s32 256, 256
      %15 = vsyncadd [#allocation5], %s14
      %s16 = sshll.u32 [#allocation4], 4
      %s17 = int_to_ptr.vmem [resolvable:$true] %s16
      %22 = dma.hbm_to_vmem [thread:$0]  %s0, 256, %s17, [#allocation5], 128, 128, 8
    $region5: #{conv_transpose_tanh.1} parent=1 // pred_fallthru
      _
    // Predicated region
    $region6: #{conv_transpose_tanh.1} parent=1 // pred_check
      _
    $region7: #{conv_transpose_tanh.1} parent=1 // pred_check_branch
      %24 = sbr.rel (0) target = $region9
    $region8: #{conv_transpose_tanh.1} parent=1 // pred_region
      %s26 = ssub.s32 384, 384
      %27 = vsyncadd [#allocation6], %s26
      %s28 = sshll.u32 %s1, 4
      %s29 = int_to_ptr.vmem [resolvable:$true] %s28
      %34 = dma.vmem_to_smem %s29, 384, [#allocation7], [#allocation6], 128, 128, 8
    $region9: #{conv_transpose_tanh.1} parent=1 // pred_fallthru
      _
    // Predicated region
    $region10: #{conv_transpose_tanh.1} parent=1 // pred_check
      _
    $region11: #{conv_transpose_tanh.1} parent=1 // pred_check_branch
      %36 = sbr.rel (0) target = $region13
    $region12: #{conv_transpose_tanh.1} parent=1 // pred_region
      _
    $region13: #{conv_transpose_tanh.1} parent=1 // pred_fallthru
      _
    // Predicated region
    $region14: #{conv_transpose_tanh.1} parent=1 // pred_check
      _
    $region15: #{conv_transpose_tanh.1} parent=1 // pred_check_branch
      %38 = sbr.rel (0) target = $region17
    $region16: #{conv_transpose_tanh.1} parent=1 // pred_region
      %39 = dma.done [#allocation5], 256
    $region17: #{conv_transpose_tanh.1} parent=1 // pred_fallthru
      _
    // Predicated region
    $region18: #{conv_transpose_tanh.1} parent=1 // pred_check
      _
    $region19: #{conv_transpose_tanh.1} parent=1 // pred_check_branch
      %41 = sbr.rel (0) target = $region21
    $region20: #{conv_transpose_tanh.1} parent=1 // pred_region
      %42 = dma.done [#allocation6], 384
    $region21: #{conv_transpose_tanh.1} parent=1 // pred_fallthru
      _
    %43 = sfence
    %v44 = vld [vmem:[#allocation4] sm:$0xff]
    %v45 = vld [vmem:[#allocation4 + $0x8] sm:$0xff]
    %46 = vst [vmem:[#allocation2] sm:$0xff] 0.0
    %47 = vst [vmem:[#allocation2 + $0x8] sm:$0xff] 0.0
    %48 = vst [vmem:[#allocation2 + $0x10] sm:$0xf] 0.0
    %49 = vst [vmem:[#allocation2 + $0x18] sm:$0xff] 0.0
    %50 = vst [vmem:[#allocation2 + $0x20] sm:$0xff] 0.0
    %51 = vst [vmem:[#allocation2 + $0x28] sm:$0xf] 0.0
    %52 = vst [vmem:[#allocation2 + $0x30] sm:$0xff] 0.0
    %53 = vst [vmem:[#allocation2 + $0x38] sm:$0xff] 0.0
    %54 = vst [vmem:[#allocation2 + $0x40] sm:$0xf] 0.0
    %55 = vst [vmem:[#allocation2 + $0x48] sm:$0xff] 0.0
    %56 = vst [vmem:[#allocation2 + $0x50] sm:$0xff] 0.0
    %57 = vst [vmem:[#allocation2 + $0x58] sm:$0xf] 0.0
    %58 = vst [vmem:[#allocation2 + $0x60] sm:$0xff] 0.0
    %59 = vst [vmem:[#allocation2 + $0x68] sm:$0xff] 0.0
    %60 = vst [vmem:[#allocation2 + $0x70] sm:$0xf] 0.0
    %61 = vst [vmem:[#allocation2 + $0x78] sm:$0xff] 0.0
    %62 = vst [vmem:[#allocation2 + $0x80] sm:$0xff] 0.0
    %63 = vst [vmem:[#allocation2 + $0x88] sm:$0xf] 0.0
    %64 = vst [vmem:[#allocation2 + $0x90] sm:$0xff] 0.0
    %65 = vst [vmem:[#allocation2 + $0x98] sm:$0xff] 0.0
    %66 = vst [vmem:[#allocation2 + $0xa0] sm:$0xf] 0.0
    %67 = vst [vmem:[#allocation2 + $0xa8] sm:$0xff] 0.0
    %68 = vst [vmem:[#allocation2 + $0xb0] sm:$0xff] 0.0
    %69 = vst [vmem:[#allocation2 + $0xb8] sm:$0xf] 0.0
    %70 = vst [vmem:[#allocation2 + $0xc0] sm:$0xff] 0.0
    %71 = vst [vmem:[#allocation2 + $0xc8] sm:$0xff] 0.0
    %72 = vst [vmem:[#allocation2 + $0xd0] sm:$0xf] 0.0
    %73 = vst [vmem:[#allocation2 + $0xd8] sm:$0xff] 0.0
    %74 = vst [vmem:[#allocation2 + $0xe0] sm:$0xff] 0.0
    %75 = vst [vmem:[#allocation2 + $0xe8] sm:$0xf] 0.0
    %76 = vst [vmem:[#allocation2 + $0xf0] sm:$0xff] 0.0
    %77 = vst [vmem:[#allocation2 + $0xf8] sm:$0xff] 0.0
    %78 = vst [vmem:[#allocation2 + $0x100] sm:$0xf] 0.0
    %79 = vst [vmem:[#allocation2 + $0x108] sm:$0xff] 0.0
    %80 = vst [vmem:[#allocation2 + $0x110] sm:$0xff] 0.0
    %81 = vst [vmem:[#allocation2 + $0x118] sm:$0xf] 0.0
    %82 = vst [vmem:[#allocation2 + $0x120] sm:$0xff] 0.0
    %83 = vst [vmem:[#allocation2 + $0x128] sm:$0xff] 0.0
    %84 = vst [vmem:[#allocation2 + $0x130] sm:$0xf] 0.0
    %85 = vst [vmem:[#allocation2 + $0x138] sm:$0xff] 0.0
    %86 = vst [vmem:[#allocation2 + $0x140] sm:$0xff] 0.0
    %87 = vst [vmem:[#allocation2 + $0x148] sm:$0xf] 0.0
    %88 = vst [vmem:[#allocation2 + $0x150] sm:$0xff] 0.0
    %89 = vst [vmem:[#allocation2 + $0x158] sm:$0xff] 0.0
    %90 = vst [vmem:[#allocation2 + $0x160] sm:$0xf] 0.0
    %vm91 = vcmask 130048
    %92 = vst.msk [vmem:[#allocation2] sm:$0xff] %vm91, %v44
    %93 = vst.msk [vmem:[#allocation2 + $0x8] sm:$0xff] %vm91, %v45
    %96 = vrot.lane.b32.xlu0 %v44, 1
    %v97 = vpop.permute.xlu0 %96
    %98 = vrot.lane.b32.xlu0 %v45, 1
    %v99 = vpop.permute.xlu0 %98
    %s102 = scalar_lea.vmem [#allocation2], 24
    %vm103 = vcmask 138248
    %104 = vst.msk [vmem:[%s102] sm:$0xff] %vm103, %v97
    %105 = vst.msk [vmem:[%s102 + $0x8] sm:$0xff] %vm103, %v99
    %106 = vrot.lane.b32.xlu0 %v44, 2
    %v107 = vpop.permute.xlu0 %106
    %108 = vrot.lane.b32.xlu0 %v45, 2
    %v109 = vpop.permute.xlu0 %108
    %s112 = scalar_lea.vmem [#allocation2], 48
    %vm113 = vcmask 146448
    %114 = vst.msk [vmem:[%s112] sm:$0xff] %vm113, %v107
    %115 = vst.msk [vmem:[%s112 + $0x8] sm:$0xff] %vm113, %v109
    %s116 = scalar_lea.vmem [#allocation2], 72
    %117 = vst.msk [vmem:[%s116 + $0x1] sm:$0xff] %vm91, %v44
    %118 = vst.msk [vmem:[%s116 + $0x9] sm:$0xff] %vm91, %v45
    %s119 = scalar_lea.vmem [#allocation2], 96
    %120 = vst.msk [vmem:[%s119 + $0x1] sm:$0xff] %vm103, %v97
    %121 = vst.msk [vmem:[%s119 + $0x9] sm:$0xff] %vm103, %v99
    %s122 = scalar_lea.vmem [#allocation2], 120
    %123 = vst.msk [vmem:[%s122 + $0x1] sm:$0xff] %vm113, %v107
    %124 = vst.msk [vmem:[%s122 + $0x9] sm:$0xff] %vm113, %v109
    %s125 = scalar_lea.vmem [#allocation2], 144
    %126 = vst.msk [vmem:[%s125 + $0x2] sm:$0xff] %vm91, %v44
    %127 = vst.msk [vmem:[%s125 + $0xa] sm:$0xff] %vm91, %v45
    %s128 = scalar_lea.vmem [#allocation2], 168
    %129 = vst.msk [vmem:[%s128 + $0x2] sm:$0xff] %vm103, %v97
    %130 = vst.msk [vmem:[%s128 + $0xa] sm:$0xff] %vm103, %v99
    %s131 = scalar_lea.vmem [#allocation2], 192
    %132 = vst.msk [vmem:[%s131 + $0x2] sm:$0xff] %vm113, %v107
    %133 = vst.msk [vmem:[%s131 + $0xa] sm:$0xff] %vm113, %v109
    %s134 = scalar_lea.vmem [#allocation2], 216
    %135 = vst.msk [vmem:[%s134 + $0x3] sm:$0xff] %vm91, %v44
    %136 = vst.msk [vmem:[%s134 + $0xb] sm:$0xff] %vm91, %v45
    %s137 = scalar_lea.vmem [#allocation2], 240
    %138 = vst.msk [vmem:[%s137 + $0x3] sm:$0xff] %vm103, %v97
    %139 = vst.msk [vmem:[%s137 + $0xb] sm:$0xff] %vm103, %v99
    %s140 = scalar_lea.vmem [#allocation2], 264
    %141 = vst.msk [vmem:[%s140 + $0x3] sm:$0xff] %vm113, %v107
    %142 = vst.msk [vmem:[%s140 + $0xb] sm:$0xff] %vm113, %v109
    %s143 = scalar_lea.vmem [#allocation2], 288
    %144 = vst.msk [vmem:[%s143 + $0x4] sm:$0xff] %vm91, %v44
    %145 = vst.msk [vmem:[%s143 + $0xc] sm:$0xff] %vm91, %v45
    %s146 = scalar_lea.vmem [#allocation2], 312
    %147 = vst.msk [vmem:[%s146 + $0x4] sm:$0xff] %vm103, %v97
    %148 = vst.msk [vmem:[%s146 + $0xc] sm:$0xff] %vm103, %v99
    %s149 = scalar_lea.vmem [#allocation2], 336
    %150 = vst.msk [vmem:[%s149 + $0x4] sm:$0xff] %vm113, %v107
    %151 = vst.msk [vmem:[%s149 + $0xc] sm:$0xff] %vm113, %v109
    %s152 = sld [smem:[#allocation3]]
    %v153 = vstv %s152
    %v154 = vld [vmem:[#allocation2] sm:$0xff]
    %v155 = vld [vmem:[#allocation2 + $0x8] sm:$0xff]
    %v156 = vld [vmem:[#allocation2 + $0x10] sm:$0xf]
    %s157 = sld [smem:[#allocation7]]
    %v158 = vstv %s157
    %v159 = vmul.f32 %v154, %v158
    %v160 = vmul.f32 %v155, %v158
    %v161 = vmul.f32 %v156, %v158
    %v162 = vadd.f32 %v153, %v159
    %v163 = vadd.f32 %v153, %v160
    %v164 = vadd.f32 %v153, %v161
    %s165 = sld [smem:[#allocation7 + $0x1]]
    %v166 = vstv %s165
    %v167 = vmul.f32 %v154, %v166
    %v168 = vmul.f32 %v155, %v166
    %v169 = vmul.f32 %v156, %v166
    %v170 = vadd.f32 %v153, %v167
    %v171 = vadd.f32 %v153, %v168
    %v172 = vadd.f32 %v153, %v169
    %s173 = sld [smem:[#allocation7 + $0x2]]
    %v174 = vstv %s173
    %v175 = vmul.f32 %v154, %v174
    %v176 = vmul.f32 %v155, %v174
    %v177 = vmul.f32 %v156, %v174
    %v178 = vadd.f32 %v153, %v175
    %v179 = vadd.f32 %v153, %v176
    %v180 = vadd.f32 %v153, %v177
    %s181 = sld [smem:[#allocation7 + $0x3]]
    %v182 = vstv %s181
    %v183 = vmul.f32 %v154, %v182
    %v184 = vmul.f32 %v155, %v182
    %v185 = vmul.f32 %v156, %v182
    %v186 = vadd.f32 %v153, %v183
    %v187 = vadd.f32 %v153, %v184
    %v188 = vadd.f32 %v153, %v185
    %s189 = sld [smem:[#allocation7 + $0x4]]
    %v190 = vstv %s189
    %v191 = vmul.f32 %v154, %v190
    %v192 = vmul.f32 %v155, %v190
    %v193 = vmul.f32 %v156, %v190
    %v194 = vadd.f32 %v153, %v191
    %v195 = vadd.f32 %v153, %v192
    %v196 = vadd.f32 %v153, %v193
    %v197 = vld [vmem:[%s102] sm:$0xff]
    %v198 = vld [vmem:[%s102 + $0x8] sm:$0xff]
    %v199 = vld [vmem:[%s102 + $0x10] sm:$0xf]
    %s200 = sld [smem:[#allocation7 + $0x5]]
    %v201 = vstv %s200
    %v202 = vmul.f32 %v197, %v201
    %v203 = vmul.f32 %v198, %v201
    %v204 = vmul.f32 %v199, %v201
    %v205 = vadd.f32 %v162, %v202
    %v206 = vadd.f32 %v163, %v203
    %v207 = vadd.f32 %v164, %v204
    %s208 = sld [smem:[#allocation7 + $0x6]]
    %v209 = vstv %s208
    %v210 = vmul.f32 %v197, %v209
    %v211 = vmul.f32 %v198, %v209
    %v212 = vmul.f32 %v199, %v209
    %v213 = vadd.f32 %v170, %v210
    %v214 = vadd.f32 %v171, %v211
    %v215 = vadd.f32 %v172, %v212
    %s216 = sld [smem:[#allocation7 + $0x7]]
    %v217 = vstv %s216
    %v218 = vmul.f32 %v197, %v217
    %v219 = vmul.f32 %v198, %v217
    %v220 = vmul.f32 %v199, %v217
    %v221 = vadd.f32 %v178, %v218
    %v222 = vadd.f32 %v179, %v219
    %v223 = vadd.f32 %v180, %v220
    %s224 = sld [smem:[#allocation7 + $0x8]]
    %v225 = vstv %s224
    %v226 = vmul.f32 %v197, %v225
    %v227 = vmul.f32 %v198, %v225
    %v228 = vmul.f32 %v199, %v225
    %v229 = vadd.f32 %v186, %v226
    %v230 = vadd.f32 %v187, %v227
    %v231 = vadd.f32 %v188, %v228
    %s232 = sld [smem:[#allocation7 + $0x9]]
    %v233 = vstv %s232
    %v234 = vmul.f32 %v197, %v233
    %v235 = vmul.f32 %v198, %v233
    %v236 = vmul.f32 %v199, %v233
    %v237 = vadd.f32 %v194, %v234
    %v238 = vadd.f32 %v195, %v235
    %v239 = vadd.f32 %v196, %v236
    %v240 = vld [vmem:[%s112] sm:$0xff]
    %v241 = vld [vmem:[%s112 + $0x8] sm:$0xff]
    %v242 = vld [vmem:[%s112 + $0x10] sm:$0xf]
    %s243 = sld [smem:[#allocation7 + $0xa]]
    %v244 = vstv %s243
    %v245 = vmul.f32 %v240, %v244
    %v246 = vmul.f32 %v241, %v244
    %v247 = vmul.f32 %v242, %v244
    %v248 = vadd.f32 %v205, %v245
    %v249 = vadd.f32 %v206, %v246
    %v250 = vadd.f32 %v207, %v247
    %s251 = sld [smem:[#allocation7 + $0xb]]
    %v252 = vstv %s251
    %v253 = vmul.f32 %v240, %v252
    %v254 = vmul.f32 %v241, %v252
    %v255 = vmul.f32 %v242, %v252
    %v256 = vadd.f32 %v213, %v253
    %v257 = vadd.f32 %v214, %v254
    %v258 = vadd.f32 %v215, %v255
    %s259 = sld [smem:[#allocation7 + $0xc]]
    %v260 = vstv %s259
    %v261 = vmul.f32 %v240, %v260
    %v262 = vmul.f32 %v241, %v260
    %v263 = vmul.f32 %v242, %v260
    %v264 = vadd.f32 %v221, %v261
    %v265 = vadd.f32 %v222, %v262
    %v266 = vadd.f32 %v223, %v263
    %v267 = vld [vmem:[%s116] sm:$0xff]
    %v268 = vld [vmem:[%s116 + $0x8] sm:$0xff]
    %v269 = vld [vmem:[%s116 + $0x10] sm:$0xf]
    %s270 = sld [smem:[#allocation7 + $0x280]]
    %v271 = vstv %s270
    %v272 = vmul.f32 %v267, %v271
    %v273 = vmul.f32 %v268, %v271
    %v274 = vmul.f32 %v269, %v271
    %v275 = vadd.f32 %v248, %v272
    %v276 = vadd.f32 %v249, %v273
    %v277 = vadd.f32 %v250, %v274
    %s278 = sld [smem:[#allocation7 + $0x281]]
    %v279 = vstv %s278
    %v280 = vmul.f32 %v267, %v279
    %v281 = vmul.f32 %v268, %v279
    %v282 = vmul.f32 %v269, %v279
    %v283 = vadd.f32 %v256, %v280
    %v284 = vadd.f32 %v257, %v281
    %v285 = vadd.f32 %v258, %v282
    %s286 = sld [smem:[#allocation7 + $0x282]]
    %v287 = vstv %s286
    %v288 = vmul.f32 %v267, %v287
    %v289 = vmul.f32 %v268, %v287
    %v290 = vmul.f32 %v269, %v287
    %v291 = vadd.f32 %v264, %v288
    %v292 = vadd.f32 %v265, %v289
    %v293 = vadd.f32 %v266, %v290
    %s294 = sld [smem:[#allocation7 + $0x283]]
    %v295 = vstv %s294
    %v296 = vmul.f32 %v267, %v295
    %v297 = vmul.f32 %v268, %v295
    %v298 = vmul.f32 %v269, %v295
    %v299 = vadd.f32 %v229, %v296
    %v300 = vadd.f32 %v230, %v297
    %v301 = vadd.f32 %v231, %v298
    %s302 = sld [smem:[#allocation7 + $0x284]]
    %v303 = vstv %s302
    %v304 = vmul.f32 %v267, %v303
    %v305 = vmul.f32 %v268, %v303
    %v306 = vmul.f32 %v269, %v303
    %v307 = vadd.f32 %v237, %v304
    %v308 = vadd.f32 %v238, %v305
    %v309 = vadd.f32 %v239, %v306
    %v310 = vld [vmem:[%s119] sm:$0xff]
    %v311 = vld [vmem:[%s119 + $0x8] sm:$0xff]
    %v312 = vld [vmem:[%s119 + $0x10] sm:$0xf]
    %s313 = sld [smem:[#allocation7 + $0x285]]
    %v314 = vstv %s313
    %v315 = vmul.f32 %v310, %v314
    %v316 = vmul.f32 %v311, %v314
    %v317 = vmul.f32 %v312, %v314
    %v318 = vadd.f32 %v275, %v315
    %v319 = vadd.f32 %v276, %v316
    %v320 = vadd.f32 %v277, %v317
    %s321 = sld [smem:[#allocation7 + $0x286]]
    %v322 = vstv %s321
    %v323 = vmul.f32 %v310, %v322
    %v324 = vmul.f32 %v311, %v322
    %v325 = vmul.f32 %v312, %v322
    %v326 = vadd.f32 %v283, %v323
    %v327 = vadd.f32 %v284, %v324
    %v328 = vadd.f32 %v285, %v325
    %s329 = sld [smem:[#allocation7 + $0x287]]
    %v330 = vstv %s329
    %v331 = vmul.f32 %v310, %v330
    %v332 = vmul.f32 %v311, %v330
    %v333 = vmul.f32 %v312, %v330
    %v334 = vadd.f32 %v291, %v331
    %v335 = vadd.f32 %v292, %v332
    %v336 = vadd.f32 %v293, %v333
    %s337 = sld [smem:[#allocation7 + $0x288]]
    %v338 = vstv %s337
    %v339 = vmul.f32 %v310, %v338
    %v340 = vmul.f32 %v311, %v338
    %v341 = vmul.f32 %v312, %v338
    %v342 = vadd.f32 %v299, %v339
    %v343 = vadd.f32 %v300, %v340
    %v344 = vadd.f32 %v301, %v341
    %s345 = sld [smem:[#allocation7 + $0x289]]
    %v346 = vstv %s345
    %v347 = vmul.f32 %v310, %v346
    %v348 = vmul.f32 %v311, %v346
    %v349 = vmul.f32 %v312, %v346
    %v350 = vadd.f32 %v307, %v347
    %v351 = vadd.f32 %v308, %v348
    %v352 = vadd.f32 %v309, %v349
    %v353 = vld [vmem:[%s122] sm:$0xff]
    %v354 = vld [vmem:[%s122 + $0x8] sm:$0xff]
    %v355 = vld [vmem:[%s122 + $0x10] sm:$0xf]
    %s356 = sld [smem:[#allocation7 + $0x28a]]
    %v357 = vstv %s356
    %v358 = vmul.f32 %v353, %v357
    %v359 = vmul.f32 %v354, %v357
    %v360 = vmul.f32 %v355, %v357
    %v361 = vadd.f32 %v318, %v358
    %v362 = vadd.f32 %v319, %v359
    %v363 = vadd.f32 %v320, %v360
    %s364 = sld [smem:[#allocation7 + $0x28b]]
    %v365 = vstv %s364
    %v366 = vmul.f32 %v353, %v365
    %v367 = vmul.f32 %v354, %v365
    %v368 = vmul.f32 %v355, %v365
    %v369 = vadd.f32 %v326, %v366
    %v370 = vadd.f32 %v327, %v367
    %v371 = vadd.f32 %v328, %v368
    %s372 = sld [smem:[#allocation7 + $0x28c]]
    %v373 = vstv %s372
    %v374 = vmul.f32 %v353, %v373
    %v375 = vmul.f32 %v354, %v373
    %v376 = vmul.f32 %v355, %v373
    %v377 = vadd.f32 %v334, %v374
    %v378 = vadd.f32 %v335, %v375
    %v379 = vadd.f32 %v336, %v376
    %v380 = vld [vmem:[%s125] sm:$0xff]
    %v381 = vld [vmem:[%s125 + $0x8] sm:$0xff]
    %v382 = vld [vmem:[%s125 + $0x10] sm:$0xf]
    %s383 = sld [smem:[#allocation7 + $0x500]]
    %v384 = vstv %s383
    %v385 = vmul.f32 %v380, %v384
    %v386 = vmul.f32 %v381, %v384
    %v387 = vmul.f32 %v382, %v384
    %v388 = vadd.f32 %v361, %v385
    %v389 = vadd.f32 %v362, %v386
    %v390 = vadd.f32 %v363, %v387
    %s391 = sld [smem:[#allocation7 + $0x501]]
    %v392 = vstv %s391
    %v393 = vmul.f32 %v380, %v392
    %v394 = vmul.f32 %v381, %v392
    %v395 = vmul.f32 %v382, %v392
    %v396 = vadd.f32 %v369, %v393
    %v397 = vadd.f32 %v370, %v394
    %v398 = vadd.f32 %v371, %v395
    %s399 = sld [smem:[#allocation7 + $0x502]]
    %v400 = vstv %s399
    %v401 = vmul.f32 %v380, %v400
    %v402 = vmul.f32 %v381, %v400
    %v403 = vmul.f32 %v382, %v400
    %v404 = vadd.f32 %v377, %v401
    %v405 = vadd.f32 %v378, %v402
    %v406 = vadd.f32 %v379, %v403
    %s407 = sld [smem:[#allocation7 + $0x503]]
    %v408 = vstv %s407
    %v409 = vmul.f32 %v380, %v408
    %v410 = vmul.f32 %v381, %v408
    %v411 = vmul.f32 %v382, %v408
    %v412 = vadd.f32 %v342, %v409
    %v413 = vadd.f32 %v343, %v410
    %v414 = vadd.f32 %v344, %v411
    %s415 = sld [smem:[#allocation7 + $0x504]]
    %v416 = vstv %s415
    %v417 = vmul.f32 %v380, %v416
    %v418 = vmul.f32 %v381, %v416
    %v419 = vmul.f32 %v382, %v416
    %v420 = vadd.f32 %v350, %v417
    %v421 = vadd.f32 %v351, %v418
    %v422 = vadd.f32 %v352, %v419
    %v423 = vld [vmem:[%s128] sm:$0xff]
    %v424 = vld [vmem:[%s128 + $0x8] sm:$0xff]
    %v425 = vld [vmem:[%s128 + $0x10] sm:$0xf]
    %s426 = sld [smem:[#allocation7 + $0x505]]
    %v427 = vstv %s426
    %v428 = vmul.f32 %v423, %v427
    %v429 = vmul.f32 %v424, %v427
    %v430 = vmul.f32 %v425, %v427
    %v431 = vadd.f32 %v388, %v428
    %v432 = vadd.f32 %v389, %v429
    %v433 = vadd.f32 %v390, %v430
    %s434 = sld [smem:[#allocation7 + $0x506]]
    %v435 = vstv %s434
    %v436 = vmul.f32 %v423, %v435
    %v437 = vmul.f32 %v424, %v435
    %v438 = vmul.f32 %v425, %v435
    %v439 = vadd.f32 %v396, %v436
    %v440 = vadd.f32 %v397, %v437
    %v441 = vadd.f32 %v398, %v438
    %s442 = sld [smem:[#allocation7 + $0x507]]
    %v443 = vstv %s442
    %v444 = vmul.f32 %v423, %v443
    %v445 = vmul.f32 %v424, %v443
    %v446 = vmul.f32 %v425, %v443
    %v447 = vadd.f32 %v404, %v444
    %v448 = vadd.f32 %v405, %v445
    %v449 = vadd.f32 %v406, %v446
    %s450 = sld [smem:[#allocation7 + $0x508]]
    %v451 = vstv %s450
    %v452 = vmul.f32 %v423, %v451
    %v453 = vmul.f32 %v424, %v451
    %v454 = vmul.f32 %v425, %v451
    %v455 = vadd.f32 %v412, %v452
    %v456 = vadd.f32 %v413, %v453
    %v457 = vadd.f32 %v414, %v454
    %s458 = sld [smem:[#allocation7 + $0x509]]
    %v459 = vstv %s458
    %v460 = vmul.f32 %v423, %v459
    %v461 = vmul.f32 %v424, %v459
    %v462 = vmul.f32 %v425, %v459
    %v463 = vadd.f32 %v420, %v460
    %v464 = vadd.f32 %v421, %v461
    %v465 = vadd.f32 %v422, %v462
    %v466 = vld [vmem:[%s131] sm:$0xff]
    %v467 = vld [vmem:[%s131 + $0x8] sm:$0xff]
    %v468 = vld [vmem:[%s131 + $0x10] sm:$0xf]
    %s469 = sld [smem:[#allocation7 + $0x50a]]
    %v470 = vstv %s469
    %v471 = vmul.f32 %v466, %v470
    %v472 = vmul.f32 %v467, %v470
    %v473 = vmul.f32 %v468, %v470
    %v474 = vadd.f32 %v431, %v471
    %v475 = vadd.f32 %v432, %v472
    %v476 = vadd.f32 %v433, %v473
    %s477 = sld [smem:[#allocation7 + $0x50b]]
    %v478 = vstv %s477
    %v479 = vmul.f32 %v466, %v478
    %v480 = vmul.f32 %v467, %v478
    %v481 = vmul.f32 %v468, %v478
    %v482 = vadd.f32 %v439, %v479
    %v483 = vadd.f32 %v440, %v480
    %v484 = vadd.f32 %v441, %v481
    %s485 = sld [smem:[#allocation7 + $0x50c]]
    %v486 = vstv %s485
    %v487 = vmul.f32 %v466, %v486
    %v488 = vmul.f32 %v467, %v486
    %v489 = vmul.f32 %v468, %v486
    %v490 = vadd.f32 %v447, %v487
    %v491 = vadd.f32 %v448, %v488
    %v492 = vadd.f32 %v449, %v489
    %v493 = vld [vmem:[%s134] sm:$0xff]
    %v494 = vld [vmem:[%s134 + $0x8] sm:$0xff]
    %v495 = vld [vmem:[%s134 + $0x10] sm:$0xf]
    %s496 = sld [smem:[#allocation7 + $0x780]]
    %v497 = vstv %s496
    %v498 = vmul.f32 %v493, %v497
    %v499 = vmul.f32 %v494, %v497
    %v500 = vmul.f32 %v495, %v497
    %v501 = vadd.f32 %v474, %v498
    %v502 = vadd.f32 %v475, %v499
    %v503 = vadd.f32 %v476, %v500
    %s504 = sld [smem:[#allocation7 + $0x781]]
    %v505 = vstv %s504
    %v506 = vmul.f32 %v493, %v505
    %v507 = vmul.f32 %v494, %v505
    %v508 = vmul.f32 %v495, %v505
    %v509 = vadd.f32 %v482, %v506
    %v510 = vadd.f32 %v483, %v507
    %v511 = vadd.f32 %v484, %v508
    %s512 = sld [smem:[#allocation7 + $0x782]]
    %v513 = vstv %s512
    %v514 = vmul.f32 %v493, %v513
    %v515 = vmul.f32 %v494, %v513
    %v516 = vmul.f32 %v495, %v513
    %v517 = vadd.f32 %v490, %v514
    %v518 = vadd.f32 %v491, %v515
    %v519 = vadd.f32 %v492, %v516
    %s520 = sld [smem:[#allocation7 + $0x783]]
    %v521 = vstv %s520
    %v522 = vmul.f32 %v493, %v521
    %v523 = vmul.f32 %v494, %v521
    %v524 = vmul.f32 %v495, %v521
    %v525 = vadd.f32 %v455, %v522
    %v526 = vadd.f32 %v456, %v523
    %v527 = vadd.f32 %v457, %v524
    %s528 = sld [smem:[#allocation7 + $0x784]]
    %v529 = vstv %s528
    %v530 = vmul.f32 %v493, %v529
    %v531 = vmul.f32 %v494, %v529
    %v532 = vmul.f32 %v495, %v529
    %v533 = vadd.f32 %v463, %v530
    %v534 = vadd.f32 %v464, %v531
    %v535 = vadd.f32 %v465, %v532
    %v536 = vld [vmem:[%s137] sm:$0xff]
    %v537 = vld [vmem:[%s137 + $0x8] sm:$0xff]
    %v538 = vld [vmem:[%s137 + $0x10] sm:$0xf]
    %s539 = sld [smem:[#allocation7 + $0x785]]
    %v540 = vstv %s539
    %v541 = vmul.f32 %v536, %v540
    %v542 = vmul.f32 %v537, %v540
    %v543 = vmul.f32 %v538, %v540
    %v544 = vadd.f32 %v501, %v541
    %v545 = vadd.f32 %v502, %v542
    %v546 = vadd.f32 %v503, %v543
    %s547 = sld [smem:[#allocation7 + $0x786]]
    %v548 = vstv %s547
    %v549 = vmul.f32 %v536, %v548
    %v550 = vmul.f32 %v537, %v548
    %v551 = vmul.f32 %v538, %v548
    %v552 = vadd.f32 %v509, %v549
    %v553 = vadd.f32 %v510, %v550
    %v554 = vadd.f32 %v511, %v551
    %s555 = sld [smem:[#allocation7 + $0x787]]
    %v556 = vstv %s555
    %v557 = vmul.f32 %v536, %v556
    %v558 = vmul.f32 %v537, %v556
    %v559 = vmul.f32 %v538, %v556
    %v560 = vadd.f32 %v517, %v557
    %v561 = vadd.f32 %v518, %v558
    %v562 = vadd.f32 %v519, %v559
    %s563 = sld [smem:[#allocation7 + $0x788]]
    %v564 = vstv %s563
    %v565 = vmul.f32 %v536, %v564
    %v566 = vmul.f32 %v537, %v564
    %v567 = vmul.f32 %v538, %v564
    %v568 = vadd.f32 %v525, %v565
    %v569 = vadd.f32 %v526, %v566
    %v570 = vadd.f32 %v527, %v567
    %s571 = sld [smem:[#allocation7 + $0x789]]
    %v572 = vstv %s571
    %v573 = vmul.f32 %v536, %v572
    %v574 = vmul.f32 %v537, %v572
    %v575 = vmul.f32 %v538, %v572
    %v576 = vadd.f32 %v533, %v573
    %v577 = vadd.f32 %v534, %v574
    %v578 = vadd.f32 %v535, %v575
    %v579 = vld [vmem:[%s140] sm:$0xff]
    %v580 = vld [vmem:[%s140 + $0x8] sm:$0xff]
    %v581 = vld [vmem:[%s140 + $0x10] sm:$0xf]
    %s582 = sld [smem:[#allocation7 + $0x78a]]
    %v583 = vstv %s582
    %v584 = vmul.f32 %v579, %v583
    %v585 = vmul.f32 %v580, %v583
    %v586 = vmul.f32 %v581, %v583
    %v587 = vadd.f32 %v544, %v584
    %v588 = vadd.f32 %v545, %v585
    %v589 = vadd.f32 %v546, %v586
    %s590 = sld [smem:[#allocation7 + $0x78b]]
    %v591 = vstv %s590
    %v592 = vmul.f32 %v579, %v591
    %v593 = vmul.f32 %v580, %v591
    %v594 = vmul.f32 %v581, %v591
    %v595 = vadd.f32 %v552, %v592
    %v596 = vadd.f32 %v553, %v593
    %v597 = vadd.f32 %v554, %v594
    %s598 = sld [smem:[#allocation7 + $0x78c]]
    %v599 = vstv %s598
    %v600 = vmul.f32 %v579, %v599
    %v601 = vmul.f32 %v580, %v599
    %v602 = vmul.f32 %v581, %v599
    %v603 = vadd.f32 %v560, %v600
    %v604 = vadd.f32 %v561, %v601
    %v605 = vadd.f32 %v562, %v602
    %v606 = vld [vmem:[%s143] sm:$0xff]
    %v607 = vld [vmem:[%s143 + $0x8] sm:$0xff]
    %v608 = vld [vmem:[%s143 + $0x10] sm:$0xf]
    %s609 = sld [smem:[#allocation7 + $0xa00]]
    %v610 = vstv %s609
    %v611 = vmul.f32 %v606, %v610
    %v612 = vmul.f32 %v607, %v610
    %v613 = vmul.f32 %v608, %v610
    %v614 = vadd.f32 %v587, %v611
    %v615 = vadd.f32 %v588, %v612
    %v616 = vadd.f32 %v589, %v613
    %s617 = sld [smem:[#allocation7 + $0xa01]]
    %v618 = vstv %s617
    %v619 = vmul.f32 %v606, %v618
    %v620 = vmul.f32 %v607, %v618
    %v621 = vmul.f32 %v608, %v618
    %v622 = vadd.f32 %v595, %v619
    %v623 = vadd.f32 %v596, %v620
    %v624 = vadd.f32 %v597, %v621
    %s625 = sld [smem:[#allocation7 + $0xa02]]
    %v626 = vstv %s625
    %v627 = vmul.f32 %v606, %v626
    %v628 = vmul.f32 %v607, %v626
    %v629 = vmul.f32 %v608, %v626
    %v630 = vadd.f32 %v603, %v627
    %v631 = vadd.f32 %v604, %v628
    %v632 = vadd.f32 %v605, %v629
    %s633 = sld [smem:[#allocation7 + $0xa03]]
    %v634 = vstv %s633
    %v635 = vmul.f32 %v606, %v634
    %v636 = vmul.f32 %v607, %v634
    %v637 = vmul.f32 %v608, %v634
    %v638 = vadd.f32 %v568, %v635
    %v639 = vadd.f32 %v569, %v636
    %v640 = vadd.f32 %v570, %v637
    %s641 = sld [smem:[#allocation7 + $0xa04]]
    %v642 = vstv %s641
    %v643 = vmul.f32 %v606, %v642
    %v644 = vmul.f32 %v607, %v642
    %v645 = vmul.f32 %v608, %v642
    %v646 = vadd.f32 %v576, %v643
    %v647 = vadd.f32 %v577, %v644
    %v648 = vadd.f32 %v578, %v645
    %v649 = vld [vmem:[%s146] sm:$0xff]
    %v650 = vld [vmem:[%s146 + $0x8] sm:$0xff]
    %v651 = vld [vmem:[%s146 + $0x10] sm:$0xf]
    %s652 = sld [smem:[#allocation7 + $0xa05]]
    %v653 = vstv %s652
    %v654 = vmul.f32 %v649, %v653
    %v655 = vmul.f32 %v650, %v653
    %v656 = vmul.f32 %v651, %v653
    %v657 = vadd.f32 %v614, %v654
    %v658 = vadd.f32 %v615, %v655
    %v659 = vadd.f32 %v616, %v656
    %s660 = sld [smem:[#allocation7 + $0xa06]]
    %v661 = vstv %s660
    %v662 = vmul.f32 %v649, %v661
    %v663 = vmul.f32 %v650, %v661
    %v664 = vmul.f32 %v651, %v661
    %v665 = vadd.f32 %v622, %v662
    %v666 = vadd.f32 %v623, %v663
    %v667 = vadd.f32 %v624, %v664
    %s668 = sld [smem:[#allocation7 + $0xa07]]
    %v669 = vstv %s668
    %v670 = vmul.f32 %v649, %v669
    %v671 = vmul.f32 %v650, %v669
    %v672 = vmul.f32 %v651, %v669
    %v673 = vadd.f32 %v630, %v670
    %v674 = vadd.f32 %v631, %v671
    %v675 = vadd.f32 %v632, %v672
    %s676 = sld [smem:[#allocation7 + $0xa08]]
    %v677 = vstv %s676
    %v678 = vmul.f32 %v649, %v677
    %v679 = vmul.f32 %v650, %v677
    %v680 = vmul.f32 %v651, %v677
    %v681 = vadd.f32 %v638, %v678
    %v682 = vadd.f32 %v639, %v679
    %v683 = vadd.f32 %v640, %v680
    %s684 = sld [smem:[#allocation7 + $0xa09]]
    %v685 = vstv %s684
    %v686 = vmul.f32 %v649, %v685
    %v687 = vmul.f32 %v650, %v685
    %v688 = vmul.f32 %v651, %v685
    %v689 = vadd.f32 %v646, %v686
    %v690 = vadd.f32 %v647, %v687
    %v691 = vadd.f32 %v648, %v688
    %v692 = vld [vmem:[%s149] sm:$0xff]
    %v693 = vld [vmem:[%s149 + $0x8] sm:$0xff]
    %v694 = vld [vmem:[%s149 + $0x10] sm:$0xf]
    %s695 = sld [smem:[#allocation7 + $0xa0a]]
    %v696 = vstv %s695
    %v697 = vmul.f32 %v692, %v696
    %v698 = vmul.f32 %v693, %v696
    %v699 = vmul.f32 %v694, %v696
    %v700 = vadd.f32 %v657, %v697
    %v701 = vadd.f32 %v658, %v698
    %v702 = vadd.f32 %v659, %v699
    %s703 = sld [smem:[#allocation7 + $0xa0b]]
    %v704 = vstv %s703
    %v705 = vmul.f32 %v692, %v704
    %v706 = vmul.f32 %v693, %v704
    %v707 = vmul.f32 %v694, %v704
    %v708 = vadd.f32 %v665, %v705
    %v709 = vadd.f32 %v666, %v706
    %v710 = vadd.f32 %v667, %v707
    %s711 = sld [smem:[#allocation7 + $0xa0c]]
    %v712 = vstv %s711
    %v713 = vmul.f32 %v692, %v712
    %v714 = vmul.f32 %v693, %v712
    %v715 = vmul.f32 %v694, %v712
    %v716 = vadd.f32 %v673, %v713
    %v717 = vadd.f32 %v674, %v714
    %v718 = vadd.f32 %v675, %v715
    %v719 = vtanh.pop %v700
    %v720 = vtanh.pop %v701
    %v721 = vtanh.pop %v702
    %722 = vst [vmem:[%s3] sm:$0xff] %v719
    %723 = vst [vmem:[%s3 + $0x8] sm:$0xff] %v720
    %724 = vst [vmem:[%s3 + $0x10] sm:$0xf] %v721
    %v725 = vtanh.pop %v708
    %v726 = vtanh.pop %v709
    %v727 = vtanh.pop %v710
    %s728 = scalar_lea.vmem %s3, 24
    %729 = vst [vmem:[%s728] sm:$0xff] %v725
    %730 = vst [vmem:[%s728 + $0x8] sm:$0xff] %v726
    %731 = vst [vmem:[%s728 + $0x10] sm:$0xf] %v727
    %v732 = vtanh.pop %v716
    %v733 = vtanh.pop %v717
    %v734 = vtanh.pop %v718
    %s735 = scalar_lea.vmem %s3, 48
    %736 = vst [vmem:[%s735] sm:$0xff] %v732
    %737 = vst [vmem:[%s735 + $0x8] sm:$0xff] %v733
    %738 = vst [vmem:[%s735 + $0x10] sm:$0xf] %v734
    %v739 = vtanh.pop %v681
    %v740 = vtanh.pop %v682
    %v741 = vtanh.pop %v683
    %s742 = scalar_lea.vmem %s3, 72
    %743 = vst [vmem:[%s742] sm:$0xff] %v739
    %744 = vst [vmem:[%s742 + $0x8] sm:$0xff] %v740
    %745 = vst [vmem:[%s742 + $0x10] sm:$0xf] %v741
    %v746 = vtanh.pop %v689
    %v747 = vtanh.pop %v690
    %v748 = vtanh.pop %v691
    %s749 = scalar_lea.vmem %s3, 96
    %750 = vst [vmem:[%s749] sm:$0xff] %v746
    %751 = vst [vmem:[%s749 + $0x8] sm:$0xff] %v747
    %752 = vst [vmem:[%s749 + $0x10] sm:$0xf] %v748
    %v753 = vld [vmem:[#allocation2] sm:$0xff]
    %v754 = vld [vmem:[#allocation2 + $0x8] sm:$0xff]
    %v755 = vld [vmem:[#allocation2 + $0x10] sm:$0xf]
    %s756 = sld [smem:[#allocation7 + $0x80]]
    %v757 = vstv %s756
    %v758 = vmul.f32 %v753, %v757
    %v759 = vmul.f32 %v754, %v757
    %v760 = vmul.f32 %v755, %v757
    %v761 = vadd.f32 %v153, %v758
    %v762 = vadd.f32 %v153, %v759
    %v763 = vadd.f32 %v153, %v760
    %s764 = sld [smem:[#allocation7 + $0x81]]
    %v765 = vstv %s764
    %v766 = vmul.f32 %v753, %v765
    %v767 = vmul.f32 %v754, %v765
    %v768 = vmul.f32 %v755, %v765
    %v769 = vadd.f32 %v153, %v766
    %v770 = vadd.f32 %v153, %v767
    %v771 = vadd.f32 %v153, %v768
    %s772 = sld [smem:[#allocation7 + $0x82]]
    %v773 = vstv %s772
    %v774 = vmul.f32 %v753, %v773
    %v775 = vmul.f32 %v754, %v773
    %v776 = vmul.f32 %v755, %v773
    %v777 = vadd.f32 %v153, %v774
    %v778 = vadd.f32 %v153, %v775
    %v779 = vadd.f32 %v153, %v776
    %s780 = sld [smem:[#allocation7 + $0x83]]
    %v781 = vstv %s780
    %v782 = vmul.f32 %v753, %v781
    %v783 = vmul.f32 %v754, %v781
    %v784 = vmul.f32 %v755, %v781
    %v785 = vadd.f32 %v153, %v782
    %v786 = vadd.f32 %v153, %v783
    %v787 = vadd.f32 %v153, %v784
    %s788 = sld [smem:[#allocation7 + $0x84]]
    %v789 = vstv %s788
    %v790 = vmul.f32 %v753, %v789
    %v791 = vmul.f32 %v754, %v789
    %v792 = vmul.f32 %v755, %v789
    %v793 = vadd.f32 %v153, %v790
    %v794 = vadd.f32 %v153, %v791
    %v795 = vadd.f32 %v153, %v792
    %v796 = vld [vmem:[%s102] sm:$0xff]
    %v797 = vld [vmem:[%s102 + $0x8] sm:$0xff]
    %v798 = vld [vmem:[%s102 + $0x10] sm:$0xf]
    %s799 = sld [smem:[#allocation7 + $0x85]]
    %v800 = vstv %s799
    %v801 = vmul.f32 %v796, %v800
    %v802 = vmul.f32 %v797, %v800
    %v803 = vmul.f32 %v798, %v800
    %v804 = vadd.f32 %v761, %v801
    %v805 = vadd.f32 %v762, %v802
    %v806 = vadd.f32 %v763, %v803
    %s807 = sld [smem:[#allocation7 + $0x86]]
    %v808 = vstv %s807
    %v809 = vmul.f32 %v796, %v808
    %v810 = vmul.f32 %v797, %v808
    %v811 = vmul.f32 %v798, %v808
    %v812 = vadd.f32 %v769, %v809
    %v813 = vadd.f32 %v770, %v810
    %v814 = vadd.f32 %v771, %v811
    %s815 = sld [smem:[#allocation7 + $0x87]]
    %v816 = vstv %s815
    %v817 = vmul.f32 %v796, %v816
    %v818 = vmul.f32 %v797, %v816
    %v819 = vmul.f32 %v798, %v816
    %v820 = vadd.f32 %v777, %v817
    %v821 = vadd.f32 %v778, %v818
    %v822 = vadd.f32 %v779, %v819
    %s823 = sld [smem:[#allocation7 + $0x88]]
    %v824 = vstv %s823
    %v825 = vmul.f32 %v796, %v824
    %v826 = vmul.f32 %v797, %v824
    %v827 = vmul.f32 %v798, %v824
    %v828 = vadd.f32 %v785, %v825
    %v829 = vadd.f32 %v786, %v826
    %v830 = vadd.f32 %v787, %v827
    %s831 = sld [smem:[#allocation7 + $0x89]]
    %v832 = vstv %s831
    %v833 = vmul.f32 %v796, %v832
    %v834 = vmul.f32 %v797, %v832
    %v835 = vmul.f32 %v798, %v832
    %v836 = vadd.f32 %v793, %v833
    %v837 = vadd.f32 %v794, %v834
    %v838 = vadd.f32 %v795, %v835
    %v839 = vld [vmem:[%s112] sm:$0xff]
    %v840 = vld [vmem:[%s112 + $0x8] sm:$0xff]
    %v841 = vld [vmem:[%s112 + $0x10] sm:$0xf]
    %s842 = sld [smem:[#allocation7 + $0x8a]]
    %v843 = vstv %s842
    %v844 = vmul.f32 %v839, %v843
    %v845 = vmul.f32 %v840, %v843
    %v846 = vmul.f32 %v841, %v843
    %v847 = vadd.f32 %v804, %v844
    %v848 = vadd.f32 %v805, %v845
    %v849 = vadd.f32 %v806, %v846
    %s850 = sld [smem:[#allocation7 + $0x8b]]
    %v851 = vstv %s850
    %v852 = vmul.f32 %v839, %v851
    %v853 = vmul.f32 %v840, %v851
    %v854 = vmul.f32 %v841, %v851
    %v855 = vadd.f32 %v812, %v852
    %v856 = vadd.f32 %v813, %v853
    %v857 = vadd.f32 %v814, %v854
    %s858 = sld [smem:[#allocation7 + $0x8c]]
    %v859 = vstv %s858
    %v860 = vmul.f32 %v839, %v859
    %v861 = vmul.f32 %v840, %v859
    %v862 = vmul.f32 %v841, %v859
    %v863 = vadd.f32 %v820, %v860
    %v864 = vadd.f32 %v821, %v861
    %v865 = vadd.f32 %v822, %v862
    %v866 = vld [vmem:[%s116] sm:$0xff]
    %v867 = vld [vmem:[%s116 + $0x8] sm:$0xff]
    %v868 = vld [vmem:[%s116 + $0x10] sm:$0xf]
    %s869 = sld [smem:[#allocation7 + $0x300]]
    %v870 = vstv %s869
    %v871 = vmul.f32 %v866, %v870
    %v872 = vmul.f32 %v867, %v870
    %v873 = vmul.f32 %v868, %v870
    %v874 = vadd.f32 %v847, %v871
    %v875 = vadd.f32 %v848, %v872
    %v876 = vadd.f32 %v849, %v873
    %s877 = sld [smem:[#allocation7 + $0x301]]
    %v878 = vstv %s877
    %v879 = vmul.f32 %v866, %v878
    %v880 = vmul.f32 %v867, %v878
    %v881 = vmul.f32 %v868, %v878
    %v882 = vadd.f32 %v855, %v879
    %v883 = vadd.f32 %v856, %v880
    %v884 = vadd.f32 %v857, %v881
    %s885 = sld [smem:[#allocation7 + $0x302]]
    %v886 = vstv %s885
    %v887 = vmul.f32 %v866, %v886
    %v888 = vmul.f32 %v867, %v886
    %v889 = vmul.f32 %v868, %v886
    %v890 = vadd.f32 %v863, %v887
    %v891 = vadd.f32 %v864, %v888
    %v892 = vadd.f32 %v865, %v889
    %s893 = sld [smem:[#allocation7 + $0x303]]
    %v894 = vstv %s893
    %v895 = vmul.f32 %v866, %v894
    %v896 = vmul.f32 %v867, %v894
    %v897 = vmul.f32 %v868, %v894
    %v898 = vadd.f32 %v828, %v895
    %v899 = vadd.f32 %v829, %v896
    %v900 = vadd.f32 %v830, %v897
    %s901 = sld [smem:[#allocation7 + $0x304]]
    %v902 = vstv %s901
    %v903 = vmul.f32 %v866, %v902
    %v904 = vmul.f32 %v867, %v902
    %v905 = vmul.f32 %v868, %v902
    %v906 = vadd.f32 %v836, %v903
    %v907 = vadd.f32 %v837, %v904
    %v908 = vadd.f32 %v838, %v905
    %v909 = vld [vmem:[%s119] sm:$0xff]
    %v910 = vld [vmem:[%s119 + $0x8] sm:$0xff]
    %v911 = vld [vmem:[%s119 + $0x10] sm:$0xf]
    %s912 = sld [smem:[#allocation7 + $0x305]]
    %v913 = vstv %s912
    %v914 = vmul.f32 %v909, %v913
    %v915 = vmul.f32 %v910, %v913
    %v916 = vmul.f32 %v911, %v913
    %v917 = vadd.f32 %v874, %v914
    %v918 = vadd.f32 %v875, %v915
    %v919 = vadd.f32 %v876, %v916
    %s920 = sld [smem:[#allocation7 + $0x306]]
    %v921 = vstv %s920
    %v922 = vmul.f32 %v909, %v921
    %v923 = vmul.f32 %v910, %v921
    %v924 = vmul.f32 %v911, %v921
    %v925 = vadd.f32 %v882, %v922
    %v926 = vadd.f32 %v883, %v923
    %v927 = vadd.f32 %v884, %v924
    %s928 = sld [smem:[#allocation7 + $0x307]]
    %v929 = vstv %s928
    %v930 = vmul.f32 %v909, %v929
    %v931 = vmul.f32 %v910, %v929
    %v932 = vmul.f32 %v911, %v929
    %v933 = vadd.f32 %v890, %v930
    %v934 = vadd.f32 %v891, %v931
    %v935 = vadd.f32 %v892, %v932
    %s936 = sld [smem:[#allocation7 + $0x308]]
    %v937 = vstv %s936
    %v938 = vmul.f32 %v909, %v937
    %v939 = vmul.f32 %v910, %v937
    %v940 = vmul.f32 %v911, %v937
    %v941 = vadd.f32 %v898, %v938
    %v942 = vadd.f32 %v899, %v939
    %v943 = vadd.f32 %v900, %v940
    %s944 = sld [smem:[#allocation7 + $0x309]]
    %v945 = vstv %s944
    %v946 = vmul.f32 %v909, %v945
    %v947 = vmul.f32 %v910, %v945
    %v948 = vmul.f32 %v911, %v945
    %v949 = vadd.f32 %v906, %v946
    %v950 = vadd.f32 %v907, %v947
    %v951 = vadd.f32 %v908, %v948
    %v952 = vld [vmem:[%s122] sm:$0xff]
    %v953 = vld [vmem:[%s122 + $0x8] sm:$0xff]
    %v954 = vld [vmem:[%s122 + $0x10] sm:$0xf]
    %s955 = sld [smem:[#allocation7 + $0x30a]]
    %v956 = vstv %s955
    %v957 = vmul.f32 %v952, %v956
    %v958 = vmul.f32 %v953, %v956
    %v959 = vmul.f32 %v954, %v956
    %v960 = vadd.f32 %v917, %v957
    %v961 = vadd.f32 %v918, %v958
    %v962 = vadd.f32 %v919, %v959
    %s963 = sld [smem:[#allocation7 + $0x30b]]
    %v964 = vstv %s963
    %v965 = vmul.f32 %v952, %v964
    %v966 = vmul.f32 %v953, %v964
    %v967 = vmul.f32 %v954, %v964
    %v968 = vadd.f32 %v925, %v965
    %v969 = vadd.f32 %v926, %v966
    %v970 = vadd.f32 %v927, %v967
    %s971 = sld [smem:[#allocation7 + $0x30c]]
    %v972 = vstv %s971
    %v973 = vmul.f32 %v952, %v972
    %v974 = vmul.f32 %v953, %v972
    %v975 = vmul.f32 %v954, %v972
    %v976 = vadd.f32 %v933, %v973
    %v977 = vadd.f32 %v934, %v974
    %v978 = vadd.f32 %v935, %v975
    %v979 = vld [vmem:[%s125] sm:$0xff]
    %v980 = vld [vmem:[%s125 + $0x8] sm:$0xff]
    %v981 = vld [vmem:[%s125 + $0x10] sm:$0xf]
    %s982 = sld [smem:[#allocation7 + $0x580]]
    %v983 = vstv %s982
    %v984 = vmul.f32 %v979, %v983
    %v985 = vmul.f32 %v980, %v983
    %v986 = vmul.f32 %v981, %v983
    %v987 = vadd.f32 %v960, %v984
    %v988 = vadd.f32 %v961, %v985
    %v989 = vadd.f32 %v962, %v986
    %s990 = sld [smem:[#allocation7 + $0x581]]
    %v991 = vstv %s990
    %v992 = vmul.f32 %v979, %v991
    %v993 = vmul.f32 %v980, %v991
    %v994 = vmul.f32 %v981, %v991
    %v995 = vadd.f32 %v968, %v992
    %v996 = vadd.f32 %v969, %v993
    %v997 = vadd.f32 %v970, %v994
    %s998 = sld [smem:[#allocation7 + $0x582]]
    %v999 = vstv %s998
    %v1000 = vmul.f32 %v979, %v999
    %v1001 = vmul.f32 %v980, %v999
    %v1002 = vmul.f32 %v981, %v999
    %v1003 = vadd.f32 %v976, %v1000
    %v1004 = vadd.f32 %v977, %v1001
    %v1005 = vadd.f32 %v978, %v1002
    %s1006 = sld [smem:[#allocation7 + $0x583]]
    %v1007 = vstv %s1006
    %v1008 = vmul.f32 %v979, %v1007
    %v1009 = vmul.f32 %v980, %v1007
    %v1010 = vmul.f32 %v981, %v1007
    %v1011 = vadd.f32 %v941, %v1008
    %v1012 = vadd.f32 %v942, %v1009
    %v1013 = vadd.f32 %v943, %v1010
    %s1014 = sld [smem:[#allocation7 + $0x584]]
    %v1015 = vstv %s1014
    %v1016 = vmul.f32 %v979, %v1015
    %v1017 = vmul.f32 %v980, %v1015
    %v1018 = vmul.f32 %v981, %v1015
    %v1019 = vadd.f32 %v949, %v1016
    %v1020 = vadd.f32 %v950, %v1017
    %v1021 = vadd.f32 %v951, %v1018
    %v1022 = vld [vmem:[%s128] sm:$0xff]
    %v1023 = vld [vmem:[%s128 + $0x8] sm:$0xff]
    %v1024 = vld [vmem:[%s128 + $0x10] sm:$0xf]
    %s1025 = sld [smem:[#allocation7 + $0x585]]
    %v1026 = vstv %s1025
    %v1027 = vmul.f32 %v1022, %v1026
    %v1028 = vmul.f32 %v1023, %v1026
    %v1029 = vmul.f32 %v1024, %v1026
    %v1030 = vadd.f32 %v987, %v1027
    %v1031 = vadd.f32 %v988, %v1028
    %v1032 = vadd.f32 %v989, %v1029
    %s1033 = sld [smem:[#allocation7 + $0x586]]
    %v1034 = vstv %s1033
    %v1035 = vmul.f32 %v1022, %v1034
    %v1036 = vmul.f32 %v1023, %v1034
    %v1037 = vmul.f32 %v1024, %v1034
    %v1038 = vadd.f32 %v995, %v1035
    %v1039 = vadd.f32 %v996, %v1036
    %v1040 = vadd.f32 %v997, %v1037
    %s1041 = sld [smem:[#allocation7 + $0x587]]
    %v1042 = vstv %s1041
    %v1043 = vmul.f32 %v1022, %v1042
    %v1044 = vmul.f32 %v1023, %v1042
    %v1045 = vmul.f32 %v1024, %v1042
    %v1046 = vadd.f32 %v1003, %v1043
    %v1047 = vadd.f32 %v1004, %v1044
    %v1048 = vadd.f32 %v1005, %v1045
    %s1049 = sld [smem:[#allocation7 + $0x588]]
    %v1050 = vstv %s1049
    %v1051 = vmul.f32 %v1022, %v1050
    %v1052 = vmul.f32 %v1023, %v1050
    %v1053 = vmul.f32 %v1024, %v1050
    %v1054 = vadd.f32 %v1011, %v1051
    %v1055 = vadd.f32 %v1012, %v1052
    %v1056 = vadd.f32 %v1013, %v1053
    %s1057 = sld [smem:[#allocation7 + $0x589]]
    %v1058 = vstv %s1057
    %v1059 = vmul.f32 %v1022, %v1058
    %v1060 = vmul.f32 %v1023, %v1058
    %v1061 = vmul.f32 %v1024, %v1058
    %v1062 = vadd.f32 %v1019, %v1059
    %v1063 = vadd.f32 %v1020, %v1060
    %v1064 = vadd.f32 %v1021, %v1061
    %v1065 = vld [vmem:[%s131] sm:$0xff]
    %v1066 = vld [vmem:[%s131 + $0x8] sm:$0xff]
    %v1067 = vld [vmem:[%s131 + $0x10] sm:$0xf]
    %s1068 = sld [smem:[#allocation7 + $0x58a]]
    %v1069 = vstv %s1068
    %v1070 = vmul.f32 %v1065, %v1069
    %v1071 = vmul.f32 %v1066, %v1069
    %v1072 = vmul.f32 %v1067, %v1069
    %v1073 = vadd.f32 %v1030, %v1070
    %v1074 = vadd.f32 %v1031, %v1071
    %v1075 = vadd.f32 %v1032, %v1072
    %s1076 = sld [smem:[#allocation7 + $0x58b]]
    %v1077 = vstv %s1076
    %v1078 = vmul.f32 %v1065, %v1077
    %v1079 = vmul.f32 %v1066, %v1077
    %v1080 = vmul.f32 %v1067, %v1077
    %v1081 = vadd.f32 %v1038, %v1078
    %v1082 = vadd.f32 %v1039, %v1079
    %v1083 = vadd.f32 %v1040, %v1080
    %s1084 = sld [smem:[#allocation7 + $0x58c]]
    %v1085 = vstv %s1084
    %v1086 = vmul.f32 %v1065, %v1085
    %v1087 = vmul.f32 %v1066, %v1085
    %v1088 = vmul.f32 %v1067, %v1085
    %v1089 = vadd.f32 %v1046, %v1086
    %v1090 = vadd.f32 %v1047, %v1087
    %v1091 = vadd.f32 %v1048, %v1088
    %v1092 = vld [vmem:[%s134] sm:$0xff]
    %v1093 = vld [vmem:[%s134 + $0x8] sm:$0xff]
    %v1094 = vld [vmem:[%s134 + $0x10] sm:$0xf]
    %s1095 = sld [smem:[#allocation7 + $0x800]]
    %v1096 = vstv %s1095
    %v1097 = vmul.f32 %v1092, %v1096
    %v1098 = vmul.f32 %v1093, %v1096
    %v1099 = vmul.f32 %v1094, %v1096
    %v1100 = vadd.f32 %v1073, %v1097
    %v1101 = vadd.f32 %v1074, %v1098
    %v1102 = vadd.f32 %v1075, %v1099
    %s1103 = sld [smem:[#allocation7 + $0x801]]
    %v1104 = vstv %s1103
    %v1105 = vmul.f32 %v1092, %v1104
    %v1106 = vmul.f32 %v1093, %v1104
    %v1107 = vmul.f32 %v1094, %v1104
    %v1108 = vadd.f32 %v1081, %v1105
    %v1109 = vadd.f32 %v1082, %v1106
    %v1110 = vadd.f32 %v1083, %v1107
    %s1111 = sld [smem:[#allocation7 + $0x802]]
    %v1112 = vstv %s1111
    %v1113 = vmul.f32 %v1092, %v1112
    %v1114 = vmul.f32 %v1093, %v1112
    %v1115 = vmul.f32 %v1094, %v1112
    %v1116 = vadd.f32 %v1089, %v1113
    %v1117 = vadd.f32 %v1090, %v1114
    %v1118 = vadd.f32 %v1091, %v1115
    %s1119 = sld [smem:[#allocation7 + $0x803]]
    %v1120 = vstv %s1119
    %v1121 = vmul.f32 %v1092, %v1120
    %v1122 = vmul.f32 %v1093, %v1120
    %v1123 = vmul.f32 %v1094, %v1120
    %v1124 = vadd.f32 %v1054, %v1121
    %v1125 = vadd.f32 %v1055, %v1122
    %v1126 = vadd.f32 %v1056, %v1123
    %s1127 = sld [smem:[#allocation7 + $0x804]]
    %v1128 = vstv %s1127
    %v1129 = vmul.f32 %v1092, %v1128
    %v1130 = vmul.f32 %v1093, %v1128
    %v1131 = vmul.f32 %v1094, %v1128
    %v1132 = vadd.f32 %v1062, %v1129
    %v1133 = vadd.f32 %v1063, %v1130
    %v1134 = vadd.f32 %v1064, %v1131
    %v1135 = vld [vmem:[%s137] sm:$0xff]
    %v1136 = vld [vmem:[%s137 + $0x8] sm:$0xff]
    %v1137 = vld [vmem:[%s137 + $0x10] sm:$0xf]
    %s1138 = sld [smem:[#allocation7 + $0x805]]
    %v1139 = vstv %s1138
    %v1140 = vmul.f32 %v1135, %v1139
    %v1141 = vmul.f32 %v1136, %v1139
    %v1142 = vmul.f32 %v1137, %v1139
    %v1143 = vadd.f32 %v1100, %v1140
    %v1144 = vadd.f32 %v1101, %v1141
    %v1145 = vadd.f32 %v1102, %v1142
    %s1146 = sld [smem:[#allocation7 + $0x806]]
    %v1147 = vstv %s1146
    %v1148 = vmul.f32 %v1135, %v1147
    %v1149 = vmul.f32 %v1136, %v1147
    %v1150 = vmul.f32 %v1137, %v1147
    %v1151 = vadd.f32 %v1108, %v1148
    %v1152 = vadd.f32 %v1109, %v1149
    %v1153 = vadd.f32 %v1110, %v1150
    %s1154 = sld [smem:[#allocation7 + $0x807]]
    %v1155 = vstv %s1154
    %v1156 = vmul.f32 %v1135, %v1155
    %v1157 = vmul.f32 %v1136, %v1155
    %v1158 = vmul.f32 %v1137, %v1155
    %v1159 = vadd.f32 %v1116, %v1156
    %v1160 = vadd.f32 %v1117, %v1157
    %v1161 = vadd.f32 %v1118, %v1158
    %s1162 = sld [smem:[#allocation7 + $0x808]]
    %v1163 = vstv %s1162
    %v1164 = vmul.f32 %v1135, %v1163
    %v1165 = vmul.f32 %v1136, %v1163
    %v1166 = vmul.f32 %v1137, %v1163
    %v1167 = vadd.f32 %v1124, %v1164
    %v1168 = vadd.f32 %v1125, %v1165
    %v1169 = vadd.f32 %v1126, %v1166
    %s1170 = sld [smem:[#allocation7 + $0x809]]
    %v1171 = vstv %s1170
    %v1172 = vmul.f32 %v1135, %v1171
    %v1173 = vmul.f32 %v1136, %v1171
    %v1174 = vmul.f32 %v1137, %v1171
    %v1175 = vadd.f32 %v1132, %v1172
    %v1176 = vadd.f32 %v1133, %v1173
    %v1177 = vadd.f32 %v1134, %v1174
    %v1178 = vld [vmem:[%s140] sm:$0xff]
    %v1179 = vld [vmem:[%s140 + $0x8] sm:$0xff]
    %v1180 = vld [vmem:[%s140 + $0x10] sm:$0xf]
    %s1181 = sld [smem:[#allocation7 + $0x80a]]
    %v1182 = vstv %s1181
    %v1183 = vmul.f32 %v1178, %v1182
    %v1184 = vmul.f32 %v1179, %v1182
    %v1185 = vmul.f32 %v1180, %v1182
    %v1186 = vadd.f32 %v1143, %v1183
    %v1187 = vadd.f32 %v1144, %v1184
    %v1188 = vadd.f32 %v1145, %v1185
    %s1189 = sld [smem:[#allocation7 + $0x80b]]
    %v1190 = vstv %s1189
    %v1191 = vmul.f32 %v1178, %v1190
    %v1192 = vmul.f32 %v1179, %v1190
    %v1193 = vmul.f32 %v1180, %v1190
    %v1194 = vadd.f32 %v1151, %v1191
    %v1195 = vadd.f32 %v1152, %v1192
    %v1196 = vadd.f32 %v1153, %v1193
    %s1197 = sld [smem:[#allocation7 + $0x80c]]
    %v1198 = vstv %s1197
    %v1199 = vmul.f32 %v1178, %v1198
    %v1200 = vmul.f32 %v1179, %v1198
    %v1201 = vmul.f32 %v1180, %v1198
    %v1202 = vadd.f32 %v1159, %v1199
    %v1203 = vadd.f32 %v1160, %v1200
    %v1204 = vadd.f32 %v1161, %v1201
    %v1205 = vtanh.pop %v1186
    %v1206 = vtanh.pop %v1187
    %v1207 = vtanh.pop %v1188
    %s1208 = scalar_lea.vmem %s3, 120
    %1209 = vst [vmem:[%s1208] sm:$0xff] %v1205
    %1210 = vst [vmem:[%s1208 + $0x8] sm:$0xff] %v1206
    %1211 = vst [vmem:[%s1208 + $0x10] sm:$0xf] %v1207
    %v1212 = vtanh.pop %v1194
    %v1213 = vtanh.pop %v1195
    %v1214 = vtanh.pop %v1196
    %s1215 = scalar_lea.vmem %s3, 144
    %1216 = vst [vmem:[%s1215] sm:$0xff] %v1212
    %1217 = vst [vmem:[%s1215 + $0x8] sm:$0xff] %v1213
    %1218 = vst [vmem:[%s1215 + $0x10] sm:$0xf] %v1214
    %v1219 = vtanh.pop %v1202
    %v1220 = vtanh.pop %v1203
    %v1221 = vtanh.pop %v1204
    %s1222 = scalar_lea.vmem %s3, 168
    %1223 = vst [vmem:[%s1222] sm:$0xff] %v1219
    %1224 = vst [vmem:[%s1222 + $0x8] sm:$0xff] %v1220
    %1225 = vst [vmem:[%s1222 + $0x10] sm:$0xf] %v1221
    %v1226 = vtanh.pop %v1167
    %v1227 = vtanh.pop %v1168
    %v1228 = vtanh.pop %v1169
    %s1229 = scalar_lea.vmem %s3, 192
    %1230 = vst [vmem:[%s1229] sm:$0xff] %v1226
    %1231 = vst [vmem:[%s1229 + $0x8] sm:$0xff] %v1227
    %1232 = vst [vmem:[%s1229 + $0x10] sm:$0xf] %v1228
    %v1233 = vtanh.pop %v1175
    %v1234 = vtanh.pop %v1176
    %v1235 = vtanh.pop %v1177
    %s1236 = scalar_lea.vmem %s3, 216
    %1237 = vst [vmem:[%s1236] sm:$0xff] %v1233
    %1238 = vst [vmem:[%s1236 + $0x8] sm:$0xff] %v1234
    %1239 = vst [vmem:[%s1236 + $0x10] sm:$0xf] %v1235
    %v1240 = vld [vmem:[#allocation2] sm:$0xff]
    %v1241 = vld [vmem:[#allocation2 + $0x8] sm:$0xff]
    %v1242 = vld [vmem:[#allocation2 + $0x10] sm:$0xf]
    %s1243 = sld [smem:[#allocation7 + $0x100]]
    %v1244 = vstv %s1243
    %v1245 = vmul.f32 %v1240, %v1244
    %v1246 = vmul.f32 %v1241, %v1244
    %v1247 = vmul.f32 %v1242, %v1244
    %v1248 = vadd.f32 %v153, %v1245
    %v1249 = vadd.f32 %v153, %v1246
    %v1250 = vadd.f32 %v153, %v1247
    %s1251 = sld [smem:[#allocation7 + $0x101]]
    %v1252 = vstv %s1251
    %v1253 = vmul.f32 %v1240, %v1252
    %v1254 = vmul.f32 %v1241, %v1252
    %v1255 = vmul.f32 %v1242, %v1252
    %v1256 = vadd.f32 %v153, %v1253
    %v1257 = vadd.f32 %v153, %v1254
    %v1258 = vadd.f32 %v153, %v1255
    %s1259 = sld [smem:[#allocation7 + $0x102]]
    %v1260 = vstv %s1259
    %v1261 = vmul.f32 %v1240, %v1260
    %v1262 = vmul.f32 %v1241, %v1260
    %v1263 = vmul.f32 %v1242, %v1260
    %v1264 = vadd.f32 %v153, %v1261
    %v1265 = vadd.f32 %v153, %v1262
    %v1266 = vadd.f32 %v153, %v1263
    %s1267 = sld [smem:[#allocation7 + $0x103]]
    %v1268 = vstv %s1267
    %v1269 = vmul.f32 %v1240, %v1268
    %v1270 = vmul.f32 %v1241, %v1268
    %v1271 = vmul.f32 %v1242, %v1268
    %v1272 = vadd.f32 %v153, %v1269
    %v1273 = vadd.f32 %v153, %v1270
    %v1274 = vadd.f32 %v153, %v1271
    %s1275 = sld [smem:[#allocation7 + $0x104]]
    %v1276 = vstv %s1275
    %v1277 = vmul.f32 %v1240, %v1276
    %v1278 = vmul.f32 %v1241, %v1276
    %v1279 = vmul.f32 %v1242, %v1276
    %v1280 = vadd.f32 %v153, %v1277
    %v1281 = vadd.f32 %v153, %v1278
    %v1282 = vadd.f32 %v153, %v1279
    %v1283 = vld [vmem:[%s102] sm:$0xff]
    %v1284 = vld [vmem:[%s102 + $0x8] sm:$0xff]
    %v1285 = vld [vmem:[%s102 + $0x10] sm:$0xf]
    %s1286 = sld [smem:[#allocation7 + $0x105]]
    %v1287 = vstv %s1286
    %v1288 = vmul.f32 %v1283, %v1287
    %v1289 = vmul.f32 %v1284, %v1287
    %v1290 = vmul.f32 %v1285, %v1287
    %v1291 = vadd.f32 %v1248, %v1288
    %v1292 = vadd.f32 %v1249, %v1289
    %v1293 = vadd.f32 %v1250, %v1290
    %s1294 = sld [smem:[#allocation7 + $0x106]]
    %v1295 = vstv %s1294
    %v1296 = vmul.f32 %v1283, %v1295
    %v1297 = vmul.f32 %v1284, %v1295
    %v1298 = vmul.f32 %v1285, %v1295
    %v1299 = vadd.f32 %v1256, %v1296
    %v1300 = vadd.f32 %v1257, %v1297
    %v1301 = vadd.f32 %v1258, %v1298
    %s1302 = sld [smem:[#allocation7 + $0x107]]
    %v1303 = vstv %s1302
    %v1304 = vmul.f32 %v1283, %v1303
    %v1305 = vmul.f32 %v1284, %v1303
    %v1306 = vmul.f32 %v1285, %v1303
    %v1307 = vadd.f32 %v1264, %v1304
    %v1308 = vadd.f32 %v1265, %v1305
    %v1309 = vadd.f32 %v1266, %v1306
    %s1310 = sld [smem:[#allocation7 + $0x108]]
    %v1311 = vstv %s1310
    %v1312 = vmul.f32 %v1283, %v1311
    %v1313 = vmul.f32 %v1284, %v1311
    %v1314 = vmul.f32 %v1285, %v1311
    %v1315 = vadd.f32 %v1272, %v1312
    %v1316 = vadd.f32 %v1273, %v1313
    %v1317 = vadd.f32 %v1274, %v1314
    %s1318 = sld [smem:[#allocation7 + $0x109]]
    %v1319 = vstv %s1318
    %v1320 = vmul.f32 %v1283, %v1319
    %v1321 = vmul.f32 %v1284, %v1319
    %v1322 = vmul.f32 %v1285, %v1319
    %v1323 = vadd.f32 %v1280, %v1320
    %v1324 = vadd.f32 %v1281, %v1321
    %v1325 = vadd.f32 %v1282, %v1322
    %v1326 = vld [vmem:[%s112] sm:$0xff]
    %v1327 = vld [vmem:[%s112 + $0x8] sm:$0xff]
    %v1328 = vld [vmem:[%s112 + $0x10] sm:$0xf]
    %s1329 = sld [smem:[#allocation7 + $0x10a]]
    %v1330 = vstv %s1329
    %v1331 = vmul.f32 %v1326, %v1330
    %v1332 = vmul.f32 %v1327, %v1330
    %v1333 = vmul.f32 %v1328, %v1330
    %v1334 = vadd.f32 %v1291, %v1331
    %v1335 = vadd.f32 %v1292, %v1332
    %v1336 = vadd.f32 %v1293, %v1333
    %s1337 = sld [smem:[#allocation7 + $0x10b]]
    %v1338 = vstv %s1337
    %v1339 = vmul.f32 %v1326, %v1338
    %v1340 = vmul.f32 %v1327, %v1338
    %v1341 = vmul.f32 %v1328, %v1338
    %v1342 = vadd.f32 %v1299, %v1339
    %v1343 = vadd.f32 %v1300, %v1340
    %v1344 = vadd.f32 %v1301, %v1341
    %s1345 = sld [smem:[#allocation7 + $0x10c]]
    %v1346 = vstv %s1345
    %v1347 = vmul.f32 %v1326, %v1346
    %v1348 = vmul.f32 %v1327, %v1346
    %v1349 = vmul.f32 %v1328, %v1346
    %v1350 = vadd.f32 %v1307, %v1347
    %v1351 = vadd.f32 %v1308, %v1348
    %v1352 = vadd.f32 %v1309, %v1349
    %v1353 = vld [vmem:[%s116] sm:$0xff]
    %v1354 = vld [vmem:[%s116 + $0x8] sm:$0xff]
    %v1355 = vld [vmem:[%s116 + $0x10] sm:$0xf]
    %s1356 = sld [smem:[#allocation7 + $0x380]]
    %v1357 = vstv %s1356
    %v1358 = vmul.f32 %v1353, %v1357
    %v1359 = vmul.f32 %v1354, %v1357
    %v1360 = vmul.f32 %v1355, %v1357
    %v1361 = vadd.f32 %v1334, %v1358
    %v1362 = vadd.f32 %v1335, %v1359
    %v1363 = vadd.f32 %v1336, %v1360
    %s1364 = sld [smem:[#allocation7 + $0x381]]
    %v1365 = vstv %s1364
    %v1366 = vmul.f32 %v1353, %v1365
    %v1367 = vmul.f32 %v1354, %v1365
    %v1368 = vmul.f32 %v1355, %v1365
    %v1369 = vadd.f32 %v1342, %v1366
    %v1370 = vadd.f32 %v1343, %v1367
    %v1371 = vadd.f32 %v1344, %v1368
    %s1372 = sld [smem:[#allocation7 + $0x382]]
    %v1373 = vstv %s1372
    %v1374 = vmul.f32 %v1353, %v1373
    %v1375 = vmul.f32 %v1354, %v1373
    %v1376 = vmul.f32 %v1355, %v1373
    %v1377 = vadd.f32 %v1350, %v1374
    %v1378 = vadd.f32 %v1351, %v1375
    %v1379 = vadd.f32 %v1352, %v1376
    %s1380 = sld [smem:[#allocation7 + $0x383]]
    %v1381 = vstv %s1380
    %v1382 = vmul.f32 %v1353, %v1381
    %v1383 = vmul.f32 %v1354, %v1381
    %v1384 = vmul.f32 %v1355, %v1381
    %v1385 = vadd.f32 %v1315, %v1382
    %v1386 = vadd.f32 %v1316, %v1383
    %v1387 = vadd.f32 %v1317, %v1384
    %s1388 = sld [smem:[#allocation7 + $0x384]]
    %v1389 = vstv %s1388
    %v1390 = vmul.f32 %v1353, %v1389
    %v1391 = vmul.f32 %v1354, %v1389
    %v1392 = vmul.f32 %v1355, %v1389
    %v1393 = vadd.f32 %v1323, %v1390
    %v1394 = vadd.f32 %v1324, %v1391
    %v1395 = vadd.f32 %v1325, %v1392
    %v1396 = vld [vmem:[%s119] sm:$0xff]
    %v1397 = vld [vmem:[%s119 + $0x8] sm:$0xff]
    %v1398 = vld [vmem:[%s119 + $0x10] sm:$0xf]
    %s1399 = sld [smem:[#allocation7 + $0x385]]
    %v1400 = vstv %s1399
    %v1401 = vmul.f32 %v1396, %v1400
    %v1402 = vmul.f32 %v1397, %v1400
    %v1403 = vmul.f32 %v1398, %v1400
    %v1404 = vadd.f32 %v1361, %v1401
    %v1405 = vadd.f32 %v1362, %v1402
    %v1406 = vadd.f32 %v1363, %v1403
    %s1407 = sld [smem:[#allocation7 + $0x386]]
    %v1408 = vstv %s1407
    %v1409 = vmul.f32 %v1396, %v1408
    %v1410 = vmul.f32 %v1397, %v1408
    %v1411 = vmul.f32 %v1398, %v1408
    %v1412 = vadd.f32 %v1369, %v1409
    %v1413 = vadd.f32 %v1370, %v1410
    %v1414 = vadd.f32 %v1371, %v1411
    %s1415 = sld [smem:[#allocation7 + $0x387]]
    %v1416 = vstv %s1415
    %v1417 = vmul.f32 %v1396, %v1416
    %v1418 = vmul.f32 %v1397, %v1416
    %v1419 = vmul.f32 %v1398, %v1416
    %v1420 = vadd.f32 %v1377, %v1417
    %v1421 = vadd.f32 %v1378, %v1418
    %v1422 = vadd.f32 %v1379, %v1419
    %s1423 = sld [smem:[#allocation7 + $0x388]]
    %v1424 = vstv %s1423
    %v1425 = vmul.f32 %v1396, %v1424
    %v1426 = vmul.f32 %v1397, %v1424
    %v1427 = vmul.f32 %v1398, %v1424
    %v1428 = vadd.f32 %v1385, %v1425
    %v1429 = vadd.f32 %v1386, %v1426
    %v1430 = vadd.f32 %v1387, %v1427
    %s1431 = sld [smem:[#allocation7 + $0x389]]
    %v1432 = vstv %s1431
    %v1433 = vmul.f32 %v1396, %v1432
    %v1434 = vmul.f32 %v1397, %v1432
    %v1435 = vmul.f32 %v1398, %v1432
    %v1436 = vadd.f32 %v1393, %v1433
    %v1437 = vadd.f32 %v1394, %v1434
    %v1438 = vadd.f32 %v1395, %v1435
    %v1439 = vld [vmem:[%s122] sm:$0xff]
    %v1440 = vld [vmem:[%s122 + $0x8] sm:$0xff]
    %v1441 = vld [vmem:[%s122 + $0x10] sm:$0xf]
    %s1442 = sld [smem:[#allocation7 + $0x38a]]
    %v1443 = vstv %s1442
    %v1444 = vmul.f32 %v1439, %v1443
    %v1445 = vmul.f32 %v1440, %v1443
    %v1446 = vmul.f32 %v1441, %v1443
    %v1447 = vadd.f32 %v1404, %v1444
    %v1448 = vadd.f32 %v1405, %v1445
    %v1449 = vadd.f32 %v1406, %v1446
    %s1450 = sld [smem:[#allocation7 + $0x38b]]
    %v1451 = vstv %s1450
    %v1452 = vmul.f32 %v1439, %v1451
    %v1453 = vmul.f32 %v1440, %v1451
    %v1454 = vmul.f32 %v1441, %v1451
    %v1455 = vadd.f32 %v1412, %v1452
    %v1456 = vadd.f32 %v1413, %v1453
    %v1457 = vadd.f32 %v1414, %v1454
    %s1458 = sld [smem:[#allocation7 + $0x38c]]
    %v1459 = vstv %s1458
    %v1460 = vmul.f32 %v1439, %v1459
    %v1461 = vmul.f32 %v1440, %v1459
    %v1462 = vmul.f32 %v1441, %v1459
    %v1463 = vadd.f32 %v1420, %v1460
    %v1464 = vadd.f32 %v1421, %v1461
    %v1465 = vadd.f32 %v1422, %v1462
    %v1466 = vld [vmem:[%s125] sm:$0xff]
    %v1467 = vld [vmem:[%s125 + $0x8] sm:$0xff]
    %v1468 = vld [vmem:[%s125 + $0x10] sm:$0xf]
    %s1469 = sld [smem:[#allocation7 + $0x600]]
    %v1470 = vstv %s1469
    %v1471 = vmul.f32 %v1466, %v1470
    %v1472 = vmul.f32 %v1467, %v1470
    %v1473 = vmul.f32 %v1468, %v1470
    %v1474 = vadd.f32 %v1447, %v1471
    %v1475 = vadd.f32 %v1448, %v1472
    %v1476 = vadd.f32 %v1449, %v1473
    %s1477 = sld [smem:[#allocation7 + $0x601]]
    %v1478 = vstv %s1477
    %v1479 = vmul.f32 %v1466, %v1478
    %v1480 = vmul.f32 %v1467, %v1478
    %v1481 = vmul.f32 %v1468, %v1478
    %v1482 = vadd.f32 %v1455, %v1479
    %v1483 = vadd.f32 %v1456, %v1480
    %v1484 = vadd.f32 %v1457, %v1481
    %s1485 = sld [smem:[#allocation7 + $0x602]]
    %v1486 = vstv %s1485
    %v1487 = vmul.f32 %v1466, %v1486
    %v1488 = vmul.f32 %v1467, %v1486
    %v1489 = vmul.f32 %v1468, %v1486
    %v1490 = vadd.f32 %v1463, %v1487
    %v1491 = vadd.f32 %v1464, %v1488
    %v1492 = vadd.f32 %v1465, %v1489
    %s1493 = sld [smem:[#allocation7 + $0x603]]
    %v1494 = vstv %s1493
    %v1495 = vmul.f32 %v1466, %v1494
    %v1496 = vmul.f32 %v1467, %v1494
    %v1497 = vmul.f32 %v1468, %v1494
    %v1498 = vadd.f32 %v1428, %v1495
    %v1499 = vadd.f32 %v1429, %v1496
    %v1500 = vadd.f32 %v1430, %v1497
    %s1501 = sld [smem:[#allocation7 + $0x604]]
    %v1502 = vstv %s1501
    %v1503 = vmul.f32 %v1466, %v1502
    %v1504 = vmul.f32 %v1467, %v1502
    %v1505 = vmul.f32 %v1468, %v1502
    %v1506 = vadd.f32 %v1436, %v1503
    %v1507 = vadd.f32 %v1437, %v1504
    %v1508 = vadd.f32 %v1438, %v1505
    %v1509 = vld [vmem:[%s128] sm:$0xff]
    %v1510 = vld [vmem:[%s128 + $0x8] sm:$0xff]
    %v1511 = vld [vmem:[%s128 + $0x10] sm:$0xf]
    %s1512 = sld [smem:[#allocation7 + $0x605]]
    %v1513 = vstv %s1512
    %v1514 = vmul.f32 %v1509, %v1513
    %v1515 = vmul.f32 %v1510, %v1513
    %v1516 = vmul.f32 %v1511, %v1513
    %v1517 = vadd.f32 %v1474, %v1514
    %v1518 = vadd.f32 %v1475, %v1515
    %v1519 = vadd.f32 %v1476, %v1516
    %s1520 = sld [smem:[#allocation7 + $0x606]]
    %v1521 = vstv %s1520
    %v1522 = vmul.f32 %v1509, %v1521
    %v1523 = vmul.f32 %v1510, %v1521
    %v1524 = vmul.f32 %v1511, %v1521
    %v1525 = vadd.f32 %v1482, %v1522
    %v1526 = vadd.f32 %v1483, %v1523
    %v1527 = vadd.f32 %v1484, %v1524
    %s1528 = sld [smem:[#allocation7 + $0x607]]
    %v1529 = vstv %s1528
    %v1530 = vmul.f32 %v1509, %v1529
    %v1531 = vmul.f32 %v1510, %v1529
    %v1532 = vmul.f32 %v1511, %v1529
    %v1533 = vadd.f32 %v1490, %v1530
    %v1534 = vadd.f32 %v1491, %v1531
    %v1535 = vadd.f32 %v1492, %v1532
    %s1536 = sld [smem:[#allocation7 + $0x608]]
    %v1537 = vstv %s1536
    %v1538 = vmul.f32 %v1509, %v1537
    %v1539 = vmul.f32 %v1510, %v1537
    %v1540 = vmul.f32 %v1511, %v1537
    %v1541 = vadd.f32 %v1498, %v1538
    %v1542 = vadd.f32 %v1499, %v1539
    %v1543 = vadd.f32 %v1500, %v1540
    %s1544 = sld [smem:[#allocation7 + $0x609]]
    %v1545 = vstv %s1544
    %v1546 = vmul.f32 %v1509, %v1545
    %v1547 = vmul.f32 %v1510, %v1545
    %v1548 = vmul.f32 %v1511, %v1545
    %v1549 = vadd.f32 %v1506, %v1546
    %v1550 = vadd.f32 %v1507, %v1547
    %v1551 = vadd.f32 %v1508, %v1548
    %v1552 = vld [vmem:[%s131] sm:$0xff]
    %v1553 = vld [vmem:[%s131 + $0x8] sm:$0xff]
    %v1554 = vld [vmem:[%s131 + $0x10] sm:$0xf]
    %s1555 = sld [smem:[#allocation7 + $0x60a]]
    %v1556 = vstv %s1555
    %v1557 = vmul.f32 %v1552, %v1556
    %v1558 = vmul.f32 %v1553, %v1556
    %v1559 = vmul.f32 %v1554, %v1556
    %v1560 = vadd.f32 %v1517, %v1557
    %v1561 = vadd.f32 %v1518, %v1558
    %v1562 = vadd.f32 %v1519, %v1559
    %s1563 = sld [smem:[#allocation7 + $0x60b]]
    %v1564 = vstv %s1563
    %v1565 = vmul.f32 %v1552, %v1564
    %v1566 = vmul.f32 %v1553, %v1564
    %v1567 = vmul.f32 %v1554, %v1564
    %v1568 = vadd.f32 %v1525, %v1565
    %v1569 = vadd.f32 %v1526, %v1566
    %v1570 = vadd.f32 %v1527, %v1567
    %s1571 = sld [smem:[#allocation7 + $0x60c]]
    %v1572 = vstv %s1571
    %v1573 = vmul.f32 %v1552, %v1572
    %v1574 = vmul.f32 %v1553, %v1572
    %v1575 = vmul.f32 %v1554, %v1572
    %v1576 = vadd.f32 %v1533, %v1573
    %v1577 = vadd.f32 %v1534, %v1574
    %v1578 = vadd.f32 %v1535, %v1575
    %v1579 = vld [vmem:[%s134] sm:$0xff]
    %v1580 = vld [vmem:[%s134 + $0x8] sm:$0xff]
    %v1581 = vld [vmem:[%s134 + $0x10] sm:$0xf]
    %s1582 = sld [smem:[#allocation7 + $0x880]]
    %v1583 = vstv %s1582
    %v1584 = vmul.f32 %v1579, %v1583
    %v1585 = vmul.f32 %v1580, %v1583
    %v1586 = vmul.f32 %v1581, %v1583
    %v1587 = vadd.f32 %v1560, %v1584
    %v1588 = vadd.f32 %v1561, %v1585
    %v1589 = vadd.f32 %v1562, %v1586
    %s1590 = sld [smem:[#allocation7 + $0x881]]
    %v1591 = vstv %s1590
    %v1592 = vmul.f32 %v1579, %v1591
    %v1593 = vmul.f32 %v1580, %v1591
    %v1594 = vmul.f32 %v1581, %v1591
    %v1595 = vadd.f32 %v1568, %v1592
    %v1596 = vadd.f32 %v1569, %v1593
    %v1597 = vadd.f32 %v1570, %v1594
    %s1598 = sld [smem:[#allocation7 + $0x882]]
    %v1599 = vstv %s1598
    %v1600 = vmul.f32 %v1579, %v1599
    %v1601 = vmul.f32 %v1580, %v1599
    %v1602 = vmul.f32 %v1581, %v1599
    %v1603 = vadd.f32 %v1576, %v1600
    %v1604 = vadd.f32 %v1577, %v1601
    %v1605 = vadd.f32 %v1578, %v1602
    %s1606 = sld [smem:[#allocation7 + $0x883]]
    %v1607 = vstv %s1606
    %v1608 = vmul.f32 %v1579, %v1607
    %v1609 = vmul.f32 %v1580, %v1607
    %v1610 = vmul.f32 %v1581, %v1607
    %v1611 = vadd.f32 %v1541, %v1608
    %v1612 = vadd.f32 %v1542, %v1609
    %v1613 = vadd.f32 %v1543, %v1610
    %s1614 = sld [smem:[#allocation7 + $0x884]]
    %v1615 = vstv %s1614
    %v1616 = vmul.f32 %v1579, %v1615
    %v1617 = vmul.f32 %v1580, %v1615
    %v1618 = vmul.f32 %v1581, %v1615
    %v1619 = vadd.f32 %v1549, %v1616
    %v1620 = vadd.f32 %v1550, %v1617
    %v1621 = vadd.f32 %v1551, %v1618
    %v1622 = vld [vmem:[%s137] sm:$0xff]
    %v1623 = vld [vmem:[%s137 + $0x8] sm:$0xff]
    %v1624 = vld [vmem:[%s137 + $0x10] sm:$0xf]
    %s1625 = sld [smem:[#allocation7 + $0x885]]
    %v1626 = vstv %s1625
    %v1627 = vmul.f32 %v1622, %v1626
    %v1628 = vmul.f32 %v1623, %v1626
    %v1629 = vmul.f32 %v1624, %v1626
    %v1630 = vadd.f32 %v1587, %v1627
    %v1631 = vadd.f32 %v1588, %v1628
    %v1632 = vadd.f32 %v1589, %v1629
    %s1633 = sld [smem:[#allocation7 + $0x886]]
    %v1634 = vstv %s1633
    %v1635 = vmul.f32 %v1622, %v1634
    %v1636 = vmul.f32 %v1623, %v1634
    %v1637 = vmul.f32 %v1624, %v1634
    %v1638 = vadd.f32 %v1595, %v1635
    %v1639 = vadd.f32 %v1596, %v1636
    %v1640 = vadd.f32 %v1597, %v1637
    %s1641 = sld [smem:[#allocation7 + $0x887]]
    %v1642 = vstv %s1641
    %v1643 = vmul.f32 %v1622, %v1642
    %v1644 = vmul.f32 %v1623, %v1642
    %v1645 = vmul.f32 %v1624, %v1642
    %v1646 = vadd.f32 %v1603, %v1643
    %v1647 = vadd.f32 %v1604, %v1644
    %v1648 = vadd.f32 %v1605, %v1645
    %s1649 = sld [smem:[#allocation7 + $0x888]]
    %v1650 = vstv %s1649
    %v1651 = vmul.f32 %v1622, %v1650
    %v1652 = vmul.f32 %v1623, %v1650
    %v1653 = vmul.f32 %v1624, %v1650
    %v1654 = vadd.f32 %v1611, %v1651
    %v1655 = vadd.f32 %v1612, %v1652
    %v1656 = vadd.f32 %v1613, %v1653
    %s1657 = sld [smem:[#allocation7 + $0x889]]
    %v1658 = vstv %s1657
    %v1659 = vmul.f32 %v1622, %v1658
    %v1660 = vmul.f32 %v1623, %v1658
    %v1661 = vmul.f32 %v1624, %v1658
    %v1662 = vadd.f32 %v1619, %v1659
    %v1663 = vadd.f32 %v1620, %v1660
    %v1664 = vadd.f32 %v1621, %v1661
    %v1665 = vld [vmem:[%s140] sm:$0xff]
    %v1666 = vld [vmem:[%s140 + $0x8] sm:$0xff]
    %v1667 = vld [vmem:[%s140 + $0x10] sm:$0xf]
    %s1668 = sld [smem:[#allocation7 + $0x88a]]
    %v1669 = vstv %s1668
    %v1670 = vmul.f32 %v1665, %v1669
    %v1671 = vmul.f32 %v1666, %v1669
    %v1672 = vmul.f32 %v1667, %v1669
    %v1673 = vadd.f32 %v1630, %v1670
    %v1674 = vadd.f32 %v1631, %v1671
    %v1675 = vadd.f32 %v1632, %v1672
    %s1676 = sld [smem:[#allocation7 + $0x88b]]
    %v1677 = vstv %s1676
    %v1678 = vmul.f32 %v1665, %v1677
    %v1679 = vmul.f32 %v1666, %v1677
    %v1680 = vmul.f32 %v1667, %v1677
    %v1681 = vadd.f32 %v1638, %v1678
    %v1682 = vadd.f32 %v1639, %v1679
    %v1683 = vadd.f32 %v1640, %v1680
    %s1684 = sld [smem:[#allocation7 + $0x88c]]
    %v1685 = vstv %s1684
    %v1686 = vmul.f32 %v1665, %v1685
    %v1687 = vmul.f32 %v1666, %v1685
    %v1688 = vmul.f32 %v1667, %v1685
    %v1689 = vadd.f32 %v1646, %v1686
    %v1690 = vadd.f32 %v1647, %v1687
    %v1691 = vadd.f32 %v1648, %v1688
    %v1692 = vtanh.pop %v1673
    %v1693 = vtanh.pop %v1674
    %v1694 = vtanh.pop %v1675
    %s1695 = scalar_lea.vmem %s3, 240
    %1696 = vst [vmem:[%s1695] sm:$0xff] %v1692
    %1697 = vst [vmem:[%s1695 + $0x8] sm:$0xff] %v1693
    %1698 = vst [vmem:[%s1695 + $0x10] sm:$0xf] %v1694
    %v1699 = vtanh.pop %v1681
    %v1700 = vtanh.pop %v1682
    %v1701 = vtanh.pop %v1683
    %s1702 = scalar_lea.vmem %s3, 264
    %1703 = vst [vmem:[%s1702] sm:$0xff] %v1699
    %1704 = vst [vmem:[%s1702 + $0x8] sm:$0xff] %v1700
    %1705 = vst [vmem:[%s1702 + $0x10] sm:$0xf] %v1701
    %v1706 = vtanh.pop %v1689
    %v1707 = vtanh.pop %v1690
    %v1708 = vtanh.pop %v1691
    %s1709 = scalar_lea.vmem %s3, 288
    %1710 = vst [vmem:[%s1709] sm:$0xff] %v1706
    %1711 = vst [vmem:[%s1709 + $0x8] sm:$0xff] %v1707
    %1712 = vst [vmem:[%s1709 + $0x10] sm:$0xf] %v1708
    %v1713 = vtanh.pop %v1654
    %v1714 = vtanh.pop %v1655
    %v1715 = vtanh.pop %v1656
    %s1716 = scalar_lea.vmem %s3, 312
    %1717 = vst [vmem:[%s1716] sm:$0xff] %v1713
    %1718 = vst [vmem:[%s1716 + $0x8] sm:$0xff] %v1714
    %1719 = vst [vmem:[%s1716 + $0x10] sm:$0xf] %v1715
    %v1720 = vtanh.pop %v1662
    %v1721 = vtanh.pop %v1663
    %v1722 = vtanh.pop %v1664
    %s1723 = scalar_lea.vmem %s3, 336
    %1724 = vst [vmem:[%s1723] sm:$0xff] %v1720
    %1725 = vst [vmem:[%s1723 + $0x8] sm:$0xff] %v1721
    %1726 = vst [vmem:[%s1723 + $0x10] sm:$0xf] %v1722
    %v1727 = vld [vmem:[#allocation2] sm:$0xff]
    %v1728 = vld [vmem:[#allocation2 + $0x8] sm:$0xff]
    %v1729 = vld [vmem:[#allocation2 + $0x10] sm:$0xf]
    %s1730 = sld [smem:[#allocation7 + $0x180]]
    %v1731 = vstv %s1730
    %v1732 = vmul.f32 %v1727, %v1731
    %v1733 = vmul.f32 %v1728, %v1731
    %v1734 = vmul.f32 %v1729, %v1731
    %v1735 = vadd.f32 %v153, %v1732
    %v1736 = vadd.f32 %v153, %v1733
    %v1737 = vadd.f32 %v153, %v1734
    %s1738 = sld [smem:[#allocation7 + $0x181]]
    %v1739 = vstv %s1738
    %v1740 = vmul.f32 %v1727, %v1739
    %v1741 = vmul.f32 %v1728, %v1739
    %v1742 = vmul.f32 %v1729, %v1739
    %v1743 = vadd.f32 %v153, %v1740
    %v1744 = vadd.f32 %v153, %v1741
    %v1745 = vadd.f32 %v153, %v1742
    %s1746 = sld [smem:[#allocation7 + $0x182]]
    %v1747 = vstv %s1746
    %v1748 = vmul.f32 %v1727, %v1747
    %v1749 = vmul.f32 %v1728, %v1747
    %v1750 = vmul.f32 %v1729, %v1747
    %v1751 = vadd.f32 %v153, %v1748
    %v1752 = vadd.f32 %v153, %v1749
    %v1753 = vadd.f32 %v153, %v1750
    %s1754 = sld [smem:[#allocation7 + $0x183]]
    %v1755 = vstv %s1754
    %v1756 = vmul.f32 %v1727, %v1755
    %v1757 = vmul.f32 %v1728, %v1755
    %v1758 = vmul.f32 %v1729, %v1755
    %v1759 = vadd.f32 %v153, %v1756
    %v1760 = vadd.f32 %v153, %v1757
    %v1761 = vadd.f32 %v153, %v1758
    %s1762 = sld [smem:[#allocation7 + $0x184]]
    %v1763 = vstv %s1762
    %v1764 = vmul.f32 %v1727, %v1763
    %v1765 = vmul.f32 %v1728, %v1763
    %v1766 = vmul.f32 %v1729, %v1763
    %v1767 = vadd.f32 %v153, %v1764
    %v1768 = vadd.f32 %v153, %v1765
    %v1769 = vadd.f32 %v153, %v1766
    %v1770 = vld [vmem:[%s102] sm:$0xff]
    %v1771 = vld [vmem:[%s102 + $0x8] sm:$0xff]
    %v1772 = vld [vmem:[%s102 + $0x10] sm:$0xf]
    %s1773 = sld [smem:[#allocation7 + $0x185]]
    %v1774 = vstv %s1773
    %v1775 = vmul.f32 %v1770, %v1774
    %v1776 = vmul.f32 %v1771, %v1774
    %v1777 = vmul.f32 %v1772, %v1774
    %v1778 = vadd.f32 %v1735, %v1775
    %v1779 = vadd.f32 %v1736, %v1776
    %v1780 = vadd.f32 %v1737, %v1777
    %s1781 = sld [smem:[#allocation7 + $0x186]]
    %v1782 = vstv %s1781
    %v1783 = vmul.f32 %v1770, %v1782
    %v1784 = vmul.f32 %v1771, %v1782
    %v1785 = vmul.f32 %v1772, %v1782
    %v1786 = vadd.f32 %v1743, %v1783
    %v1787 = vadd.f32 %v1744, %v1784
    %v1788 = vadd.f32 %v1745, %v1785
    %s1789 = sld [smem:[#allocation7 + $0x187]]
    %v1790 = vstv %s1789
    %v1791 = vmul.f32 %v1770, %v1790
    %v1792 = vmul.f32 %v1771, %v1790
    %v1793 = vmul.f32 %v1772, %v1790
    %v1794 = vadd.f32 %v1751, %v1791
    %v1795 = vadd.f32 %v1752, %v1792
    %v1796 = vadd.f32 %v1753, %v1793
    %s1797 = sld [smem:[#allocation7 + $0x188]]
    %v1798 = vstv %s1797
    %v1799 = vmul.f32 %v1770, %v1798
    %v1800 = vmul.f32 %v1771, %v1798
    %v1801 = vmul.f32 %v1772, %v1798
    %v1802 = vadd.f32 %v1759, %v1799
    %v1803 = vadd.f32 %v1760, %v1800
    %v1804 = vadd.f32 %v1761, %v1801
    %s1805 = sld [smem:[#allocation7 + $0x189]]
    %v1806 = vstv %s1805
    %v1807 = vmul.f32 %v1770, %v1806
    %v1808 = vmul.f32 %v1771, %v1806
    %v1809 = vmul.f32 %v1772, %v1806
    %v1810 = vadd.f32 %v1767, %v1807
    %v1811 = vadd.f32 %v1768, %v1808
    %v1812 = vadd.f32 %v1769, %v1809
    %v1813 = vld [vmem:[%s112] sm:$0xff]
    %v1814 = vld [vmem:[%s112 + $0x8] sm:$0xff]
    %v1815 = vld [vmem:[%s112 + $0x10] sm:$0xf]
    %s1816 = sld [smem:[#allocation7 + $0x18a]]
    %v1817 = vstv %s1816
    %v1818 = vmul.f32 %v1813, %v1817
    %v1819 = vmul.f32 %v1814, %v1817
    %v1820 = vmul.f32 %v1815, %v1817
    %v1821 = vadd.f32 %v1778, %v1818
    %v1822 = vadd.f32 %v1779, %v1819
    %v1823 = vadd.f32 %v1780, %v1820
    %s1824 = sld [smem:[#allocation7 + $0x18b]]
    %v1825 = vstv %s1824
    %v1826 = vmul.f32 %v1813, %v1825
    %v1827 = vmul.f32 %v1814, %v1825
    %v1828 = vmul.f32 %v1815, %v1825
    %v1829 = vadd.f32 %v1786, %v1826
    %v1830 = vadd.f32 %v1787, %v1827
    %v1831 = vadd.f32 %v1788, %v1828
    %s1832 = sld [smem:[#allocation7 + $0x18c]]
    %v1833 = vstv %s1832
    %v1834 = vmul.f32 %v1813, %v1833
    %v1835 = vmul.f32 %v1814, %v1833
    %v1836 = vmul.f32 %v1815, %v1833
    %v1837 = vadd.f32 %v1794, %v1834
    %v1838 = vadd.f32 %v1795, %v1835
    %v1839 = vadd.f32 %v1796, %v1836
    %v1840 = vld [vmem:[%s116] sm:$0xff]
    %v1841 = vld [vmem:[%s116 + $0x8] sm:$0xff]
    %v1842 = vld [vmem:[%s116 + $0x10] sm:$0xf]
    %s1843 = sld [smem:[#allocation7 + $0x400]]
    %v1844 = vstv %s1843
    %v1845 = vmul.f32 %v1840, %v1844
    %v1846 = vmul.f32 %v1841, %v1844
    %v1847 = vmul.f32 %v1842, %v1844
    %v1848 = vadd.f32 %v1821, %v1845
    %v1849 = vadd.f32 %v1822, %v1846
    %v1850 = vadd.f32 %v1823, %v1847
    %s1851 = sld [smem:[#allocation7 + $0x401]]
    %v1852 = vstv %s1851
    %v1853 = vmul.f32 %v1840, %v1852
    %v1854 = vmul.f32 %v1841, %v1852
    %v1855 = vmul.f32 %v1842, %v1852
    %v1856 = vadd.f32 %v1829, %v1853
    %v1857 = vadd.f32 %v1830, %v1854
    %v1858 = vadd.f32 %v1831, %v1855
    %s1859 = sld [smem:[#allocation7 + $0x402]]
    %v1860 = vstv %s1859
    %v1861 = vmul.f32 %v1840, %v1860
    %v1862 = vmul.f32 %v1841, %v1860
    %v1863 = vmul.f32 %v1842, %v1860
    %v1864 = vadd.f32 %v1837, %v1861
    %v1865 = vadd.f32 %v1838, %v1862
    %v1866 = vadd.f32 %v1839, %v1863
    %s1867 = sld [smem:[#allocation7 + $0x403]]
    %v1868 = vstv %s1867
    %v1869 = vmul.f32 %v1840, %v1868
    %v1870 = vmul.f32 %v1841, %v1868
    %v1871 = vmul.f32 %v1842, %v1868
    %v1872 = vadd.f32 %v1802, %v1869
    %v1873 = vadd.f32 %v1803, %v1870
    %v1874 = vadd.f32 %v1804, %v1871
    %s1875 = sld [smem:[#allocation7 + $0x404]]
    %v1876 = vstv %s1875
    %v1877 = vmul.f32 %v1840, %v1876
    %v1878 = vmul.f32 %v1841, %v1876
    %v1879 = vmul.f32 %v1842, %v1876
    %v1880 = vadd.f32 %v1810, %v1877
    %v1881 = vadd.f32 %v1811, %v1878
    %v1882 = vadd.f32 %v1812, %v1879
    %v1883 = vld [vmem:[%s119] sm:$0xff]
    %v1884 = vld [vmem:[%s119 + $0x8] sm:$0xff]
    %v1885 = vld [vmem:[%s119 + $0x10] sm:$0xf]
    %s1886 = sld [smem:[#allocation7 + $0x405]]
    %v1887 = vstv %s1886
    %v1888 = vmul.f32 %v1883, %v1887
    %v1889 = vmul.f32 %v1884, %v1887
    %v1890 = vmul.f32 %v1885, %v1887
    %v1891 = vadd.f32 %v1848, %v1888
    %v1892 = vadd.f32 %v1849, %v1889
    %v1893 = vadd.f32 %v1850, %v1890
    %s1894 = sld [smem:[#allocation7 + $0x406]]
    %v1895 = vstv %s1894
    %v1896 = vmul.f32 %v1883, %v1895
    %v1897 = vmul.f32 %v1884, %v1895
    %v1898 = vmul.f32 %v1885, %v1895
    %v1899 = vadd.f32 %v1856, %v1896
    %v1900 = vadd.f32 %v1857, %v1897
    %v1901 = vadd.f32 %v1858, %v1898
    %s1902 = sld [smem:[#allocation7 + $0x407]]
    %v1903 = vstv %s1902
    %v1904 = vmul.f32 %v1883, %v1903
    %v1905 = vmul.f32 %v1884, %v1903
    %v1906 = vmul.f32 %v1885, %v1903
    %v1907 = vadd.f32 %v1864, %v1904
    %v1908 = vadd.f32 %v1865, %v1905
    %v1909 = vadd.f32 %v1866, %v1906
    %s1910 = sld [smem:[#allocation7 + $0x408]]
    %v1911 = vstv %s1910
    %v1912 = vmul.f32 %v1883, %v1911
    %v1913 = vmul.f32 %v1884, %v1911
    %v1914 = vmul.f32 %v1885, %v1911
    %v1915 = vadd.f32 %v1872, %v1912
    %v1916 = vadd.f32 %v1873, %v1913
    %v1917 = vadd.f32 %v1874, %v1914
    %s1918 = sld [smem:[#allocation7 + $0x409]]
    %v1919 = vstv %s1918
    %v1920 = vmul.f32 %v1883, %v1919
    %v1921 = vmul.f32 %v1884, %v1919
    %v1922 = vmul.f32 %v1885, %v1919
    %v1923 = vadd.f32 %v1880, %v1920
    %v1924 = vadd.f32 %v1881, %v1921
    %v1925 = vadd.f32 %v1882, %v1922
    %v1926 = vld [vmem:[%s122] sm:$0xff]
    %v1927 = vld [vmem:[%s122 + $0x8] sm:$0xff]
    %v1928 = vld [vmem:[%s122 + $0x10] sm:$0xf]
    %s1929 = sld [smem:[#allocation7 + $0x40a]]
    %v1930 = vstv %s1929
    %v1931 = vmul.f32 %v1926, %v1930
    %v1932 = vmul.f32 %v1927, %v1930
    %v1933 = vmul.f32 %v1928, %v1930
    %v1934 = vadd.f32 %v1891, %v1931
    %v1935 = vadd.f32 %v1892, %v1932
    %v1936 = vadd.f32 %v1893, %v1933
    %s1937 = sld [smem:[#allocation7 + $0x40b]]
    %v1938 = vstv %s1937
    %v1939 = vmul.f32 %v1926, %v1938
    %v1940 = vmul.f32 %v1927, %v1938
    %v1941 = vmul.f32 %v1928, %v1938
    %v1942 = vadd.f32 %v1899, %v1939
    %v1943 = vadd.f32 %v1900, %v1940
    %v1944 = vadd.f32 %v1901, %v1941
    %s1945 = sld [smem:[#allocation7 + $0x40c]]
    %v1946 = vstv %s1945
    %v1947 = vmul.f32 %v1926, %v1946
    %v1948 = vmul.f32 %v1927, %v1946
    %v1949 = vmul.f32 %v1928, %v1946
    %v1950 = vadd.f32 %v1907, %v1947
    %v1951 = vadd.f32 %v1908, %v1948
    %v1952 = vadd.f32 %v1909, %v1949
    %v1953 = vld [vmem:[%s125] sm:$0xff]
    %v1954 = vld [vmem:[%s125 + $0x8] sm:$0xff]
    %v1955 = vld [vmem:[%s125 + $0x10] sm:$0xf]
    %s1956 = sld [smem:[#allocation7 + $0x680]]
    %v1957 = vstv %s1956
    %v1958 = vmul.f32 %v1953, %v1957
    %v1959 = vmul.f32 %v1954, %v1957
    %v1960 = vmul.f32 %v1955, %v1957
    %v1961 = vadd.f32 %v1934, %v1958
    %v1962 = vadd.f32 %v1935, %v1959
    %v1963 = vadd.f32 %v1936, %v1960
    %s1964 = sld [smem:[#allocation7 + $0x681]]
    %v1965 = vstv %s1964
    %v1966 = vmul.f32 %v1953, %v1965
    %v1967 = vmul.f32 %v1954, %v1965
    %v1968 = vmul.f32 %v1955, %v1965
    %v1969 = vadd.f32 %v1942, %v1966
    %v1970 = vadd.f32 %v1943, %v1967
    %v1971 = vadd.f32 %v1944, %v1968
    %s1972 = sld [smem:[#allocation7 + $0x682]]
    %v1973 = vstv %s1972
    %v1974 = vmul.f32 %v1953, %v1973
    %v1975 = vmul.f32 %v1954, %v1973
    %v1976 = vmul.f32 %v1955, %v1973
    %v1977 = vadd.f32 %v1950, %v1974
    %v1978 = vadd.f32 %v1951, %v1975
    %v1979 = vadd.f32 %v1952, %v1976
    %s1980 = sld [smem:[#allocation7 + $0x683]]
    %v1981 = vstv %s1980
    %v1982 = vmul.f32 %v1953, %v1981
    %v1983 = vmul.f32 %v1954, %v1981
    %v1984 = vmul.f32 %v1955, %v1981
    %v1985 = vadd.f32 %v1915, %v1982
    %v1986 = vadd.f32 %v1916, %v1983
    %v1987 = vadd.f32 %v1917, %v1984
    %s1988 = sld [smem:[#allocation7 + $0x684]]
    %v1989 = vstv %s1988
    %v1990 = vmul.f32 %v1953, %v1989
    %v1991 = vmul.f32 %v1954, %v1989
    %v1992 = vmul.f32 %v1955, %v1989
    %v1993 = vadd.f32 %v1923, %v1990
    %v1994 = vadd.f32 %v1924, %v1991
    %v1995 = vadd.f32 %v1925, %v1992
    %v1996 = vld [vmem:[%s128] sm:$0xff]
    %v1997 = vld [vmem:[%s128 + $0x8] sm:$0xff]
    %v1998 = vld [vmem:[%s128 + $0x10] sm:$0xf]
    %s1999 = sld [smem:[#allocation7 + $0x685]]
    %v2000 = vstv %s1999
    %v2001 = vmul.f32 %v1996, %v2000
    %v2002 = vmul.f32 %v1997, %v2000
    %v2003 = vmul.f32 %v1998, %v2000
    %v2004 = vadd.f32 %v1961, %v2001
    %v2005 = vadd.f32 %v1962, %v2002
    %v2006 = vadd.f32 %v1963, %v2003
    %s2007 = sld [smem:[#allocation7 + $0x686]]
    %v2008 = vstv %s2007
    %v2009 = vmul.f32 %v1996, %v2008
    %v2010 = vmul.f32 %v1997, %v2008
    %v2011 = vmul.f32 %v1998, %v2008
    %v2012 = vadd.f32 %v1969, %v2009
    %v2013 = vadd.f32 %v1970, %v2010
    %v2014 = vadd.f32 %v1971, %v2011
    %s2015 = sld [smem:[#allocation7 + $0x687]]
    %v2016 = vstv %s2015
    %v2017 = vmul.f32 %v1996, %v2016
    %v2018 = vmul.f32 %v1997, %v2016
    %v2019 = vmul.f32 %v1998, %v2016
    %v2020 = vadd.f32 %v1977, %v2017
    %v2021 = vadd.f32 %v1978, %v2018
    %v2022 = vadd.f32 %v1979, %v2019
    %s2023 = sld [smem:[#allocation7 + $0x688]]
    %v2024 = vstv %s2023
    %v2025 = vmul.f32 %v1996, %v2024
    %v2026 = vmul.f32 %v1997, %v2024
    %v2027 = vmul.f32 %v1998, %v2024
    %v2028 = vadd.f32 %v1985, %v2025
    %v2029 = vadd.f32 %v1986, %v2026
    %v2030 = vadd.f32 %v1987, %v2027
    %s2031 = sld [smem:[#allocation7 + $0x689]]
    %v2032 = vstv %s2031
    %v2033 = vmul.f32 %v1996, %v2032
    %v2034 = vmul.f32 %v1997, %v2032
    %v2035 = vmul.f32 %v1998, %v2032
    %v2036 = vadd.f32 %v1993, %v2033
    %v2037 = vadd.f32 %v1994, %v2034
    %v2038 = vadd.f32 %v1995, %v2035
    %v2039 = vld [vmem:[%s131] sm:$0xff]
    %v2040 = vld [vmem:[%s131 + $0x8] sm:$0xff]
    %v2041 = vld [vmem:[%s131 + $0x10] sm:$0xf]
    %s2042 = sld [smem:[#allocation7 + $0x68a]]
    %v2043 = vstv %s2042
    %v2044 = vmul.f32 %v2039, %v2043
    %v2045 = vmul.f32 %v2040, %v2043
    %v2046 = vmul.f32 %v2041, %v2043
    %v2047 = vadd.f32 %v2004, %v2044
    %v2048 = vadd.f32 %v2005, %v2045
    %v2049 = vadd.f32 %v2006, %v2046
    %s2050 = sld [smem:[#allocation7 + $0x68b]]
    %v2051 = vstv %s2050
    %v2052 = vmul.f32 %v2039, %v2051
    %v2053 = vmul.f32 %v2040, %v2051
    %v2054 = vmul.f32 %v2041, %v2051
    %v2055 = vadd.f32 %v2012, %v2052
    %v2056 = vadd.f32 %v2013, %v2053
    %v2057 = vadd.f32 %v2014, %v2054
    %s2058 = sld [smem:[#allocation7 + $0x68c]]
    %v2059 = vstv %s2058
    %v2060 = vmul.f32 %v2039, %v2059
    %v2061 = vmul.f32 %v2040, %v2059
    %v2062 = vmul.f32 %v2041, %v2059
    %v2063 = vadd.f32 %v2020, %v2060
    %v2064 = vadd.f32 %v2021, %v2061
    %v2065 = vadd.f32 %v2022, %v2062
    %v2066 = vld [vmem:[%s134] sm:$0xff]
    %v2067 = vld [vmem:[%s134 + $0x8] sm:$0xff]
    %v2068 = vld [vmem:[%s134 + $0x10] sm:$0xf]
    %s2069 = sld [smem:[#allocation7 + $0x900]]
    %v2070 = vstv %s2069
    %v2071 = vmul.f32 %v2066, %v2070
    %v2072 = vmul.f32 %v2067, %v2070
    %v2073 = vmul.f32 %v2068, %v2070
    %v2074 = vadd.f32 %v2047, %v2071
    %v2075 = vadd.f32 %v2048, %v2072
    %v2076 = vadd.f32 %v2049, %v2073
    %s2077 = sld [smem:[#allocation7 + $0x901]]
    %v2078 = vstv %s2077
    %v2079 = vmul.f32 %v2066, %v2078
    %v2080 = vmul.f32 %v2067, %v2078
    %v2081 = vmul.f32 %v2068, %v2078
    %v2082 = vadd.f32 %v2055, %v2079
    %v2083 = vadd.f32 %v2056, %v2080
    %v2084 = vadd.f32 %v2057, %v2081
    %s2085 = sld [smem:[#allocation7 + $0x902]]
    %v2086 = vstv %s2085
    %v2087 = vmul.f32 %v2066, %v2086
    %v2088 = vmul.f32 %v2067, %v2086
    %v2089 = vmul.f32 %v2068, %v2086
    %v2090 = vadd.f32 %v2063, %v2087
    %v2091 = vadd.f32 %v2064, %v2088
    %v2092 = vadd.f32 %v2065, %v2089
    %s2093 = sld [smem:[#allocation7 + $0x903]]
    %v2094 = vstv %s2093
    %v2095 = vmul.f32 %v2066, %v2094
    %v2096 = vmul.f32 %v2067, %v2094
    %v2097 = vmul.f32 %v2068, %v2094
    %v2098 = vadd.f32 %v2028, %v2095
    %v2099 = vadd.f32 %v2029, %v2096
    %v2100 = vadd.f32 %v2030, %v2097
    %s2101 = sld [smem:[#allocation7 + $0x904]]
    %v2102 = vstv %s2101
    %v2103 = vmul.f32 %v2066, %v2102
    %v2104 = vmul.f32 %v2067, %v2102
    %v2105 = vmul.f32 %v2068, %v2102
    %v2106 = vadd.f32 %v2036, %v2103
    %v2107 = vadd.f32 %v2037, %v2104
    %v2108 = vadd.f32 %v2038, %v2105
    %v2109 = vld [vmem:[%s137] sm:$0xff]
    %v2110 = vld [vmem:[%s137 + $0x8] sm:$0xff]
    %v2111 = vld [vmem:[%s137 + $0x10] sm:$0xf]
    %s2112 = sld [smem:[#allocation7 + $0x905]]
    %v2113 = vstv %s2112
    %v2114 = vmul.f32 %v2109, %v2113
    %v2115 = vmul.f32 %v2110, %v2113
    %v2116 = vmul.f32 %v2111, %v2113
    %v2117 = vadd.f32 %v2074, %v2114
    %v2118 = vadd.f32 %v2075, %v2115
    %v2119 = vadd.f32 %v2076, %v2116
    %s2120 = sld [smem:[#allocation7 + $0x906]]
    %v2121 = vstv %s2120
    %v2122 = vmul.f32 %v2109, %v2121
    %v2123 = vmul.f32 %v2110, %v2121
    %v2124 = vmul.f32 %v2111, %v2121
    %v2125 = vadd.f32 %v2082, %v2122
    %v2126 = vadd.f32 %v2083, %v2123
    %v2127 = vadd.f32 %v2084, %v2124
    %s2128 = sld [smem:[#allocation7 + $0x907]]
    %v2129 = vstv %s2128
    %v2130 = vmul.f32 %v2109, %v2129
    %v2131 = vmul.f32 %v2110, %v2129
    %v2132 = vmul.f32 %v2111, %v2129
    %v2133 = vadd.f32 %v2090, %v2130
    %v2134 = vadd.f32 %v2091, %v2131
    %v2135 = vadd.f32 %v2092, %v2132
    %s2136 = sld [smem:[#allocation7 + $0x908]]
    %v2137 = vstv %s2136
    %v2138 = vmul.f32 %v2109, %v2137
    %v2139 = vmul.f32 %v2110, %v2137
    %v2140 = vmul.f32 %v2111, %v2137
    %v2141 = vadd.f32 %v2098, %v2138
    %v2142 = vadd.f32 %v2099, %v2139
    %v2143 = vadd.f32 %v2100, %v2140
    %s2144 = sld [smem:[#allocation7 + $0x909]]
    %v2145 = vstv %s2144
    %v2146 = vmul.f32 %v2109, %v2145
    %v2147 = vmul.f32 %v2110, %v2145
    %v2148 = vmul.f32 %v2111, %v2145
    %v2149 = vadd.f32 %v2106, %v2146
    %v2150 = vadd.f32 %v2107, %v2147
    %v2151 = vadd.f32 %v2108, %v2148
    %v2152 = vld [vmem:[%s140] sm:$0xff]
    %v2153 = vld [vmem:[%s140 + $0x8] sm:$0xff]
    %v2154 = vld [vmem:[%s140 + $0x10] sm:$0xf]
    %s2155 = sld [smem:[#allocation7 + $0x90a]]
    %v2156 = vstv %s2155
    %v2157 = vmul.f32 %v2152, %v2156
    %v2158 = vmul.f32 %v2153, %v2156
    %v2159 = vmul.f32 %v2154, %v2156
    %v2160 = vadd.f32 %v2117, %v2157
    %v2161 = vadd.f32 %v2118, %v2158
    %v2162 = vadd.f32 %v2119, %v2159
    %s2163 = sld [smem:[#allocation7 + $0x90b]]
    %v2164 = vstv %s2163
    %v2165 = vmul.f32 %v2152, %v2164
    %v2166 = vmul.f32 %v2153, %v2164
    %v2167 = vmul.f32 %v2154, %v2164
    %v2168 = vadd.f32 %v2125, %v2165
    %v2169 = vadd.f32 %v2126, %v2166
    %v2170 = vadd.f32 %v2127, %v2167
    %s2171 = sld [smem:[#allocation7 + $0x90c]]
    %v2172 = vstv %s2171
    %v2173 = vmul.f32 %v2152, %v2172
    %v2174 = vmul.f32 %v2153, %v2172
    %v2175 = vmul.f32 %v2154, %v2172
    %v2176 = vadd.f32 %v2133, %v2173
    %v2177 = vadd.f32 %v2134, %v2174
    %v2178 = vadd.f32 %v2135, %v2175
    %v2179 = vtanh.pop %v2160
    %v2180 = vtanh.pop %v2161
    %v2181 = vtanh.pop %v2162
    %s2182 = scalar_lea.vmem %s3, 360
    %2183 = vst [vmem:[%s2182] sm:$0xff] %v2179
    %2184 = vst [vmem:[%s2182 + $0x8] sm:$0xff] %v2180
    %2185 = vst [vmem:[%s2182 + $0x10] sm:$0xf] %v2181
    %v2186 = vtanh.pop %v2168
    %v2187 = vtanh.pop %v2169
    %v2188 = vtanh.pop %v2170
    %s2189 = scalar_lea.vmem %s3, 384
    %2190 = vst [vmem:[%s2189] sm:$0xff] %v2186
    %2191 = vst [vmem:[%s2189 + $0x8] sm:$0xff] %v2187
    %2192 = vst [vmem:[%s2189 + $0x10] sm:$0xf] %v2188
    %v2193 = vtanh.pop %v2176
    %v2194 = vtanh.pop %v2177
    %v2195 = vtanh.pop %v2178
    %s2196 = scalar_lea.vmem %s3, 408
    %2197 = vst [vmem:[%s2196] sm:$0xff] %v2193
    %2198 = vst [vmem:[%s2196 + $0x8] sm:$0xff] %v2194
    %2199 = vst [vmem:[%s2196 + $0x10] sm:$0xf] %v2195
    %v2200 = vtanh.pop %v2141
    %v2201 = vtanh.pop %v2142
    %v2202 = vtanh.pop %v2143
    %s2203 = scalar_lea.vmem %s3, 432
    %2204 = vst [vmem:[%s2203] sm:$0xff] %v2200
    %2205 = vst [vmem:[%s2203 + $0x8] sm:$0xff] %v2201
    %2206 = vst [vmem:[%s2203 + $0x10] sm:$0xf] %v2202
    %v2207 = vtanh.pop %v2149
    %v2208 = vtanh.pop %v2150
    %v2209 = vtanh.pop %v2151
    %s2210 = scalar_lea.vmem %s3, 456
    %2211 = vst [vmem:[%s2210] sm:$0xff] %v2207
    %2212 = vst [vmem:[%s2210 + $0x8] sm:$0xff] %v2208
    %2213 = vst [vmem:[%s2210 + $0x10] sm:$0xf] %v2209
    %v2214 = vld [vmem:[#allocation2] sm:$0xff]
    %v2215 = vld [vmem:[#allocation2 + $0x8] sm:$0xff]
    %v2216 = vld [vmem:[#allocation2 + $0x10] sm:$0xf]
    %s2217 = sld [smem:[#allocation7 + $0x200]]
    %v2218 = vstv %s2217
    %v2219 = vmul.f32 %v2214, %v2218
    %v2220 = vmul.f32 %v2215, %v2218
    %v2221 = vmul.f32 %v2216, %v2218
    %v2222 = vadd.f32 %v153, %v2219
    %v2223 = vadd.f32 %v153, %v2220
    %v2224 = vadd.f32 %v153, %v2221
    %s2225 = sld [smem:[#allocation7 + $0x201]]
    %v2226 = vstv %s2225
    %v2227 = vmul.f32 %v2214, %v2226
    %v2228 = vmul.f32 %v2215, %v2226
    %v2229 = vmul.f32 %v2216, %v2226
    %v2230 = vadd.f32 %v153, %v2227
    %v2231 = vadd.f32 %v153, %v2228
    %v2232 = vadd.f32 %v153, %v2229
    %s2233 = sld [smem:[#allocation7 + $0x202]]
    %v2234 = vstv %s2233
    %v2235 = vmul.f32 %v2214, %v2234
    %v2236 = vmul.f32 %v2215, %v2234
    %v2237 = vmul.f32 %v2216, %v2234
    %v2238 = vadd.f32 %v153, %v2235
    %v2239 = vadd.f32 %v153, %v2236
    %v2240 = vadd.f32 %v153, %v2237
    %s2241 = sld [smem:[#allocation7 + $0x203]]
    %v2242 = vstv %s2241
    %v2243 = vmul.f32 %v2214, %v2242
    %v2244 = vmul.f32 %v2215, %v2242
    %v2245 = vmul.f32 %v2216, %v2242
    %v2246 = vadd.f32 %v153, %v2243
    %v2247 = vadd.f32 %v153, %v2244
    %v2248 = vadd.f32 %v153, %v2245
    %s2249 = sld [smem:[#allocation7 + $0x204]]
    %v2250 = vstv %s2249
    %v2251 = vmul.f32 %v2214, %v2250
    %v2252 = vmul.f32 %v2215, %v2250
    %v2253 = vmul.f32 %v2216, %v2250
    %v2254 = vadd.f32 %v153, %v2251
    %v2255 = vadd.f32 %v153, %v2252
    %v2256 = vadd.f32 %v153, %v2253
    %v2257 = vld [vmem:[%s102] sm:$0xff]
    %v2258 = vld [vmem:[%s102 + $0x8] sm:$0xff]
    %v2259 = vld [vmem:[%s102 + $0x10] sm:$0xf]
    %s2260 = sld [smem:[#allocation7 + $0x205]]
    %v2261 = vstv %s2260
    %v2262 = vmul.f32 %v2257, %v2261
    %v2263 = vmul.f32 %v2258, %v2261
    %v2264 = vmul.f32 %v2259, %v2261
    %v2265 = vadd.f32 %v2222, %v2262
    %v2266 = vadd.f32 %v2223, %v2263
    %v2267 = vadd.f32 %v2224, %v2264
    %s2268 = sld [smem:[#allocation7 + $0x206]]
    %v2269 = vstv %s2268
    %v2270 = vmul.f32 %v2257, %v2269
    %v2271 = vmul.f32 %v2258, %v2269
    %v2272 = vmul.f32 %v2259, %v2269
    %v2273 = vadd.f32 %v2230, %v2270
    %v2274 = vadd.f32 %v2231, %v2271
    %v2275 = vadd.f32 %v2232, %v2272
    %s2276 = sld [smem:[#allocation7 + $0x207]]
    %v2277 = vstv %s2276
    %v2278 = vmul.f32 %v2257, %v2277
    %v2279 = vmul.f32 %v2258, %v2277
    %v2280 = vmul.f32 %v2259, %v2277
    %v2281 = vadd.f32 %v2238, %v2278
    %v2282 = vadd.f32 %v2239, %v2279
    %v2283 = vadd.f32 %v2240, %v2280
    %s2284 = sld [smem:[#allocation7 + $0x208]]
    %v2285 = vstv %s2284
    %v2286 = vmul.f32 %v2257, %v2285
    %v2287 = vmul.f32 %v2258, %v2285
    %v2288 = vmul.f32 %v2259, %v2285
    %v2289 = vadd.f32 %v2246, %v2286
    %v2290 = vadd.f32 %v2247, %v2287
    %v2291 = vadd.f32 %v2248, %v2288
    %s2292 = sld [smem:[#allocation7 + $0x209]]
    %v2293 = vstv %s2292
    %v2294 = vmul.f32 %v2257, %v2293
    %v2295 = vmul.f32 %v2258, %v2293
    %v2296 = vmul.f32 %v2259, %v2293
    %v2297 = vadd.f32 %v2254, %v2294
    %v2298 = vadd.f32 %v2255, %v2295
    %v2299 = vadd.f32 %v2256, %v2296
    %v2300 = vld [vmem:[%s112] sm:$0xff]
    %v2301 = vld [vmem:[%s112 + $0x8] sm:$0xff]
    %v2302 = vld [vmem:[%s112 + $0x10] sm:$0xf]
    %s2303 = sld [smem:[#allocation7 + $0x20a]]
    %v2304 = vstv %s2303
    %v2305 = vmul.f32 %v2300, %v2304
    %v2306 = vmul.f32 %v2301, %v2304
    %v2307 = vmul.f32 %v2302, %v2304
    %v2308 = vadd.f32 %v2265, %v2305
    %v2309 = vadd.f32 %v2266, %v2306
    %v2310 = vadd.f32 %v2267, %v2307
    %s2311 = sld [smem:[#allocation7 + $0x20b]]
    %v2312 = vstv %s2311
    %v2313 = vmul.f32 %v2300, %v2312
    %v2314 = vmul.f32 %v2301, %v2312
    %v2315 = vmul.f32 %v2302, %v2312
    %v2316 = vadd.f32 %v2273, %v2313
    %v2317 = vadd.f32 %v2274, %v2314
    %v2318 = vadd.f32 %v2275, %v2315
    %s2319 = sld [smem:[#allocation7 + $0x20c]]
    %v2320 = vstv %s2319
    %v2321 = vmul.f32 %v2300, %v2320
    %v2322 = vmul.f32 %v2301, %v2320
    %v2323 = vmul.f32 %v2302, %v2320
    %v2324 = vadd.f32 %v2281, %v2321
    %v2325 = vadd.f32 %v2282, %v2322
    %v2326 = vadd.f32 %v2283, %v2323
    %v2327 = vld [vmem:[%s116] sm:$0xff]
    %v2328 = vld [vmem:[%s116 + $0x8] sm:$0xff]
    %v2329 = vld [vmem:[%s116 + $0x10] sm:$0xf]
    %s2330 = sld [smem:[#allocation7 + $0x480]]
    %v2331 = vstv %s2330
    %v2332 = vmul.f32 %v2327, %v2331
    %v2333 = vmul.f32 %v2328, %v2331
    %v2334 = vmul.f32 %v2329, %v2331
    %v2335 = vadd.f32 %v2308, %v2332
    %v2336 = vadd.f32 %v2309, %v2333
    %v2337 = vadd.f32 %v2310, %v2334
    %s2338 = sld [smem:[#allocation7 + $0x481]]
    %v2339 = vstv %s2338
    %v2340 = vmul.f32 %v2327, %v2339
    %v2341 = vmul.f32 %v2328, %v2339
    %v2342 = vmul.f32 %v2329, %v2339
    %v2343 = vadd.f32 %v2316, %v2340
    %v2344 = vadd.f32 %v2317, %v2341
    %v2345 = vadd.f32 %v2318, %v2342
    %s2346 = sld [smem:[#allocation7 + $0x482]]
    %v2347 = vstv %s2346
    %v2348 = vmul.f32 %v2327, %v2347
    %v2349 = vmul.f32 %v2328, %v2347
    %v2350 = vmul.f32 %v2329, %v2347
    %v2351 = vadd.f32 %v2324, %v2348
    %v2352 = vadd.f32 %v2325, %v2349
    %v2353 = vadd.f32 %v2326, %v2350
    %s2354 = sld [smem:[#allocation7 + $0x483]]
    %v2355 = vstv %s2354
    %v2356 = vmul.f32 %v2327, %v2355
    %v2357 = vmul.f32 %v2328, %v2355
    %v2358 = vmul.f32 %v2329, %v2355
    %v2359 = vadd.f32 %v2289, %v2356
    %v2360 = vadd.f32 %v2290, %v2357
    %v2361 = vadd.f32 %v2291, %v2358
    %s2362 = sld [smem:[#allocation7 + $0x484]]
    %v2363 = vstv %s2362
    %v2364 = vmul.f32 %v2327, %v2363
    %v2365 = vmul.f32 %v2328, %v2363
    %v2366 = vmul.f32 %v2329, %v2363
    %v2367 = vadd.f32 %v2297, %v2364
    %v2368 = vadd.f32 %v2298, %v2365
    %v2369 = vadd.f32 %v2299, %v2366
    %v2370 = vld [vmem:[%s119] sm:$0xff]
    %v2371 = vld [vmem:[%s119 + $0x8] sm:$0xff]
    %v2372 = vld [vmem:[%s119 + $0x10] sm:$0xf]
    %s2373 = sld [smem:[#allocation7 + $0x485]]
    %v2374 = vstv %s2373
    %v2375 = vmul.f32 %v2370, %v2374
    %v2376 = vmul.f32 %v2371, %v2374
    %v2377 = vmul.f32 %v2372, %v2374
    %v2378 = vadd.f32 %v2335, %v2375
    %v2379 = vadd.f32 %v2336, %v2376
    %v2380 = vadd.f32 %v2337, %v2377
    %s2381 = sld [smem:[#allocation7 + $0x486]]
    %v2382 = vstv %s2381
    %v2383 = vmul.f32 %v2370, %v2382
    %v2384 = vmul.f32 %v2371, %v2382
    %v2385 = vmul.f32 %v2372, %v2382
    %v2386 = vadd.f32 %v2343, %v2383
    %v2387 = vadd.f32 %v2344, %v2384
    %v2388 = vadd.f32 %v2345, %v2385
    %s2389 = sld [smem:[#allocation7 + $0x487]]
    %v2390 = vstv %s2389
    %v2391 = vmul.f32 %v2370, %v2390
    %v2392 = vmul.f32 %v2371, %v2390
    %v2393 = vmul.f32 %v2372, %v2390
    %v2394 = vadd.f32 %v2351, %v2391
    %v2395 = vadd.f32 %v2352, %v2392
    %v2396 = vadd.f32 %v2353, %v2393
    %s2397 = sld [smem:[#allocation7 + $0x488]]
    %v2398 = vstv %s2397
    %v2399 = vmul.f32 %v2370, %v2398
    %v2400 = vmul.f32 %v2371, %v2398
    %v2401 = vmul.f32 %v2372, %v2398
    %v2402 = vadd.f32 %v2359, %v2399
    %v2403 = vadd.f32 %v2360, %v2400
    %v2404 = vadd.f32 %v2361, %v2401
    %s2405 = sld [smem:[#allocation7 + $0x489]]
    %v2406 = vstv %s2405
    %v2407 = vmul.f32 %v2370, %v2406
    %v2408 = vmul.f32 %v2371, %v2406
    %v2409 = vmul.f32 %v2372, %v2406
    %v2410 = vadd.f32 %v2367, %v2407
    %v2411 = vadd.f32 %v2368, %v2408
    %v2412 = vadd.f32 %v2369, %v2409
    %v2413 = vld [vmem:[%s122] sm:$0xff]
    %v2414 = vld [vmem:[%s122 + $0x8] sm:$0xff]
    %v2415 = vld [vmem:[%s122 + $0x10] sm:$0xf]
    %s2416 = sld [smem:[#allocation7 + $0x48a]]
    %v2417 = vstv %s2416
    %v2418 = vmul.f32 %v2413, %v2417
    %v2419 = vmul.f32 %v2414, %v2417
    %v2420 = vmul.f32 %v2415, %v2417
    %v2421 = vadd.f32 %v2378, %v2418
    %v2422 = vadd.f32 %v2379, %v2419
    %v2423 = vadd.f32 %v2380, %v2420
    %s2424 = sld [smem:[#allocation7 + $0x48b]]
    %v2425 = vstv %s2424
    %v2426 = vmul.f32 %v2413, %v2425
    %v2427 = vmul.f32 %v2414, %v2425
    %v2428 = vmul.f32 %v2415, %v2425
    %v2429 = vadd.f32 %v2386, %v2426
    %v2430 = vadd.f32 %v2387, %v2427
    %v2431 = vadd.f32 %v2388, %v2428
    %s2432 = sld [smem:[#allocation7 + $0x48c]]
    %v2433 = vstv %s2432
    %v2434 = vmul.f32 %v2413, %v2433
    %v2435 = vmul.f32 %v2414, %v2433
    %v2436 = vmul.f32 %v2415, %v2433
    %v2437 = vadd.f32 %v2394, %v2434
    %v2438 = vadd.f32 %v2395, %v2435
    %v2439 = vadd.f32 %v2396, %v2436
    %v2440 = vld [vmem:[%s125] sm:$0xff]
    %v2441 = vld [vmem:[%s125 + $0x8] sm:$0xff]
    %v2442 = vld [vmem:[%s125 + $0x10] sm:$0xf]
    %s2443 = sld [smem:[#allocation7 + $0x700]]
    %v2444 = vstv %s2443
    %v2445 = vmul.f32 %v2440, %v2444
    %v2446 = vmul.f32 %v2441, %v2444
    %v2447 = vmul.f32 %v2442, %v2444
    %v2448 = vadd.f32 %v2421, %v2445
    %v2449 = vadd.f32 %v2422, %v2446
    %v2450 = vadd.f32 %v2423, %v2447
    %s2451 = sld [smem:[#allocation7 + $0x701]]
    %v2452 = vstv %s2451
    %v2453 = vmul.f32 %v2440, %v2452
    %v2454 = vmul.f32 %v2441, %v2452
    %v2455 = vmul.f32 %v2442, %v2452
    %v2456 = vadd.f32 %v2429, %v2453
    %v2457 = vadd.f32 %v2430, %v2454
    %v2458 = vadd.f32 %v2431, %v2455
    %s2459 = sld [smem:[#allocation7 + $0x702]]
    %v2460 = vstv %s2459
    %v2461 = vmul.f32 %v2440, %v2460
    %v2462 = vmul.f32 %v2441, %v2460
    %v2463 = vmul.f32 %v2442, %v2460
    %v2464 = vadd.f32 %v2437, %v2461
    %v2465 = vadd.f32 %v2438, %v2462
    %v2466 = vadd.f32 %v2439, %v2463
    %s2467 = sld [smem:[#allocation7 + $0x703]]
    %v2468 = vstv %s2467
    %v2469 = vmul.f32 %v2440, %v2468
    %v2470 = vmul.f32 %v2441, %v2468
    %v2471 = vmul.f32 %v2442, %v2468
    %v2472 = vadd.f32 %v2402, %v2469
    %v2473 = vadd.f32 %v2403, %v2470
    %v2474 = vadd.f32 %v2404, %v2471
    %s2475 = sld [smem:[#allocation7 + $0x704]]
    %v2476 = vstv %s2475
    %v2477 = vmul.f32 %v2440, %v2476
    %v2478 = vmul.f32 %v2441, %v2476
    %v2479 = vmul.f32 %v2442, %v2476
    %v2480 = vadd.f32 %v2410, %v2477
    %v2481 = vadd.f32 %v2411, %v2478
    %v2482 = vadd.f32 %v2412, %v2479
    %v2483 = vld [vmem:[%s128] sm:$0xff]
    %v2484 = vld [vmem:[%s128 + $0x8] sm:$0xff]
    %v2485 = vld [vmem:[%s128 + $0x10] sm:$0xf]
    %s2486 = sld [smem:[#allocation7 + $0x705]]
    %v2487 = vstv %s2486
    %v2488 = vmul.f32 %v2483, %v2487
    %v2489 = vmul.f32 %v2484, %v2487
    %v2490 = vmul.f32 %v2485, %v2487
    %v2491 = vadd.f32 %v2448, %v2488
    %v2492 = vadd.f32 %v2449, %v2489
    %v2493 = vadd.f32 %v2450, %v2490
    %s2494 = sld [smem:[#allocation7 + $0x706]]
    %v2495 = vstv %s2494
    %v2496 = vmul.f32 %v2483, %v2495
    %v2497 = vmul.f32 %v2484, %v2495
    %v2498 = vmul.f32 %v2485, %v2495
    %v2499 = vadd.f32 %v2456, %v2496
    %v2500 = vadd.f32 %v2457, %v2497
    %v2501 = vadd.f32 %v2458, %v2498
    %s2502 = sld [smem:[#allocation7 + $0x707]]
    %v2503 = vstv %s2502
    %v2504 = vmul.f32 %v2483, %v2503
    %v2505 = vmul.f32 %v2484, %v2503
    %v2506 = vmul.f32 %v2485, %v2503
    %v2507 = vadd.f32 %v2464, %v2504
    %v2508 = vadd.f32 %v2465, %v2505
    %v2509 = vadd.f32 %v2466, %v2506
    %s2510 = sld [smem:[#allocation7 + $0x708]]
    %v2511 = vstv %s2510
    %v2512 = vmul.f32 %v2483, %v2511
    %v2513 = vmul.f32 %v2484, %v2511
    %v2514 = vmul.f32 %v2485, %v2511
    %v2515 = vadd.f32 %v2472, %v2512
    %v2516 = vadd.f32 %v2473, %v2513
    %v2517 = vadd.f32 %v2474, %v2514
    %s2518 = sld [smem:[#allocation7 + $0x709]]
    %v2519 = vstv %s2518
    %v2520 = vmul.f32 %v2483, %v2519
    %v2521 = vmul.f32 %v2484, %v2519
    %v2522 = vmul.f32 %v2485, %v2519
    %v2523 = vadd.f32 %v2480, %v2520
    %v2524 = vadd.f32 %v2481, %v2521
    %v2525 = vadd.f32 %v2482, %v2522
    %v2526 = vld [vmem:[%s131] sm:$0xff]
    %v2527 = vld [vmem:[%s131 + $0x8] sm:$0xff]
    %v2528 = vld [vmem:[%s131 + $0x10] sm:$0xf]
    %s2529 = sld [smem:[#allocation7 + $0x70a]]
    %v2530 = vstv %s2529
    %v2531 = vmul.f32 %v2526, %v2530
    %v2532 = vmul.f32 %v2527, %v2530
    %v2533 = vmul.f32 %v2528, %v2530
    %v2534 = vadd.f32 %v2491, %v2531
    %v2535 = vadd.f32 %v2492, %v2532
    %v2536 = vadd.f32 %v2493, %v2533
    %s2537 = sld [smem:[#allocation7 + $0x70b]]
    %v2538 = vstv %s2537
    %v2539 = vmul.f32 %v2526, %v2538
    %v2540 = vmul.f32 %v2527, %v2538
    %v2541 = vmul.f32 %v2528, %v2538
    %v2542 = vadd.f32 %v2499, %v2539
    %v2543 = vadd.f32 %v2500, %v2540
    %v2544 = vadd.f32 %v2501, %v2541
    %s2545 = sld [smem:[#allocation7 + $0x70c]]
    %v2546 = vstv %s2545
    %v2547 = vmul.f32 %v2526, %v2546
    %v2548 = vmul.f32 %v2527, %v2546
    %v2549 = vmul.f32 %v2528, %v2546
    %v2550 = vadd.f32 %v2507, %v2547
    %v2551 = vadd.f32 %v2508, %v2548
    %v2552 = vadd.f32 %v2509, %v2549
    %v2553 = vld [vmem:[%s134] sm:$0xff]
    %v2554 = vld [vmem:[%s134 + $0x8] sm:$0xff]
    %v2555 = vld [vmem:[%s134 + $0x10] sm:$0xf]
    %s2556 = sld [smem:[#allocation7 + $0x980]]
    %v2557 = vstv %s2556
    %v2558 = vmul.f32 %v2553, %v2557
    %v2559 = vmul.f32 %v2554, %v2557
    %v2560 = vmul.f32 %v2555, %v2557
    %v2561 = vadd.f32 %v2534, %v2558
    %v2562 = vadd.f32 %v2535, %v2559
    %v2563 = vadd.f32 %v2536, %v2560
    %s2564 = sld [smem:[#allocation7 + $0x981]]
    %v2565 = vstv %s2564
    %v2566 = vmul.f32 %v2553, %v2565
    %v2567 = vmul.f32 %v2554, %v2565
    %v2568 = vmul.f32 %v2555, %v2565
    %v2569 = vadd.f32 %v2542, %v2566
    %v2570 = vadd.f32 %v2543, %v2567
    %v2571 = vadd.f32 %v2544, %v2568
    %s2572 = sld [smem:[#allocation7 + $0x982]]
    %v2573 = vstv %s2572
    %v2574 = vmul.f32 %v2553, %v2573
    %v2575 = vmul.f32 %v2554, %v2573
    %v2576 = vmul.f32 %v2555, %v2573
    %v2577 = vadd.f32 %v2550, %v2574
    %v2578 = vadd.f32 %v2551, %v2575
    %v2579 = vadd.f32 %v2552, %v2576
    %s2580 = sld [smem:[#allocation7 + $0x983]]
    %v2581 = vstv %s2580
    %v2582 = vmul.f32 %v2553, %v2581
    %v2583 = vmul.f32 %v2554, %v2581
    %v2584 = vmul.f32 %v2555, %v2581
    %v2585 = vadd.f32 %v2515, %v2582
    %v2586 = vadd.f32 %v2516, %v2583
    %v2587 = vadd.f32 %v2517, %v2584
    %s2588 = sld [smem:[#allocation7 + $0x984]]
    %v2589 = vstv %s2588
    %v2590 = vmul.f32 %v2553, %v2589
    %v2591 = vmul.f32 %v2554, %v2589
    %v2592 = vmul.f32 %v2555, %v2589
    %v2593 = vadd.f32 %v2523, %v2590
    %v2594 = vadd.f32 %v2524, %v2591
    %v2595 = vadd.f32 %v2525, %v2592
    %v2596 = vld [vmem:[%s137] sm:$0xff]
    %v2597 = vld [vmem:[%s137 + $0x8] sm:$0xff]
    %v2598 = vld [vmem:[%s137 + $0x10] sm:$0xf]
    %s2599 = sld [smem:[#allocation7 + $0x985]]
    %v2600 = vstv %s2599
    %v2601 = vmul.f32 %v2596, %v2600
    %v2602 = vmul.f32 %v2597, %v2600
    %v2603 = vmul.f32 %v2598, %v2600
    %v2604 = vadd.f32 %v2561, %v2601
    %v2605 = vadd.f32 %v2562, %v2602
    %v2606 = vadd.f32 %v2563, %v2603
    %s2607 = sld [smem:[#allocation7 + $0x986]]
    %v2608 = vstv %s2607
    %v2609 = vmul.f32 %v2596, %v2608
    %v2610 = vmul.f32 %v2597, %v2608
    %v2611 = vmul.f32 %v2598, %v2608
    %v2612 = vadd.f32 %v2569, %v2609
    %v2613 = vadd.f32 %v2570, %v2610
    %v2614 = vadd.f32 %v2571, %v2611
    %s2615 = sld [smem:[#allocation7 + $0x987]]
    %v2616 = vstv %s2615
    %v2617 = vmul.f32 %v2596, %v2616
    %v2618 = vmul.f32 %v2597, %v2616
    %v2619 = vmul.f32 %v2598, %v2616
    %v2620 = vadd.f32 %v2577, %v2617
    %v2621 = vadd.f32 %v2578, %v2618
    %v2622 = vadd.f32 %v2579, %v2619
    %s2623 = sld [smem:[#allocation7 + $0x988]]
    %v2624 = vstv %s2623
    %v2625 = vmul.f32 %v2596, %v2624
    %v2626 = vmul.f32 %v2597, %v2624
    %v2627 = vmul.f32 %v2598, %v2624
    %v2628 = vadd.f32 %v2585, %v2625
    %v2629 = vadd.f32 %v2586, %v2626
    %v2630 = vadd.f32 %v2587, %v2627
    %s2631 = sld [smem:[#allocation7 + $0x989]]
    %v2632 = vstv %s2631
    %v2633 = vmul.f32 %v2596, %v2632
    %v2634 = vmul.f32 %v2597, %v2632
    %v2635 = vmul.f32 %v2598, %v2632
    %v2636 = vadd.f32 %v2593, %v2633
    %v2637 = vadd.f32 %v2594, %v2634
    %v2638 = vadd.f32 %v2595, %v2635
    %v2639 = vld [vmem:[%s140] sm:$0xff]
    %v2640 = vld [vmem:[%s140 + $0x8] sm:$0xff]
    %v2641 = vld [vmem:[%s140 + $0x10] sm:$0xf]
    %s2642 = sld [smem:[#allocation7 + $0x98a]]
    %v2643 = vstv %s2642
    %v2644 = vmul.f32 %v2639, %v2643
    %v2645 = vmul.f32 %v2640, %v2643
    %v2646 = vmul.f32 %v2641, %v2643
    %v2647 = vadd.f32 %v2604, %v2644
    %v2648 = vadd.f32 %v2605, %v2645
    %v2649 = vadd.f32 %v2606, %v2646
    %s2650 = sld [smem:[#allocation7 + $0x98b]]
    %v2651 = vstv %s2650
    %v2652 = vmul.f32 %v2639, %v2651
    %v2653 = vmul.f32 %v2640, %v2651
    %v2654 = vmul.f32 %v2641, %v2651
    %v2655 = vadd.f32 %v2612, %v2652
    %v2656 = vadd.f32 %v2613, %v2653
    %v2657 = vadd.f32 %v2614, %v2654
    %s2658 = sld [smem:[#allocation7 + $0x98c]]
    %v2659 = vstv %s2658
    %v2660 = vmul.f32 %v2639, %v2659
    %v2661 = vmul.f32 %v2640, %v2659
    %v2662 = vmul.f32 %v2641, %v2659
    %v2663 = vadd.f32 %v2620, %v2660
    %v2664 = vadd.f32 %v2621, %v2661
    %v2665 = vadd.f32 %v2622, %v2662
    %v2666 = vtanh.pop %v2647
    %v2667 = vtanh.pop %v2648
    %v2668 = vtanh.pop %v2649
    %s2669 = scalar_lea.vmem %s3, 480
    %2670 = vst [vmem:[%s2669] sm:$0xff] %v2666
    %2671 = vst [vmem:[%s2669 + $0x8] sm:$0xff] %v2667
    %2672 = vst [vmem:[%s2669 + $0x10] sm:$0xf] %v2668
    %v2673 = vtanh.pop %v2655
    %v2674 = vtanh.pop %v2656
    %v2675 = vtanh.pop %v2657
    %s2676 = scalar_lea.vmem %s3, 504
    %2677 = vst [vmem:[%s2676] sm:$0xff] %v2673
    %2678 = vst [vmem:[%s2676 + $0x8] sm:$0xff] %v2674
    %2679 = vst [vmem:[%s2676 + $0x10] sm:$0xf] %v2675
    %v2680 = vtanh.pop %v2663
    %v2681 = vtanh.pop %v2664
    %v2682 = vtanh.pop %v2665
    %s2683 = scalar_lea.vmem %s3, 528
    %2684 = vst [vmem:[%s2683] sm:$0xff] %v2680
    %2685 = vst [vmem:[%s2683 + $0x8] sm:$0xff] %v2681
    %2686 = vst [vmem:[%s2683 + $0x10] sm:$0xf] %v2682
    %v2687 = vtanh.pop %v2628
    %v2688 = vtanh.pop %v2629
    %v2689 = vtanh.pop %v2630
    %s2690 = scalar_lea.vmem %s3, 552
    %2691 = vst [vmem:[%s2690] sm:$0xff] %v2687
    %2692 = vst [vmem:[%s2690 + $0x8] sm:$0xff] %v2688
    %2693 = vst [vmem:[%s2690 + $0x10] sm:$0xf] %v2689
    %v2694 = vtanh.pop %v2636
    %v2695 = vtanh.pop %v2637
    %v2696 = vtanh.pop %v2638
    %s2697 = scalar_lea.vmem %s3, 576
    %2698 = vst [vmem:[%s2697] sm:$0xff] %v2694
    %2699 = vst [vmem:[%s2697 + $0x8] sm:$0xff] %v2695
    %2700 = vst [vmem:[%s2697 + $0x10] sm:$0xf] %v2696
    // Predicated region
    $region22: #{conv_transpose_tanh.1} parent=1 // pred_check
      _
    $region23: #{conv_transpose_tanh.1} parent=1 // pred_check_branch
      %2702 = sbr.rel (0) target = $region25
    $region24: #{conv_transpose_tanh.1} parent=1 // pred_region
      _
    $region25: #{conv_transpose_tanh.1} parent=1 // pred_fallthru
      _
    // Predicated region
    $region26: #{conv_transpose_tanh.1} parent=1 // pred_check
      _
    $region27: #{conv_transpose_tanh.1} parent=1 // pred_check_branch
      %2704 = sbr.rel (0) target = $region29
    $region28: #{conv_transpose_tanh.1} parent=1 // pred_region
      _
    $region29: #{conv_transpose_tanh.1} parent=1 // pred_fallthru
      _
    %2705 = vsyncpa [#allocation5], 1
    %2706 = vsyncpa [#allocation6], 1

</llo_original>
